<compile_context>
chip_gen: v7x
topology: tpu7x:2x2x1
jax: 0.10.0
libtpu: 0.0.40
codegen_flags: <defaults>
</compile_context>

<pallas_src>
import functools

import jax
import jax.numpy as jnp
import numpy as np
from jax.experimental import pallas as pl
from jax.experimental.pallas import tpu as pltpu


def _mha_kernel(x_ref, wqkv_ref, bqkv_ref, wproj_ref, bproj_ref, o_ref,
                xrows_ref, qkv_ref, cat_ref, *,
                n_heads, head_dim, batch_block):
    D = n_heads * head_dim
    P = x_ref.shape[1]

    # Hoisted bias loads (JAX does not CSE broadcast_in_dim across the
    # unrolled loops below).
    bq = bqkv_ref[...]                               # (1, 3D) f32
    bp = bproj_ref[...]                              # (1, D)  f32

    # ---- 1. Stack batch rows into a flat (BB*P, D) operand so the block
    #         issues a single QKV matmul.  Sublane-offset stores only; the
    #         (8,128)-unaligned offsets (P=82) are handled as masked stores,
    #         no value reshape needed. ----
    if batch_block == 1:
        xrows = x_ref[0]                             # (P, D) bf16, skip copy
    else:
        for b in range(batch_block):                 # static, tiny copies
            xrows_ref[b * P:(b + 1) * P, :] = x_ref[b]
        xrows = xrows_ref[...]                       # (BB*P, D) bf16

    # One (BB*P, D) @ (D, 3D) matmul; weights already permuted to
    # [Q | K | V] head-major and Q pre-scaled by 1/sqrt(head_dim).
    qkv = jnp.dot(xrows, wqkv_ref[...], preferred_element_type=jnp.float32)
    qkv_ref[:batch_block * P, :] = (qkv + bq).astype(jnp.bfloat16)

    # ---- 2. Attention per (batch, head); heads concatenated by lane-offset
    #         stores into the bf16 scratch (store slot, not XLU). ----
    for b in range(batch_block):                     # static, unrolled
        r0 = b * P
        for h in range(n_heads):                     # static, unrolled
            lo = h * head_dim
            q = qkv_ref[r0:r0 + P, lo:lo + head_dim]                 # (P,dh)
            k = qkv_ref[r0:r0 + P, D + lo:D + lo + head_dim]         # (P,dh)
            v = qkv_ref[r0:r0 + P, 2 * D + lo:2 * D + lo + head_dim]  # (P,dh)

            # scores: contract last dims directly (no k.T relayout)
            s = jax.lax.dot_general(q, k, (((1,), (1,)), ((), ())),
                                    preferred_element_type=jnp.float32)  # (P,P)

            # softmax in f32; denominator via approx reciprocal (EUP slot).
            # TODO(synk): use exact reciprocal if reused for training/backward.
            s = s - jnp.max(s, axis=-1, keepdims=True)
            p = jnp.exp(s)
            p = p * pl.reciprocal(jnp.sum(p, axis=-1, keepdims=True),
                                  approx=True)

            o_h = jnp.dot(p.astype(jnp.bfloat16), v,
                          preferred_element_type=jnp.float32)         # (P,dh)

            cat_ref[r0:r0 + P, lo:lo + head_dim] = o_h.astype(jnp.bfloat16)

    # ---- 3. Single well-shaped K=D output projection for the whole block. ----
    out = jnp.dot(cat_ref[:batch_block * P, :], wproj_ref[...],
                  preferred_element_type=jnp.float32) + bp            # (BB*P,D)
    for b in range(batch_block):
        o_ref[b] = out[b * P:(b + 1) * P, :]


def prepare_mha_weights(params, *, n_heads):
    """One-time weight prep (permute to [Q|K|V] head-major, fold 1/sqrt(dh)
    into the Q block, transpose, cast to bf16).  Call once at init, NOT per
    forward call."""
    D = params["wproj"].shape[0]
    head_dim = D // n_heads
    scale = float(head_dim) ** (-0.5)

    # Original qkv-linear output feature j corresponds to (h, d, qkv) with
    # j = (h*head_dim + d)*3 + qkv  (einops 'b p (h d qkv)').  New order:
    # i = qkv*D + h*head_dim + d.
    i = np.arange(3 * D)
    qkv_idx = i // D
    rem = i % D
    orig_j = rem * 3 + qkv_idx

    wqkv_p = params["wqkv"][orig_j]                  # (3D, D)
    bqkv_p = params["bqkv"][orig_j]                  # (3D,)

    qmask = jnp.where(jnp.arange(3 * D) < D, scale, 1.0).astype(jnp.float32)
    wqkv_p = wqkv_p * qmask[:, None]
    bqkv_p = bqkv_p * qmask

    return {
        "wqkv_t": jnp.asarray(wqkv_p.T, jnp.bfloat16),              # (D, 3D)
        "bqkv": jnp.asarray(bqkv_p.reshape(1, 3 * D), jnp.float32),  # (1, 3D)
        "wproj_t": jnp.asarray(params["wproj"].T, jnp.bfloat16),    # (D, D)
        "bproj": jnp.asarray(params["bproj"].reshape(1, D), jnp.float32),
    }


def mha_pallas(x, prepared, *, n_heads, batch_block=1):
    """x: (B, P, D) float32.  prepared: output of prepare_mha_weights().

    batch_block guidance:
      * v5e / v6e (1 TensorCore): batch_block = B  (single grid step).
      * v7x (2 TensorCores):      keep B // batch_block >= 2 and even so the
        'parallel' grid axis shards across both cores (never batch_block=B).
    """
    B, P, D = x.shape
    assert D % n_heads == 0 and B % batch_block == 0
    head_dim = D // n_heads

    x_bf16 = x.astype(jnp.bfloat16)      # halve activation DMA, no in-kernel cast

    kernel = functools.partial(_mha_kernel, n_heads=n_heads,
                               head_dim=head_dim, batch_block=batch_block)

    const2d = lambda r, c: pl.BlockSpec((r, c), lambda b: (0, 0))
    BP = batch_block * P

    # Advisory cost hint for XLA's scheduler around this small custom call.
    flops = 2 * B * (P * D * 3 * D                       # qkv projection
                     + n_heads * 2 * P * P * head_dim    # scores + p@v
                     + P * D * D)                        # output projection
    transcendentals = B * n_heads * P * P                # exp in softmax
    bytes_accessed = (B * P * D * 2 + B * P * D * 4      # x bf16 in, out f32
                      + 3 * D * D * 2 + 3 * D * 4        # wqkv, bqkv
                      + D * D * 2 + D * 4)               # wproj, bproj
    cost = pl.CostEstimate(flops=flops, transcendentals=transcendentals,
                           bytes_accessed=bytes_accessed)

    return pl.pallas_call(
        kernel,
        out_shape=jax.ShapeDtypeStruct((B, P, D), jnp.float32),
        grid_spec=pltpu.PrefetchScalarGridSpec(
            num_scalar_prefetch=0,
            grid=(B // batch_block,),
            in_specs=[
                pl.BlockSpec((batch_block, P, D), lambda b: (b, 0, 0)),  # x (bf16)
                const2d(D, 3 * D),          # wqkv^T (permuted, Q-scaled, bf16)
                const2d(1, 3 * D),          # bqkv   (permuted, Q-scaled, f32)
                const2d(D, D),              # wproj^T (bf16)
                const2d(1, D),              # bproj  (f32)
            ],
            out_specs=pl.BlockSpec((batch_block, P, D), lambda b: (b, 0, 0)),
            scratch_shapes=[
                pltpu.VMEM((BP, D), jnp.bfloat16),       # stacked x rows
                pltpu.VMEM((BP, 3 * D), jnp.bfloat16),   # qkv (bias-added, bf16)
                pltpu.VMEM((BP, D), jnp.bfloat16),       # concatenated heads
            ],
        ),
        compiler_params=pltpu.CompilerParams(
            dimension_semantics=("parallel",)),
        cost_estimate=cost,
    )(x_bf16, prepared["wqkv_t"], prepared["bqkv"],
      prepared["wproj_t"], prepared["bproj"])


def mha_reference(x, params, *, n_heads):
    """Pure-JAX reference mirroring the PyTorch module exactly (mode='regular')."""
    B, P, D = x.shape
    dh = D // n_heads
    scale = float(dh) ** (-0.5)

    qkv = x @ params["wqkv"].T + params["bqkv"]          # (B, P, 3D)
    qkv = qkv.reshape(B, P, n_heads, dh, 3)              # (h d qkv)
    qkv = jnp.transpose(qkv, (4, 0, 2, 1, 3))            # qkv b h p d
    q, k, v = qkv[0], qkv[1], qkv[2]
    dot = jnp.einsum("bhpd,bhqd->bhpq", q, k) * scale
    attn = jax.nn.softmax(dot, axis=-1)
    out = jnp.einsum("bhpq,bhqd->bhpd", attn, v)         # b h p d
    out = jnp.transpose(out, (0, 2, 1, 3)).reshape(B, P, D)  # b p (h d)
    out = out @ params["wproj"].T + params["bproj"]
    return out                                           # dropout = identity


def init_params(key, D):
    ks = jax.random.split(key, 4)
    s = 0.02
    return {
        "wqkv": s * jax.random.normal(ks[0], (3 * D, D), jnp.float32),
        "bqkv": s * jax.random.normal(ks[1], (3 * D,), jnp.float32),
        "wproj": s * jax.random.normal(ks[2], (D, D), jnp.float32),
        "bproj": s * jax.random.normal(ks[3], (D,), jnp.float32),
    }


if __name__ == "__main__":
    B, P, D, H = 2, 82, 128, 4   # (b, 82, latent_vector_size), n_heads=4

    key = jax.random.PRNGKey(0)
    kx, kp = jax.random.split(key)
    x = jax.random.normal(kx, (B, P, D), jnp.float32)
    params = init_params(kp, D)

    prepared = prepare_mha_weights(params, n_heads=H)    # one-time weight prep
    ref = mha_reference(x, params, n_heads=H)

    # One batch per grid step (v7x: both TensorCores busy via 'parallel' axis).
    out1 = jax.block_until_ready(
        mha_pallas(x, prepared, n_heads=H, batch_block=1))
    np.testing.assert_allclose(np.asarray(out1), np.asarray(ref),
                               rtol=2e-2, atol=2e-3)

    # Whole batch in one fat grid step (single-TC v5e/v6e: no per-step overhead).
    out2 = jax.block_until_ready(
        mha_pallas(x, prepared, n_heads=H, batch_block=B))
    np.testing.assert_allclose(np.asarray(out2), np.asarray(ref),
                               rtol=2e-2, atol=2e-3)

    print("KERNEL_OK")
</pallas_src>

<mosaic_0001>
module attributes {stable_mosaic.version = 11 : i64} {
  func.func @_mha_kernel(%arg0: i32, %arg1: memref<1x82x128xbf16, #tpu.memory_space<vmem>>, %arg2: memref<128x384xbf16, #tpu.memory_space<vmem>>, %arg3: memref<1x384xf32, #tpu.memory_space<vmem>>, %arg4: memref<128x128xbf16, #tpu.memory_space<vmem>>, %arg5: memref<1x128xf32, #tpu.memory_space<vmem>>, %arg6: memref<1x82x128xf32, #tpu.memory_space<vmem>>, %arg7: memref<82x128xbf16, #tpu.memory_space<vmem>>, %arg8: memref<82x384xbf16, #tpu.memory_space<vmem>>, %arg9: memref<82x128xbf16, #tpu.memory_space<vmem>>) attributes {dimension_semantics = [#tpu.dimension_semantics<parallel>], iteration_bounds = array<i64: 2>, scalar_prefetch = 0 : i64, scratch_operands = 3 : i64, tpu.core_type = #tpu.core_type<tc>, window_params = [{transform_indices = @transform_0, window_bounds = array<i64: 1, 82, 128>}, {pipeline_mode = #tpu.pipeline_mode<synchronous>, transform_indices = @transform_1, window_bounds = array<i64: 128, 384>}, {pipeline_mode = #tpu.pipeline_mode<synchronous>, transform_indices = @transform_2, window_bounds = array<i64: 1, 384>}, {pipeline_mode = #tpu.pipeline_mode<synchronous>, transform_indices = @transform_3, window_bounds = array<i64: 128, 128>}, {pipeline_mode = #tpu.pipeline_mode<synchronous>, transform_indices = @transform_4, window_bounds = array<i64: 1, 128>}, {transform_indices = @transform_5, window_bounds = array<i64: 1, 82, 128>}]} {
    %c0 = arith.constant 0 : index
    %c0_0 = arith.constant 0 : index
    %0 = vector.load %arg3[%c0, %c0_0] : memref<1x384xf32, #tpu.memory_space<vmem>>, vector<1x384xf32>
    %c0_1 = arith.constant 0 : index
    %c0_2 = arith.constant 0 : index
    %1 = vector.load %arg5[%c0_1, %c0_2] : memref<1x128xf32, #tpu.memory_space<vmem>>, vector<1x128xf32>
    %c0_3 = arith.constant 0 : index
    %c0_4 = arith.constant 0 : index
    %c0_5 = arith.constant 0 : index
    %2 = vector.load %arg1[%c0_3, %c0_4, %c0_5] : memref<1x82x128xbf16, #tpu.memory_space<vmem>>, vector<1x82x128xbf16>
    %3 = vector.shape_cast %2 : vector<1x82x128xbf16> to vector<82x128xbf16>
    %c0_6 = arith.constant 0 : index
    %c0_7 = arith.constant 0 : index
    %4 = vector.load %arg2[%c0_6, %c0_7] : memref<128x384xbf16, #tpu.memory_space<vmem>>, vector<128x384xbf16>
    %cst = arith.constant dense<0.000000e+00> : vector<82x384xf32>
    %5 = tpu.matmul %3, %4, %cst {dimension_numbers = #tpu.dot_dimension_numbers<[1], [0], [0], [1], [0, 0, 1, 1], [], []>} : vector<82x128xbf16>, vector<128x384xbf16>, vector<82x384xf32> -> vector<82x384xf32>
    %6 = vector.broadcast %0 : vector<1x384xf32> to vector<82x384xf32>
    %7 = arith.addf %5, %6 : vector<82x384xf32>
    %8 = arith.truncf %7 : vector<82x384xf32> to vector<82x384xbf16>
    %c0_8 = arith.constant 0 : index
    %c0_9 = arith.constant 0 : index
    %9 = vector.load %arg8[%c0_8, %c0_9] : memref<82x384xbf16, #tpu.memory_space<vmem>>, vector<82x384xbf16>
    tpu.vector_store %arg8[%c0_8, %c0_9], %8 {strides = array<i32>} : memref<82x384xbf16, #tpu.memory_space<vmem>>, vector<82x384xbf16>,
    %c0_10 = arith.constant 0 : index
    %c0_11 = arith.constant 0 : index
    %10 = vector.load %arg8[%c0_10, %c0_11] : memref<82x384xbf16, #tpu.memory_space<vmem>>, vector<82x32xbf16>
    %c0_12 = arith.constant 0 : index
    %c128 = arith.constant 128 : index
    %11 = vector.load %arg8[%c0_12, %c128] : memref<82x384xbf16, #tpu.memory_space<vmem>>, vector<82x32xbf16>
    %c0_13 = arith.constant 0 : index
    %c256 = arith.constant 256 : index
    %12 = vector.load %arg8[%c0_13, %c256] : memref<82x384xbf16, #tpu.memory_space<vmem>>, vector<82x32xbf16>
    %cst_14 = arith.constant dense<0.000000e+00> : vector<82x82xf32>
    %13 = tpu.matmul %10, %11, %cst_14 {dimension_numbers = #tpu.dot_dimension_numbers<[1], [1], [0], [0], [0, 0, 1, 0], [], []>} : vector<82x32xbf16>, vector<82x32xbf16>, vector<82x82xf32> -> vector<82x82xf32>
    %cst_15 = arith.constant dense<0xFF800000> : vector<82xf32>
    %14 = vector.multi_reduction <maximumf>, %13, %cst_15 [1] : vector<82x82xf32> to vector<82xf32>
    %15 = vector.shape_cast %14 : vector<82xf32> to vector<82x1xf32>
    %16 = vector.broadcast %15 : vector<82x1xf32> to vector<82x82xf32>
    %17 = arith.subf %13, %16 : vector<82x82xf32>
    %18 = math.exp %17 : vector<82x82xf32>
    %cst_16 = arith.constant dense<0.000000e+00> : vector<82xf32>
    %19 = vector.multi_reduction <add>, %18, %cst_16 [1] : vector<82x82xf32> to vector<82xf32>
    %20 = vector.shape_cast %19 : vector<82xf32> to vector<82x1xf32>
    %21 = tpu.reciprocal %20 {approx = true} : vector<82x1xf32> -> vector<82x1xf32>
    %22 = vector.broadcast %21 : vector<82x1xf32> to vector<82x82xf32>
    %23 = arith.mulf %18, %22 : vector<82x82xf32>
    %24 = arith.truncf %23 : vector<82x82xf32> to vector<82x82xbf16>
    %cst_17 = arith.constant dense<0.000000e+00> : vector<82x32xf32>
    %25 = tpu.matmul %24, %12, %cst_17 {dimension_numbers = #tpu.dot_dimension_numbers<[1], [0], [0], [1], [0, 0, 1, 1], [], []>} : vector<82x82xbf16>, vector<82x32xbf16>, vector<82x32xf32> -> vector<82x32xf32>
    %26 = arith.truncf %25 : vector<82x32xf32> to vector<82x32xbf16>
    %c0_18 = arith.constant 0 : index
    %c0_19 = arith.constant 0 : index
    %27 = vector.load %arg9[%c0_18, %c0_19] : memref<82x128xbf16, #tpu.memory_space<vmem>>, vector<82x32xbf16>
    tpu.vector_store %arg9[%c0_18, %c0_19], %26 {strides = array<i32>} : memref<82x128xbf16, #tpu.memory_space<vmem>>, vector<82x32xbf16>,
    %c0_20 = arith.constant 0 : index
    %c32 = arith.constant 32 : index
    %28 = vector.load %arg8[%c0_20, %c32] : memref<82x384xbf16, #tpu.memory_space<vmem>>, vector<82x32xbf16>
    %c0_21 = arith.constant 0 : index
    %c160 = arith.constant 160 : index
    %29 = vector.load %arg8[%c0_21, %c160] : memref<82x384xbf16, #tpu.memory_space<vmem>>, vector<82x32xbf16>
    %c0_22 = arith.constant 0 : index
    %c288 = arith.constant 288 : index
    %30 = vector.load %arg8[%c0_22, %c288] : memref<82x384xbf16, #tpu.memory_space<vmem>>, vector<82x32xbf16>
    %cst_23 = arith.constant dense<0.000000e+00> : vector<82x82xf32>
    %31 = tpu.matmul %28, %29, %cst_23 {dimension_numbers = #tpu.dot_dimension_numbers<[1], [1], [0], [0], [0, 0, 1, 0], [], []>} : vector<82x32xbf16>, vector<82x32xbf16>, vector<82x82xf32> -> vector<82x82xf32>
    %cst_24 = arith.constant dense<0xFF800000> : vector<82xf32>
    %32 = vector.multi_reduction <maximumf>, %31, %cst_24 [1] : vector<82x82xf32> to vector<82xf32>
    %33 = vector.shape_cast %32 : vector<82xf32> to vector<82x1xf32>
    %34 = vector.broadcast %33 : vector<82x1xf32> to vector<82x82xf32>
    %35 = arith.subf %31, %34 : vector<82x82xf32>
    %36 = math.exp %35 : vector<82x82xf32>
    %cst_25 = arith.constant dense<0.000000e+00> : vector<82xf32>
    %37 = vector.multi_reduction <add>, %36, %cst_25 [1] : vector<82x82xf32> to vector<82xf32>
    %38 = vector.shape_cast %37 : vector<82xf32> to vector<82x1xf32>
    %39 = tpu.reciprocal %38 {approx = true} : vector<82x1xf32> -> vector<82x1xf32>
    %40 = vector.broadcast %39 : vector<82x1xf32> to vector<82x82xf32>
    %41 = arith.mulf %36, %40 : vector<82x82xf32>
    %42 = arith.truncf %41 : vector<82x82xf32> to vector<82x82xbf16>
    %cst_26 = arith.constant dense<0.000000e+00> : vector<82x32xf32>
    %43 = tpu.matmul %42, %30, %cst_26 {dimension_numbers = #tpu.dot_dimension_numbers<[1], [0], [0], [1], [0, 0, 1, 1], [], []>} : vector<82x82xbf16>, vector<82x32xbf16>, vector<82x32xf32> -> vector<82x32xf32>
    %44 = arith.truncf %43 : vector<82x32xf32> to vector<82x32xbf16>
    %c0_27 = arith.constant 0 : index
    %c32_28 = arith.constant 32 : index
    %45 = vector.load %arg9[%c0_27, %c32_28] : memref<82x128xbf16, #tpu.memory_space<vmem>>, vector<82x32xbf16>
    tpu.vector_store %arg9[%c0_27, %c32_28], %44 {strides = array<i32>} : memref<82x128xbf16, #tpu.memory_space<vmem>>, vector<82x32xbf16>,
    %c0_29 = arith.constant 0 : index
    %c64 = arith.constant 64 : index
    %46 = vector.load %arg8[%c0_29, %c64] : memref<82x384xbf16, #tpu.memory_space<vmem>>, vector<82x32xbf16>
    %c0_30 = arith.constant 0 : index
    %c192 = arith.constant 192 : index
    %47 = vector.load %arg8[%c0_30, %c192] : memref<82x384xbf16, #tpu.memory_space<vmem>>, vector<82x32xbf16>
    %c0_31 = arith.constant 0 : index
    %c320 = arith.constant 320 : index
    %48 = vector.load %arg8[%c0_31, %c320] : memref<82x384xbf16, #tpu.memory_space<vmem>>, vector<82x32xbf16>
    %cst_32 = arith.constant dense<0.000000e+00> : vector<82x82xf32>
    %49 = tpu.matmul %46, %47, %cst_32 {dimension_numbers = #tpu.dot_dimension_numbers<[1], [1], [0], [0], [0, 0, 1, 0], [], []>} : vector<82x32xbf16>, vector<82x32xbf16>, vector<82x82xf32> -> vector<82x82xf32>
    %cst_33 = arith.constant dense<0xFF800000> : vector<82xf32>
    %50 = vector.multi_reduction <maximumf>, %49, %cst_33 [1] : vector<82x82xf32> to vector<82xf32>
    %51 = vector.shape_cast %50 : vector<82xf32> to vector<82x1xf32>
    %52 = vector.broadcast %51 : vector<82x1xf32> to vector<82x82xf32>
    %53 = arith.subf %49, %52 : vector<82x82xf32>
    %54 = math.exp %53 : vector<82x82xf32>
    %cst_34 = arith.constant dense<0.000000e+00> : vector<82xf32>
    %55 = vector.multi_reduction <add>, %54, %cst_34 [1] : vector<82x82xf32> to vector<82xf32>
    %56 = vector.shape_cast %55 : vector<82xf32> to vector<82x1xf32>
    %57 = tpu.reciprocal %56 {approx = true} : vector<82x1xf32> -> vector<82x1xf32>
    %58 = vector.broadcast %57 : vector<82x1xf32> to vector<82x82xf32>
    %59 = arith.mulf %54, %58 : vector<82x82xf32>
    %60 = arith.truncf %59 : vector<82x82xf32> to vector<82x82xbf16>
    %cst_35 = arith.constant dense<0.000000e+00> : vector<82x32xf32>
    %61 = tpu.matmul %60, %48, %cst_35 {dimension_numbers = #tpu.dot_dimension_numbers<[1], [0], [0], [1], [0, 0, 1, 1], [], []>} : vector<82x82xbf16>, vector<82x32xbf16>, vector<82x32xf32> -> vector<82x32xf32>
    %62 = arith.truncf %61 : vector<82x32xf32> to vector<82x32xbf16>
    %c0_36 = arith.constant 0 : index
    %c64_37 = arith.constant 64 : index
    %63 = vector.load %arg9[%c0_36, %c64_37] : memref<82x128xbf16, #tpu.memory_space<vmem>>, vector<82x32xbf16>
    tpu.vector_store %arg9[%c0_36, %c64_37], %62 {strides = array<i32>} : memref<82x128xbf16, #tpu.memory_space<vmem>>, vector<82x32xbf16>,
    %c0_38 = arith.constant 0 : index
    %c96 = arith.constant 96 : index
    %64 = vector.load %arg8[%c0_38, %c96] : memref<82x384xbf16, #tpu.memory_space<vmem>>, vector<82x32xbf16>
    %c0_39 = arith.constant 0 : index
    %c224 = arith.constant 224 : index
    %65 = vector.load %arg8[%c0_39, %c224] : memref<82x384xbf16, #tpu.memory_space<vmem>>, vector<82x32xbf16>
    %c0_40 = arith.constant 0 : index
    %c352 = arith.constant 352 : index
    %66 = vector.load %arg8[%c0_40, %c352] : memref<82x384xbf16, #tpu.memory_space<vmem>>, vector<82x32xbf16>
    %cst_41 = arith.constant dense<0.000000e+00> : vector<82x82xf32>
    %67 = tpu.matmul %64, %65, %cst_41 {dimension_numbers = #tpu.dot_dimension_numbers<[1], [1], [0], [0], [0, 0, 1, 0], [], []>} : vector<82x32xbf16>, vector<82x32xbf16>, vector<82x82xf32> -> vector<82x82xf32>
    %cst_42 = arith.constant dense<0xFF800000> : vector<82xf32>
    %68 = vector.multi_reduction <maximumf>, %67, %cst_42 [1] : vector<82x82xf32> to vector<82xf32>
    %69 = vector.shape_cast %68 : vector<82xf32> to vector<82x1xf32>
    %70 = vector.broadcast %69 : vector<82x1xf32> to vector<82x82xf32>
    %71 = arith.subf %67, %70 : vector<82x82xf32>
    %72 = math.exp %71 : vector<82x82xf32>
    %cst_43 = arith.constant dense<0.000000e+00> : vector<82xf32>
    %73 = vector.multi_reduction <add>, %72, %cst_43 [1] : vector<82x82xf32> to vector<82xf32>
    %74 = vector.shape_cast %73 : vector<82xf32> to vector<82x1xf32>
    %75 = tpu.reciprocal %74 {approx = true} : vector<82x1xf32> -> vector<82x1xf32>
    %76 = vector.broadcast %75 : vector<82x1xf32> to vector<82x82xf32>
    %77 = arith.mulf %72, %76 : vector<82x82xf32>
    %78 = arith.truncf %77 : vector<82x82xf32> to vector<82x82xbf16>
    %cst_44 = arith.constant dense<0.000000e+00> : vector<82x32xf32>
    %79 = tpu.matmul %78, %66, %cst_44 {dimension_numbers = #tpu.dot_dimension_numbers<[1], [0], [0], [1], [0, 0, 1, 1], [], []>} : vector<82x82xbf16>, vector<82x32xbf16>, vector<82x32xf32> -> vector<82x32xf32>
    %80 = arith.truncf %79 : vector<82x32xf32> to vector<82x32xbf16>
    %c0_45 = arith.constant 0 : index
    %c96_46 = arith.constant 96 : index
    %81 = vector.load %arg9[%c0_45, %c96_46] : memref<82x128xbf16, #tpu.memory_space<vmem>>, vector<82x32xbf16>
    tpu.vector_store %arg9[%c0_45, %c96_46], %80 {strides = array<i32>} : memref<82x128xbf16, #tpu.memory_space<vmem>>, vector<82x32xbf16>,
    %c0_47 = arith.constant 0 : index
    %c0_48 = arith.constant 0 : index
    %82 = vector.load %arg9[%c0_47, %c0_48] : memref<82x128xbf16, #tpu.memory_space<vmem>>, vector<82x128xbf16>
    %c0_49 = arith.constant 0 : index
    %c0_50 = arith.constant 0 : index
    %83 = vector.load %arg4[%c0_49, %c0_50] : memref<128x128xbf16, #tpu.memory_space<vmem>>, vector<128x128xbf16>
    %cst_51 = arith.constant dense<0.000000e+00> : vector<82x128xf32>
    %84 = tpu.matmul %82, %83, %cst_51 {dimension_numbers = #tpu.dot_dimension_numbers<[1], [0], [0], [1], [0, 0, 1, 1], [], []>} : vector<82x128xbf16>, vector<128x128xbf16>, vector<82x128xf32> -> vector<82x128xf32>
    %85 = vector.broadcast %1 : vector<1x128xf32> to vector<82x128xf32>
    %86 = arith.addf %84, %85 : vector<82x128xf32>
    %c0_52 = arith.constant 0 : index
    %c0_53 = arith.constant 0 : index
    %c0_54 = arith.constant 0 : index
    %87 = vector.load %arg6[%c0_52, %c0_53, %c0_54] : memref<1x82x128xf32, #tpu.memory_space<vmem>>, vector<1x82x128xf32>
    %88 = vector.shape_cast %87 : vector<1x82x128xf32> to vector<82x128xf32>
    %89 = vector.shape_cast %86 : vector<82x128xf32> to vector<1x82x128xf32>
    tpu.vector_store %arg6[%c0_52, %c0_53, %c0_54], %89 {strides = array<i32>} : memref<1x82x128xf32, #tpu.memory_space<vmem>>, vector<1x82x128xf32>,
    return
  }
  func.func @transform_0(%arg0: i32) -> (i32, i32, i32) {
    %c0_i32 = arith.constant 0 : i32
    %c0_i32_0 = arith.constant 0 : i32
    %c0_i32_1 = arith.constant 0 : i32
    return %arg0, %c0_i32, %c0_i32_0 : i32, i32, i32
  }
  func.func @transform_1(%arg0: i32) -> (i32, i32) {
    %c0_i32 = arith.constant 0 : i32
    %c0_i32_0 = arith.constant 0 : i32
    %c0_i32_1 = arith.constant 0 : i32
    return %c0_i32, %c0_i32_0 : i32, i32
  }
  func.func @transform_2(%arg0: i32) -> (i32, i32) {
    %c0_i32 = arith.constant 0 : i32
    %c0_i32_0 = arith.constant 0 : i32
    %c0_i32_1 = arith.constant 0 : i32
    return %c0_i32, %c0_i32_0 : i32, i32
  }
  func.func @transform_3(%arg0: i32) -> (i32, i32) {
    %c0_i32 = arith.constant 0 : i32
    %c0_i32_0 = arith.constant 0 : i32
    %c0_i32_1 = arith.constant 0 : i32
    return %c0_i32, %c0_i32_0 : i32, i32
  }
  func.func @transform_4(%arg0: i32) -> (i32, i32) {
    %c0_i32 = arith.constant 0 : i32
    %c0_i32_0 = arith.constant 0 : i32
    %c0_i32_1 = arith.constant 0 : i32
    return %c0_i32, %c0_i32_0 : i32, i32
  }
  func.func @transform_5(%arg0: i32) -> (i32, i32, i32) {
    %c0_i32 = arith.constant 0 : i32
    %c0_i32_0 = arith.constant 0 : i32
    %c0_i32_1 = arith.constant 0 : i32
    return %arg0, %c0_i32, %c0_i32_0 : i32, i32, i32
  }
}

</mosaic_0001>

<llo_original>
// kernel: tpu_custom_call.1
$region0: #{tpu_custom_call.1}
  #allocation0 [shape = 'u32[]', space=smem, size = 0x4, offset = 0x4, fixed_abs, tag = 'smem constant byte address 0x4 - core index']
  #allocation1 [shape = 'u32[144,128]{1,0:T(1,128)}', space=vmem, size = 0x12000, scoped, tag = 'internal scratch']
  #allocation2 [shape = 'bf16[82,128]{1,0:T(8,128)(2,1)}', space=vmem, size = 0x5800, scoped, tag = 'scratch operand']
  #allocation3 [shape = 'bf16[82,384]{1,0:T(8,128)(2,1)}', space=vmem, size = 0x10800, scoped, tag = 'scratch operand']
  #allocation4 [shape = 'bf16[82,128]{1,0:T(8,128)(2,1)}', space=vmem, size = 0x5800, scoped, tag = 'scratch operand']
  %s0 = inlined_call_operand.vmem [shape: bf16[2,82,128], index: 0, kind: input, shape index: {}]
  %s1 = inlined_call_operand.hbm [shape: bf16[128,384], index: 1, kind: input, shape index: {}]
  %s2 = inlined_call_operand.vmem [shape: f32[1,384], index: 2, kind: input, shape index: {}]
  %s3 = inlined_call_operand.vmem [shape: bf16[128,128], index: 3, kind: input, shape index: {}]
  %s4 = inlined_call_operand.vmem [shape: f32[1,128], index: 4, kind: input, shape index: {}]
  %s5 = inlined_call_operand.vmem [shape: f32[2,82,128], index: 5, kind: output, shape index: {}]
  %s6 = sld [smem:[#allocation0]]
  $region57: #{tpu_custom_call.1} parent=0
    _
  %s8 = ssub.s32 1, %s6
  %s9 = scalar_select 0, %s8, %s6
  $region1: #{tpu_custom_call.1} parent=0
    #allocation5 [shape = 'u8[98304]{0}', space=vmem, size = 0x18000, scoped, tag = 'input window, operand 1, single buffered']
    #allocation6 [shape = 's32[2]{0}', space=sflag, size = 0x8, scoped, tag = 'scoped memory for tpu_custom_call.1']
    %10 = vsyncpa [#allocation6], 0
    loop: start=0, step=1, limit=4
    $region2: #{tpu_custom_call.1} parent=1 // loop_pre_header
      _
    $region3: #{tpu_custom_call.1} parent=1 // loop_header
      %s12 = sphi 0, %s16
      %p13 = scmp.ge.s32.totalorder %s12, 4
      %s22 = sphi 0, %s24
      %s25 = sphi 0, %s22
      %s26 = sphi 0, %s25
      %s42 = sphi 0, %s26
      %s46 = sphi 0, %s46
      %s48 = sphi 0, %s46
      %s49 = sphi 0, %s48
      %s63 = sphi 0, %s49
      %s67 = sphi 0, %s67
      %s69 = sphi 0, %s67
      %s70 = sphi 0, %s69
      %s84 = sphi 0, %s70
      %s88 = sphi 0, %s88
      %s90 = sphi 0, %s88
      %s91 = sphi 0, %s90
      %s105 = sphi 0, %s91
      %s109 = sphi 0, %s109
      %s111 = sphi 0, %s109
      %s112 = sphi 0, %s111
      %s126 = sphi 0, %s112
      %s132 = sphi 0, %s134
      %s135 = sphi 0, %s132
      %s136 = sphi 0, %s135
      %s152 = sphi 0, %s136
    $region4: #{tpu_custom_call.1} parent=1 // loop_header_branch
      %15 = sbr.rel (%p13) target = $region8
    $region5: #{tpu_custom_call.1} parent=1 // loop_body
      %s17 = ssub.s32 %s12, 1
      %s18 = ssub.s32 %s12, 2
      %s19 = sadd.s32 %s12, 1
      %s20 = ssub.s32 %s12, %s19
      %p21 = scmp.eq.s32.totalorder %s20, 0
      %s23 = sadd.s32 %s22, 1
      %s24 = scalar_select %p21, %s22, %s23
      %p27 = pneg %p21
      %p28 = scmp.eq.s32.totalorder %s12, 1
      %p29 = por %p27, %p28
      %p30 = scmp.ne.s32.totalorder %s22, %s25
      %p31 = scmp.eq.s32.totalorder %s12, 0
      %p32 = por %p30, %p31
      %p33 = scmp.ne.s32.totalorder %s22, %s25
      %p34 = scmp.eq.s32.totalorder %s17, 1
      %p35 = por %p33, %p34
      %p36 = scmp.ne.s32.totalorder %s25, %s26
      %p37 = scmp.eq.s32.totalorder %s17, 0
      %p38 = por %p36, %p37
      %p39 = scmp.ne.s32.totalorder %s25, %s26
      %p40 = scmp.eq.s32.totalorder %s18, 1
      %p41 = por %p39, %p40
      %p43 = scmp.ne.s32.totalorder %s26, %s42
      %p44 = scmp.eq.s32.totalorder %s18, 0
      %p45 = por %p43, %p44
      %s47 = sadd.s32 %s46, 1
      %p50 = scmp.eq.s32.totalorder %s12, 1
      %p51 = scmp.ne.s32.totalorder %s46, %s48
      %p52 = scmp.eq.s32.totalorder %s12, 0
      %p53 = por %p51, %p52
      %p54 = scmp.ne.s32.totalorder %s46, %s48
      %p55 = scmp.eq.s32.totalorder %s17, 1
      %p56 = por %p54, %p55
      %p57 = scmp.ne.s32.totalorder %s48, %s49
      %p58 = scmp.eq.s32.totalorder %s17, 0
      %p59 = por %p57, %p58
      %p60 = scmp.ne.s32.totalorder %s48, %s49
      %p61 = scmp.eq.s32.totalorder %s18, 1
      %p62 = por %p60, %p61
      %p64 = scmp.ne.s32.totalorder %s49, %s63
      %p65 = scmp.eq.s32.totalorder %s18, 0
      %p66 = por %p64, %p65
      %s68 = sadd.s32 %s67, 1
      %p71 = scmp.eq.s32.totalorder %s12, 1
      %p72 = scmp.ne.s32.totalorder %s67, %s69
      %p73 = scmp.eq.s32.totalorder %s12, 0
      %p74 = por %p72, %p73
      %p75 = scmp.ne.s32.totalorder %s67, %s69
      %p76 = scmp.eq.s32.totalorder %s17, 1
      %p77 = por %p75, %p76
      %p78 = scmp.ne.s32.totalorder %s69, %s70
      %p79 = scmp.eq.s32.totalorder %s17, 0
      %p80 = por %p78, %p79
      %p81 = scmp.ne.s32.totalorder %s69, %s70
      %p82 = scmp.eq.s32.totalorder %s18, 1
      %p83 = por %p81, %p82
      %p85 = scmp.ne.s32.totalorder %s70, %s84
      %p86 = scmp.eq.s32.totalorder %s18, 0
      %p87 = por %p85, %p86
      %s89 = sadd.s32 %s88, 1
      %p92 = scmp.eq.s32.totalorder %s12, 1
      %p93 = scmp.ne.s32.totalorder %s88, %s90
      %p94 = scmp.eq.s32.totalorder %s12, 0
      %p95 = por %p93, %p94
      %p96 = scmp.ne.s32.totalorder %s88, %s90
      %p97 = scmp.eq.s32.totalorder %s17, 1
      %p98 = por %p96, %p97
      %p99 = scmp.ne.s32.totalorder %s90, %s91
      %p100 = scmp.eq.s32.totalorder %s17, 0
      %p101 = por %p99, %p100
      %p102 = scmp.ne.s32.totalorder %s90, %s91
      %p103 = scmp.eq.s32.totalorder %s18, 1
      %p104 = por %p102, %p103
      %p106 = scmp.ne.s32.totalorder %s91, %s105
      %p107 = scmp.eq.s32.totalorder %s18, 0
      %p108 = por %p106, %p107
      %s110 = sadd.s32 %s109, 1
      %p113 = scmp.eq.s32.totalorder %s12, 1
      %p114 = scmp.ne.s32.totalorder %s109, %s111
      %p115 = scmp.eq.s32.totalorder %s12, 0
      %p116 = por %p114, %p115
      %p117 = scmp.ne.s32.totalorder %s109, %s111
      %p118 = scmp.eq.s32.totalorder %s17, 1
      %p119 = por %p117, %p118
      %p120 = scmp.ne.s32.totalorder %s111, %s112
      %p121 = scmp.eq.s32.totalorder %s17, 0
      %p122 = por %p120, %p121
      %p123 = scmp.ne.s32.totalorder %s111, %s112
      %p124 = scmp.eq.s32.totalorder %s18, 1
      %p125 = por %p123, %p124
      %p127 = scmp.ne.s32.totalorder %s112, %s126
      %p128 = scmp.eq.s32.totalorder %s18, 0
      %p129 = por %p127, %p128
      %s130 = ssub.s32 %s12, %s19
      %p131 = scmp.eq.s32.totalorder %s130, 0
      %s133 = sadd.s32 %s132, 1
      %s134 = scalar_select %p131, %s132, %s133
      %p137 = pneg %p131
      %p138 = scmp.eq.s32.totalorder %s12, 1
      %p139 = por %p137, %p138
      %p140 = scmp.ne.s32.totalorder %s132, %s135
      %p141 = scmp.eq.s32.totalorder %s12, 0
      %p142 = por %p140, %p141
      %p143 = scmp.ne.s32.totalorder %s132, %s135
      %p144 = scmp.eq.s32.totalorder %s17, 1
      %p145 = por %p143, %p144
      %p146 = scmp.ne.s32.totalorder %s135, %s136
      %p147 = scmp.eq.s32.totalorder %s17, 0
      %p148 = por %p146, %p147
      %p149 = scmp.ne.s32.totalorder %s135, %s136
      %p150 = scmp.eq.s32.totalorder %s18, 1
      %p151 = por %p149, %p150
      %p153 = scmp.ne.s32.totalorder %s136, %s152
      %p154 = scmp.eq.s32.totalorder %s18, 0
      %p155 = por %p153, %p154
      %p156 = scmp.le.s32.totalorder 1, %s12
      %p157 = scmp.lt.s32.totalorder %s12, 3
      %p158 = pnand %p156, %p157
      %p159 = pneg %p158
      // Predicated region
      $region9: #{tpu_custom_call.1} parent=5 // pred_check
        _
      $region10: #{tpu_custom_call.1} parent=5 // pred_check_branch
        %161 = sbr.rel (%p158) target = $region12
      $region11: #{tpu_custom_call.1} parent=5 // pred_region
        %s162 = ssub.s32 %s12, 1
        // Predicated region
        $region13: #{tpu_custom_call.1} parent=11 // pred_check
          %p163 = pneg %p59
        $region14: #{tpu_custom_call.1} parent=11 // pred_check_branch
          %165 = sbr.rel (%p163) target = $region16
        $region15: #{tpu_custom_call.1} parent=11 // pred_region
          %s167 = ssub.s32 3072, 3072
          %168 = vsyncadd [#allocation6], %s167
          %s169 = sshll.u32 [#allocation5], 4
          %s170 = int_to_ptr.vmem [resolvable:$true] %s169
          %175 = dma.hbm_to_vmem [thread:$0]  %s1, 3072, %s170, [#allocation6], 192, 192, 12
        $region16: #{tpu_custom_call.1} parent=11 // pred_fallthru
          _
        // Predicated region
        $region17: #{tpu_custom_call.1} parent=11 // pred_check
          %p176 = pneg %p80
        $region18: #{tpu_custom_call.1} parent=11 // pred_check_branch
          %178 = sbr.rel (%p176) target = $region20
        $region19: #{tpu_custom_call.1} parent=11 // pred_region
          _
        $region20: #{tpu_custom_call.1} parent=11 // pred_fallthru
          _
        // Predicated region
        $region21: #{tpu_custom_call.1} parent=11 // pred_check
          %p179 = pneg %p101
        $region22: #{tpu_custom_call.1} parent=11 // pred_check_branch
          %181 = sbr.rel (%p179) target = $region24
        $region23: #{tpu_custom_call.1} parent=11 // pred_region
          _
        $region24: #{tpu_custom_call.1} parent=11 // pred_fallthru
          _
        // Predicated region
        $region25: #{tpu_custom_call.1} parent=11 // pred_check
          %p182 = pneg %p122
        $region26: #{tpu_custom_call.1} parent=11 // pred_check_branch
          %184 = sbr.rel (%p182) target = $region28
        $region27: #{tpu_custom_call.1} parent=11 // pred_region
          _
        $region28: #{tpu_custom_call.1} parent=11 // pred_fallthru
          _
      $region12: #{tpu_custom_call.1} parent=5 // pred_fallthru
        _
      %p185 = scmp.lt.s32.totalorder %s12, 2
      // Predicated region
      $region29: #{tpu_custom_call.1} parent=5 // pred_check
        %p186 = pneg %p185
      $region30: #{tpu_custom_call.1} parent=5 // pred_check_branch
        %188 = sbr.rel (%p186) target = $region32
      $region31: #{tpu_custom_call.1} parent=5 // pred_region
        // Predicated region
        $region33: #{tpu_custom_call.1} parent=31 // pred_check
          %p189 = pneg %p32
        $region34: #{tpu_custom_call.1} parent=31 // pred_check_branch
          %191 = sbr.rel (%p189) target = $region36
        $region35: #{tpu_custom_call.1} parent=31 // pred_region
          %p192 = scmp.lt.s32.totalorder %s12, 1
          %s193 = scalar_select %p192, %s12, 1
          %s194 = smul.addr %s193, 11
          %s195 = smul.addr %s194, 4
          %s196 = scalar_lea.vmem %s0, %s195
        $region36: #{tpu_custom_call.1} parent=31 // pred_fallthru
          _
      $region32: #{tpu_custom_call.1} parent=5 // pred_fallthru
        _
      %p197 = scmp.le.s32.totalorder 1, %s12
      %p198 = scmp.lt.s32.totalorder %s12, 3
      %p199 = pnand %p197, %p198
      %p200 = pneg %p199
      // Predicated region
      $region37: #{tpu_custom_call.1} parent=5 // pred_check
        _
      $region38: #{tpu_custom_call.1} parent=5 // pred_check_branch
        %202 = sbr.rel (%p199) target = $region40
      $region39: #{tpu_custom_call.1} parent=5 // pred_region
        %s203 = ssub.s32 %s12, 1
        // Predicated region
        $region41: #{tpu_custom_call.1} parent=39 // pred_check
          %p204 = pneg %p59
        $region42: #{tpu_custom_call.1} parent=39 // pred_check_branch
          %206 = sbr.rel (%p204) target = $region44
        $region43: #{tpu_custom_call.1} parent=39 // pred_region
          %207 = dma.done [#allocation6], 3072
        $region44: #{tpu_custom_call.1} parent=39 // pred_fallthru
          _
        %p208 = scmp.lt.s32.totalorder %s17, 1
        %s209 = scalar_select %p208, %s17, 1
        %s210 = smul.addr %s209, 11
        %s211 = smul.addr %s210, 4
        %s212 = scalar_lea.vmem %s0, %s211
        %p213 = pneg %p38
        %p214 = pneg %p35
        %p215 = pneg %p59
        %p216 = pneg %p56
        %p217 = pneg %p80
        %p218 = pneg %p77
        %p219 = pneg %p101
        %p220 = pneg %p98
        %p221 = pneg %p122
        %p222 = pneg %p119
        %p223 = pneg %p148
        %p224 = pneg %p145
        %p225 = scmp.lt.s32.totalorder %s17, 1
        %s226 = scalar_select %p225, %s17, 1
        %s227 = smul.addr %s226, 11
        %s228 = smul.addr %s227, 8
        %s229 = scalar_lea.vmem %s5, %s228
        %p230 = scmp.lt.s32.totalorder %s17, 1
        %s231 = scalar_select %p230, %s17, 1
        %s232 = smul.addr %s231, 11
        %s233 = smul.addr %s232, 4
        %s234 = scalar_lea.vmem %s0, %s233
        %p235 = scmp.lt.s32.totalorder %s17, 1
        %s236 = scalar_select %p235, %s17, 1
        %s237 = smul.addr %s236, 11
        %s238 = smul.addr %s237, 8
        %s239 = scalar_lea.vmem %s5, %s238
        %v241 = vld [vmem:[%s2] sm:$0x7]
        %v242 = vld [vmem:[%s4] sm:$0x1]
        %v243 = vld [vmem:[%s234] sm:$0xf]
        %v244 = vld [vmem:[%s234 + $0x4] sm:$0xf]
        %v245 = vld [vmem:[%s234 + $0x8] sm:$0xf]
        %v246 = vld [vmem:[%s234 + $0xc] sm:$0xf]
        %v247 = vld [vmem:[%s234 + $0x10] sm:$0xf]
        %v248 = vld [vmem:[%s234 + $0x14] sm:$0xf]
        %v249 = vld [vmem:[%s234 + $0x18] sm:$0xf]
        %v250 = vld [vmem:[%s234 + $0x1c] sm:$0xf]
        %v251 = vld [vmem:[%s234 + $0x20] sm:$0xf]
        %v252 = vld [vmem:[%s234 + $0x24] sm:$0xf]
        %v253 = vld [vmem:[%s234 + $0x28] sm:$0x1]
        %v254 = vld [vmem:[#allocation5] sm:$0xff]
        %v255 = vld [vmem:[#allocation5 + $0x8] sm:$0xf]
        %v256 = vld [vmem:[#allocation5 + $0xc] sm:$0xff]
        %v257 = vld [vmem:[#allocation5 + $0x14] sm:$0xf]
        %v258 = vld [vmem:[#allocation5 + $0x18] sm:$0xff]
        %v259 = vld [vmem:[#allocation5 + $0x20] sm:$0xf]
        %v260 = vld [vmem:[#allocation5 + $0x24] sm:$0xff]
        %v261 = vld [vmem:[#allocation5 + $0x2c] sm:$0xf]
        %v262 = vld [vmem:[#allocation5 + $0x30] sm:$0xff]
        %v263 = vld [vmem:[#allocation5 + $0x38] sm:$0xf]
        %v264 = vld [vmem:[#allocation5 + $0x3c] sm:$0xff]
        %v265 = vld [vmem:[#allocation5 + $0x44] sm:$0xf]
        %v266 = vld [vmem:[#allocation5 + $0x48] sm:$0xff]
        %v267 = vld [vmem:[#allocation5 + $0x50] sm:$0xf]
        %v268 = vld [vmem:[#allocation5 + $0x54] sm:$0xff]
        %v269 = vld [vmem:[#allocation5 + $0x5c] sm:$0xf]
        %v270 = vld [vmem:[#allocation5 + $0x60] sm:$0xff]
        %v271 = vld [vmem:[#allocation5 + $0x68] sm:$0xf]
        %v272 = vld [vmem:[#allocation5 + $0x6c] sm:$0xff]
        %v273 = vld [vmem:[#allocation5 + $0x74] sm:$0xf]
        %v274 = vld [vmem:[#allocation5 + $0x78] sm:$0xff]
        %v275 = vld [vmem:[#allocation5 + $0x80] sm:$0xf]
        %v276 = vld [vmem:[#allocation5 + $0x84] sm:$0xff]
        %v277 = vld [vmem:[#allocation5 + $0x8c] sm:$0xf]
        %v278 = vld [vmem:[#allocation5 + $0x90] sm:$0xff]
        %v279 = vld [vmem:[#allocation5 + $0x98] sm:$0xf]
        %v280 = vld [vmem:[#allocation5 + $0x9c] sm:$0xff]
        %v281 = vld [vmem:[#allocation5 + $0xa4] sm:$0xf]
        %v282 = vld [vmem:[#allocation5 + $0xa8] sm:$0xff]
        %v283 = vld [vmem:[#allocation5 + $0xb0] sm:$0xf]
        %v284 = vld [vmem:[#allocation5 + $0xb4] sm:$0xff]
        %v285 = vld [vmem:[#allocation5 + $0xbc] sm:$0xf]
        %v287 = vlaneseq
        %v288 = vshrl.u32 %v287, 7
        %v289 = vsub.s32 0, %v288
        %v290 = vrot.slane %v241, %v289
        %v291 = vlaneseq
        %v292 = vshrl.u32 %v291, 7
        %v293 = vsub.s32 1, %v292
        %v294 = vrot.slane %v241, %v293
        %v295 = vlaneseq
        %v296 = vshrl.u32 %v295, 7
        %v297 = vsub.s32 2, %v296
        %v298 = vrot.slane %v241, %v297
        %v313 = vunpack.c.l.b16 %v243
        %v314 = vunpack.c.l.b16 %v244
        %v315 = vunpack.c.l.b16 %v245
        %v316 = vunpack.c.l.b16 %v246
        %v317 = vunpack.c.l.b16 %v247
        %v318 = vunpack.c.l.b16 %v248
        %v319 = vunpack.c.l.b16 %v249
        %v320 = vunpack.c.l.b16 %v250
        %v321 = vunpack.c.l.b16 %v251
        %v322 = vunpack.c.l.b16 %v252
        %v323 = vunpack.c.l.b16 %v253
        %v324 = vpack.c.b16 %v314, %v313
        %v325 = vpack.c.b16 %v316, %v315
        %v326 = vpack.c.b16 %v318, %v317
        %v327 = vpack.c.b16 %v320, %v319
        %v328 = vpack.c.b16 %v322, %v321
        %v329 = vpack.c.b16 %v323, %v323
        %v368 = vunpack.c.l.b16 %v254
        %v369 = vunpack.c.h.b16 %v254
        %v370 = vunpack.c.l.b16 %v255
        %v371 = vunpack.c.l.b16 %v256
        %v372 = vunpack.c.h.b16 %v256
        %v373 = vunpack.c.l.b16 %v257
        %v374 = vunpack.c.l.b16 %v258
        %v375 = vunpack.c.h.b16 %v258
        %v376 = vunpack.c.l.b16 %v259
        %v377 = vunpack.c.l.b16 %v260
        %v378 = vunpack.c.h.b16 %v260
        %v379 = vunpack.c.l.b16 %v261
        %v380 = vunpack.c.l.b16 %v262
        %v381 = vunpack.c.h.b16 %v262
        %v382 = vunpack.c.l.b16 %v263
        %v383 = vunpack.c.l.b16 %v264
        %v384 = vunpack.c.h.b16 %v264
        %v385 = vunpack.c.l.b16 %v265
        %v386 = vunpack.c.l.b16 %v266
        %v387 = vunpack.c.h.b16 %v266
        %v388 = vunpack.c.l.b16 %v267
        %v389 = vunpack.c.l.b16 %v268
        %v390 = vunpack.c.h.b16 %v268
        %v391 = vunpack.c.l.b16 %v269
        %v392 = vunpack.c.l.b16 %v270
        %v393 = vunpack.c.h.b16 %v270
        %v394 = vunpack.c.l.b16 %v271
        %v395 = vunpack.c.l.b16 %v272
        %v396 = vunpack.c.h.b16 %v272
        %v397 = vunpack.c.l.b16 %v273
        %v398 = vunpack.c.l.b16 %v274
        %v399 = vunpack.c.h.b16 %v274
        %v400 = vunpack.c.l.b16 %v275
        %v401 = vunpack.c.l.b16 %v276
        %v402 = vunpack.c.h.b16 %v276
        %v403 = vunpack.c.l.b16 %v277
        %v404 = vunpack.c.l.b16 %v278
        %v405 = vunpack.c.h.b16 %v278
        %v406 = vunpack.c.l.b16 %v279
        %v407 = vunpack.c.l.b16 %v280
        %v408 = vunpack.c.h.b16 %v280
        %v409 = vunpack.c.l.b16 %v281
        %v410 = vunpack.c.l.b16 %v282
        %v411 = vunpack.c.h.b16 %v282
        %v412 = vunpack.c.l.b16 %v283
        %v413 = vunpack.c.l.b16 %v284
        %v414 = vunpack.c.h.b16 %v284
        %v415 = vunpack.c.l.b16 %v285
        %v416 = vpack.c.b16 %v371, %v368
        %v417 = vpack.c.b16 %v372, %v369
        %v418 = vpack.c.b16 %v373, %v370
        %v419 = vpack.c.b16 %v377, %v374
        %v420 = vpack.c.b16 %v378, %v375
        %v421 = vpack.c.b16 %v379, %v376
        %v422 = vpack.c.b16 %v383, %v380
        %v423 = vpack.c.b16 %v384, %v381
        %v424 = vpack.c.b16 %v385, %v382
        %v425 = vpack.c.b16 %v389, %v386
        %v426 = vpack.c.b16 %v390, %v387
        %v427 = vpack.c.b16 %v391, %v388
        %v428 = vpack.c.b16 %v395, %v392
        %v429 = vpack.c.b16 %v396, %v393
        %v430 = vpack.c.b16 %v397, %v394
        %v431 = vpack.c.b16 %v401, %v398
        %v432 = vpack.c.b16 %v402, %v399
        %v433 = vpack.c.b16 %v403, %v400
        %v434 = vpack.c.b16 %v407, %v404
        %v435 = vpack.c.b16 %v408, %v405
        %v436 = vpack.c.b16 %v409, %v406
        %v437 = vpack.c.b16 %v413, %v410
        %v438 = vpack.c.b16 %v414, %v411
        %v439 = vpack.c.b16 %v415, %v412
        %464 = vmatprep.subr.bf16.mxu0 %v417
        %465 = vmatpush1.bf16.msra.mxu0 %v416
        %466 = vmatprep.subr.bf16.mxu0 %v420
        %467 = vmatpush1.bf16.msra.mxu0 %v419
        %468 = vmatprep.subr.bf16.mxu0 %v423
        %469 = vmatpush1.bf16.msra.mxu0 %v422
        %470 = vmatprep.subr.bf16.mxu0 %v426
        %471 = vmatpush1.bf16.msra.mxu0 %v425
        %472 = vmatprep.subr.bf16.mxu0 %v429
        %473 = vmatpush1.bf16.msra.mxu0 %v428
        %474 = vmatprep.subr.bf16.mxu0 %v432
        %475 = vmatpush1.bf16.msra.mxu0 %v431
        %476 = vmatprep.subr.bf16.mxu0 %v435
        %477 = vmatpush1.bf16.msra.mxu0 %v434
        %478 = vmatprep.subr.bf16.mxu0 %v438
        %479 = vmatpush1.bf16.msra.mxu0 %v437
        %480 = vmatprep.subr.bf16.mxu0 0
        %481 = vmatpush1.bf16.msra.mxu0 0
        %482 = vmatprep.subr.bf16.mxu0 0
        %483 = vmatpush1.bf16.msra.mxu0 0
        %484 = vmatprep.subr.bf16.mxu0 0
        %485 = vmatpush1.bf16.msra.mxu0 0
        %486 = vmatprep.subr.bf16.mxu0 0
        %487 = vmatpush1.bf16.msra.mxu0 0
        %488 = vmatprep.subr.bf16.mxu0 0
        %489 = vmatpush1.bf16.msra.mxu0 0
        %490 = vmatprep.subr.bf16.mxu0 0
        %491 = vmatpush1.bf16.msra.mxu0 0
        %492 = vmatprep.subr.bf16.mxu0 0
        %493 = vmatpush1.bf16.msra.mxu0 0
        %494 = vmatprep.subr.bf16.mxu0 0
        %495 = vmatpush1.bf16.msra.mxu0 0
        %496 = vmatprep.mubr.bf16.mxu0 0
        %497 = vmatmul.mubr.bf16.gmra.mrb[0].mxu0 %v324
        %v498 = vpop.f32.mrb[0].mxu0
        %v499 = vadd.f32 %v290, %v498
        %v500 = vpop.f32.mrb[0].mxu0
        %v501 = vadd.f32 %v294, %v500
        %v502 = vpop.f32.mrb[0].mxu0
        %v503 = vadd.f32 %v290, %v502
        %v504 = vpop.f32.mrb[0].mxu0
        %v505 = vadd.f32 %v294, %v504
        %506 = vmatprep.mubr.bf16.mxu0 0
        %507 = vmatmul.mubr.bf16.gmra.mrb[0].mxu0 %v325
        %v508 = vpop.f32.mrb[0].mxu0
        %v509 = vadd.f32 %v290, %v508
        %v510 = vpop.f32.mrb[0].mxu0
        %v511 = vadd.f32 %v294, %v510
        %v512 = vpop.f32.mrb[0].mxu0
        %v513 = vadd.f32 %v290, %v512
        %v514 = vpop.f32.mrb[0].mxu0
        %v515 = vadd.f32 %v294, %v514
        %516 = vmatprep.mubr.bf16.mxu0 0
        %517 = vmatmul.mubr.bf16.gmra.mrb[0].mxu0 %v326
        %v518 = vpop.f32.mrb[0].mxu0
        %v519 = vadd.f32 %v290, %v518
        %v520 = vpop.f32.mrb[0].mxu0
        %v521 = vadd.f32 %v294, %v520
        %v522 = vpop.f32.mrb[0].mxu0
        %v523 = vadd.f32 %v290, %v522
        %v524 = vpop.f32.mrb[0].mxu0
        %v525 = vadd.f32 %v294, %v524
        %526 = vmatprep.mubr.bf16.mxu0 0
        %527 = vmatmul.mubr.bf16.gmra.mrb[0].mxu0 %v327
        %v528 = vpop.f32.mrb[0].mxu0
        %v529 = vadd.f32 %v290, %v528
        %v530 = vpop.f32.mrb[0].mxu0
        %v531 = vadd.f32 %v294, %v530
        %v532 = vpop.f32.mrb[0].mxu0
        %v533 = vadd.f32 %v290, %v532
        %v534 = vpop.f32.mrb[0].mxu0
        %v535 = vadd.f32 %v294, %v534
        %536 = vmatprep.mubr.bf16.mxu0 0
        %537 = vmatmul.mubr.bf16.gmra.mrb[0].mxu0 %v328
        %v538 = vpop.f32.mrb[0].mxu0
        %v539 = vadd.f32 %v290, %v538
        %v540 = vpop.f32.mrb[0].mxu0
        %v541 = vadd.f32 %v294, %v540
        %v542 = vpop.f32.mrb[0].mxu0
        %v543 = vadd.f32 %v290, %v542
        %v544 = vpop.f32.mrb[0].mxu0
        %v545 = vadd.f32 %v294, %v544
        %546 = vmatprep.mubr.bf16.mxu0 0
        %547 = vmatmul.mubr.bf16.gmra.mrb[0].mxu0 %v329
        %v548 = vpop.f32.mrb[0].mxu0
        %v549 = vadd.f32 %v290, %v548
        %v550 = vpop.f32.mrb[0].mxu0
        %v551 = vadd.f32 %v294, %v550
        %v552 = vpop.f32.mrb[0].mxu0
        %v553 = vpop.f32.mrb[0].mxu0
        %554 = vdwg.mxu0
        %555 = vmatprep.subr.bf16.mxu0 0
        %556 = vmatpush1.bf16.msra.mxu0 %v418
        %557 = vmatprep.subr.bf16.mxu0 0
        %558 = vmatpush1.bf16.msra.mxu0 %v421
        %559 = vmatprep.subr.bf16.mxu0 0
        %560 = vmatpush1.bf16.msra.mxu0 %v424
        %561 = vmatprep.subr.bf16.mxu0 0
        %562 = vmatpush1.bf16.msra.mxu0 %v427
        %563 = vmatprep.subr.bf16.mxu0 0
        %564 = vmatpush1.bf16.msra.mxu0 %v430
        %565 = vmatprep.subr.bf16.mxu0 0
        %566 = vmatpush1.bf16.msra.mxu0 %v433
        %567 = vmatprep.subr.bf16.mxu0 0
        %568 = vmatpush1.bf16.msra.mxu0 %v436
        %569 = vmatprep.subr.bf16.mxu0 0
        %570 = vmatpush1.bf16.msra.mxu0 %v439
        %571 = vmatprep.subr.bf16.mxu0 0
        %572 = vmatpush1.bf16.msra.mxu0 0
        %573 = vmatprep.subr.bf16.mxu0 0
        %574 = vmatpush1.bf16.msra.mxu0 0
        %575 = vmatprep.subr.bf16.mxu0 0
        %576 = vmatpush1.bf16.msra.mxu0 0
        %577 = vmatprep.subr.bf16.mxu0 0
        %578 = vmatpush1.bf16.msra.mxu0 0
        %579 = vmatprep.subr.bf16.mxu0 0
        %580 = vmatpush1.bf16.msra.mxu0 0
        %581 = vmatprep.subr.bf16.mxu0 0
        %582 = vmatpush1.bf16.msra.mxu0 0
        %583 = vmatprep.subr.bf16.mxu0 0
        %584 = vmatpush1.bf16.msra.mxu0 0
        %585 = vmatprep.subr.bf16.mxu0 0
        %586 = vmatpush1.bf16.msra.mxu0 0
        %587 = vmatprep.mubr.bf16.mxu0 0
        %588 = vmatmul.mubr.bf16.gmra.mrb[0].mxu0 %v324
        %v589 = vpop.f32.mrb[0].mxu0
        %v590 = vadd.f32 %v298, %v589
        %v591 = vpop.f32.mrb[0].mxu0
        %v592 = vpop.f32.mrb[0].mxu0
        %v593 = vadd.f32 %v298, %v592
        %v594 = vpop.f32.mrb[0].mxu0
        %595 = vmatprep.mubr.bf16.mxu0 0
        %596 = vmatmul.mubr.bf16.gmra.mrb[0].mxu0 %v325
        %v597 = vpop.f32.mrb[0].mxu0
        %v598 = vadd.f32 %v298, %v597
        %v599 = vpop.f32.mrb[0].mxu0
        %v600 = vpop.f32.mrb[0].mxu0
        %v601 = vadd.f32 %v298, %v600
        %v602 = vpop.f32.mrb[0].mxu0
        %603 = vmatprep.mubr.bf16.mxu0 0
        %604 = vmatmul.mubr.bf16.gmra.mrb[0].mxu0 %v326
        %v605 = vpop.f32.mrb[0].mxu0
        %v606 = vadd.f32 %v298, %v605
        %v607 = vpop.f32.mrb[0].mxu0
        %v608 = vpop.f32.mrb[0].mxu0
        %v609 = vadd.f32 %v298, %v608
        %v610 = vpop.f32.mrb[0].mxu0
        %611 = vmatprep.mubr.bf16.mxu0 0
        %612 = vmatmul.mubr.bf16.gmra.mrb[0].mxu0 %v327
        %v613 = vpop.f32.mrb[0].mxu0
        %v614 = vadd.f32 %v298, %v613
        %v615 = vpop.f32.mrb[0].mxu0
        %v616 = vpop.f32.mrb[0].mxu0
        %v617 = vadd.f32 %v298, %v616
        %v618 = vpop.f32.mrb[0].mxu0
        %619 = vmatprep.mubr.bf16.mxu0 0
        %620 = vmatmul.mubr.bf16.gmra.mrb[0].mxu0 %v328
        %v621 = vpop.f32.mrb[0].mxu0
        %v622 = vadd.f32 %v298, %v621
        %v623 = vpop.f32.mrb[0].mxu0
        %v624 = vpop.f32.mrb[0].mxu0
        %v625 = vadd.f32 %v298, %v624
        %v626 = vpop.f32.mrb[0].mxu0
        %627 = vmatprep.mubr.bf16.mxu0 0
        %628 = vmatmul.mubr.bf16.gmra.mrb[0].mxu0 %v329
        %v629 = vpop.f32.mrb[0].mxu0
        %v630 = vadd.f32 %v298, %v629
        %v631 = vpop.f32.mrb[0].mxu0
        %v632 = vpop.f32.mrb[0].mxu0
        %v633 = vpop.f32.mrb[0].mxu0
        %634 = vdwg.mxu0
        %v635 = vpack.c.bf16 %v503, %v499
        %v636 = vpack.c.bf16 %v505, %v501
        %v637 = vpack.c.bf16 %v593, %v590
        %v638 = vpack.c.bf16 %v513, %v509
        %v639 = vpack.c.bf16 %v515, %v511
        %v640 = vpack.c.bf16 %v601, %v598
        %v641 = vpack.c.bf16 %v523, %v519
        %v642 = vpack.c.bf16 %v525, %v521
        %v643 = vpack.c.bf16 %v609, %v606
        %v644 = vpack.c.bf16 %v533, %v529
        %v645 = vpack.c.bf16 %v535, %v531
        %v646 = vpack.c.bf16 %v617, %v614
        %v647 = vpack.c.bf16 %v543, %v539
        %v648 = vpack.c.bf16 %v545, %v541
        %v649 = vpack.c.bf16 %v625, %v622
        %v650 = vpack.c.bf16 %v549, %v549
        %v651 = vpack.c.bf16 %v551, %v551
        %v652 = vpack.c.bf16 %v630, %v630
        %v671 = vunpack.c.l.b16 %v635
        %v672 = vunpack.c.l.b16 %v636
        %v673 = vunpack.c.l.b16 %v637
        %v674 = vunpack.c.h.b16 %v635
        %v675 = vunpack.c.h.b16 %v636
        %v676 = vunpack.c.h.b16 %v637
        %v677 = vunpack.c.l.b16 %v638
        %v678 = vunpack.c.l.b16 %v639
        %v679 = vunpack.c.l.b16 %v640
        %v680 = vunpack.c.h.b16 %v638
        %v681 = vunpack.c.h.b16 %v639
        %v682 = vunpack.c.h.b16 %v640
        %v683 = vunpack.c.l.b16 %v641
        %v684 = vunpack.c.l.b16 %v642
        %v685 = vunpack.c.l.b16 %v643
        %v686 = vunpack.c.h.b16 %v641
        %v687 = vunpack.c.h.b16 %v642
        %v688 = vunpack.c.h.b16 %v643
        %v689 = vunpack.c.l.b16 %v644
        %v690 = vunpack.c.l.b16 %v645
        %v691 = vunpack.c.l.b16 %v646
        %v692 = vunpack.c.h.b16 %v644
        %v693 = vunpack.c.h.b16 %v645
        %v694 = vunpack.c.h.b16 %v646
        %v695 = vunpack.c.l.b16 %v647
        %v696 = vunpack.c.l.b16 %v648
        %v697 = vunpack.c.l.b16 %v649
        %v698 = vunpack.c.h.b16 %v647
        %v699 = vunpack.c.h.b16 %v648
        %v700 = vunpack.c.h.b16 %v649
        %v701 = vunpack.c.l.b16 %v650
        %v702 = vunpack.c.l.b16 %v651
        %v703 = vunpack.c.l.b16 %v652
        %v704 = vpack.c.b16 %v672, %v671
        %v705 = vpack.c.b16 %v673, %v673
        %v706 = vpack.c.b16 %v675, %v674
        %v707 = vpack.c.b16 %v676, %v676
        %v708 = vpack.c.b16 %v678, %v677
        %v709 = vpack.c.b16 %v679, %v679
        %v710 = vpack.c.b16 %v681, %v680
        %v711 = vpack.c.b16 %v682, %v682
        %v712 = vpack.c.b16 %v684, %v683
        %v713 = vpack.c.b16 %v685, %v685
        %v714 = vpack.c.b16 %v687, %v686
        %v715 = vpack.c.b16 %v688, %v688
        %v716 = vpack.c.b16 %v690, %v689
        %v717 = vpack.c.b16 %v691, %v691
        %v718 = vpack.c.b16 %v693, %v692
        %v719 = vpack.c.b16 %v694, %v694
        %v720 = vpack.c.b16 %v696, %v695
        %v721 = vpack.c.b16 %v697, %v697
        %v722 = vpack.c.b16 %v699, %v698
        %v723 = vpack.c.b16 %v700, %v700
        %v724 = vpack.c.b16 %v702, %v701
        %v725 = vpack.c.b16 %v703, %v703
        %748 = vst [vmem:[#allocation3] sm:$0xff] %v704
        %749 = vst [vmem:[#allocation3 + $0x8] sm:$0xf] %v705
        %750 = vst [vmem:[#allocation3 + $0xc] sm:$0xff] %v706
        %751 = vst [vmem:[#allocation3 + $0x14] sm:$0xf] %v707
        %752 = vst [vmem:[#allocation3 + $0x18] sm:$0xff] %v708
        %753 = vst [vmem:[#allocation3 + $0x20] sm:$0xf] %v709
        %754 = vst [vmem:[#allocation3 + $0x24] sm:$0xff] %v710
        %755 = vst [vmem:[#allocation3 + $0x2c] sm:$0xf] %v711
        %756 = vst [vmem:[#allocation3 + $0x30] sm:$0xff] %v712
        %757 = vst [vmem:[#allocation3 + $0x38] sm:$0xf] %v713
        %758 = vst [vmem:[#allocation3 + $0x3c] sm:$0xff] %v714
        %759 = vst [vmem:[#allocation3 + $0x44] sm:$0xf] %v715
        %760 = vst [vmem:[#allocation3 + $0x48] sm:$0xff] %v716
        %761 = vst [vmem:[#allocation3 + $0x50] sm:$0xf] %v717
        %762 = vst [vmem:[#allocation3 + $0x54] sm:$0xff] %v718
        %763 = vst [vmem:[#allocation3 + $0x5c] sm:$0xf] %v719
        %764 = vst [vmem:[#allocation3 + $0x60] sm:$0xff] %v720
        %765 = vst [vmem:[#allocation3 + $0x68] sm:$0xf] %v721
        %766 = vst [vmem:[#allocation3 + $0x6c] sm:$0xff] %v722
        %767 = vst [vmem:[#allocation3 + $0x74] sm:$0xf] %v723
        %768 = vst [vmem:[#allocation3 + $0x78] sm:$0x11] %v724
        %769 = vst [vmem:[#allocation3 + $0x80] sm:$0x1] %v725
        %v770 = vld [vmem:[#allocation3] sm:$0xf]
        %v771 = vld [vmem:[#allocation3 + $0xc] sm:$0xf]
        %v772 = vld [vmem:[#allocation3 + $0x18] sm:$0xf]
        %v773 = vld [vmem:[#allocation3 + $0x24] sm:$0xf]
        %v774 = vld [vmem:[#allocation3 + $0x30] sm:$0xf]
        %v775 = vld [vmem:[#allocation3 + $0x3c] sm:$0xf]
        %v776 = vld [vmem:[#allocation3 + $0x48] sm:$0xf]
        %v777 = vld [vmem:[#allocation3 + $0x54] sm:$0xf]
        %v778 = vld [vmem:[#allocation3 + $0x60] sm:$0xf]
        %v779 = vld [vmem:[#allocation3 + $0x6c] sm:$0xf]
        %v780 = vld [vmem:[#allocation3 + $0x78] sm:$0x1]
        %v781 = vld [vmem:[#allocation3 + $0x4] sm:$0xf]
        %v782 = vld [vmem:[#allocation3 + $0x10] sm:$0xf]
        %v783 = vld [vmem:[#allocation3 + $0x1c] sm:$0xf]
        %v784 = vld [vmem:[#allocation3 + $0x28] sm:$0xf]
        %v785 = vld [vmem:[#allocation3 + $0x34] sm:$0xf]
        %v786 = vld [vmem:[#allocation3 + $0x40] sm:$0xf]
        %v787 = vld [vmem:[#allocation3 + $0x4c] sm:$0xf]
        %v788 = vld [vmem:[#allocation3 + $0x58] sm:$0xf]
        %v789 = vld [vmem:[#allocation3 + $0x64] sm:$0xf]
        %v790 = vld [vmem:[#allocation3 + $0x70] sm:$0xf]
        %v791 = vld [vmem:[#allocation3 + $0x7c] sm:$0x1]
        %v792 = vld [vmem:[#allocation3 + $0x8] sm:$0xf]
        %v793 = vld [vmem:[#allocation3 + $0x14] sm:$0xf]
        %v794 = vld [vmem:[#allocation3 + $0x20] sm:$0xf]
        %v795 = vld [vmem:[#allocation3 + $0x2c] sm:$0xf]
        %v796 = vld [vmem:[#allocation3 + $0x38] sm:$0xf]
        %v797 = vld [vmem:[#allocation3 + $0x44] sm:$0xf]
        %v798 = vld [vmem:[#allocation3 + $0x50] sm:$0xf]
        %v799 = vld [vmem:[#allocation3 + $0x5c] sm:$0xf]
        %v800 = vld [vmem:[#allocation3 + $0x68] sm:$0xf]
        %v801 = vld [vmem:[#allocation3 + $0x74] sm:$0xf]
        %v802 = vld [vmem:[#allocation3 + $0x80] sm:$0x1]
        %v814 = vunpack.c.l.b16 %v770
        %v815 = vunpack.c.l.b16 %v771
        %v816 = vunpack.c.l.b16 %v772
        %v817 = vunpack.c.l.b16 %v773
        %v818 = vunpack.c.l.b16 %v774
        %v819 = vunpack.c.l.b16 %v775
        %v820 = vunpack.c.l.b16 %v776
        %v821 = vunpack.c.l.b16 %v777
        %v822 = vunpack.c.l.b16 %v778
        %v823 = vunpack.c.l.b16 %v779
        %v824 = vunpack.c.l.b16 %v780
        %v825 = vpack.c.b16 %v815, %v814
        %v826 = vpack.c.b16 %v817, %v816
        %v827 = vpack.c.b16 %v819, %v818
        %v828 = vpack.c.b16 %v821, %v820
        %v829 = vpack.c.b16 %v823, %v822
        %v830 = vpack.c.b16 %v824, %v824
        %v842 = vunpack.c.l.b16 %v781
        %v843 = vunpack.c.l.b16 %v782
        %v844 = vunpack.c.l.b16 %v783
        %v845 = vunpack.c.l.b16 %v784
        %v846 = vunpack.c.l.b16 %v785
        %v847 = vunpack.c.l.b16 %v786
        %v848 = vunpack.c.l.b16 %v787
        %v849 = vunpack.c.l.b16 %v788
        %v850 = vunpack.c.l.b16 %v789
        %v851 = vunpack.c.l.b16 %v790
        %v852 = vunpack.c.l.b16 %v791
        %v853 = vpack.c.b16 %v843, %v842
        %v854 = vpack.c.b16 %v845, %v844
        %v855 = vpack.c.b16 %v847, %v846
        %v856 = vpack.c.b16 %v849, %v848
        %v857 = vpack.c.b16 %v851, %v850
        %v858 = vpack.c.b16 %v852, %v852
        %vm859 = vcmask 261120
        %v861 = vsel %vm859, %v825, 0
        %v864 = vsel %vm859, %v826, 0
        %v867 = vsel %vm859, %v827, 0
        %v870 = vsel %vm859, %v828, 0
        %v873 = vsel %vm859, %v829, 0
        %v876 = vsel %vm859, %v830, 0
        %v879 = vsel %vm859, %v853, 0
        %v882 = vsel %vm859, %v854, 0
        %v885 = vsel %vm859, %v855, 0
        %v888 = vsel %vm859, %v856, 0
        %v891 = vsel %vm859, %v857, 0
        %v894 = vsel %vm859, %v858, 0
        %896 = vmatprep.subr.bf16.mxu0 0
        %897 = vmatpush1.bf16.xpose.msra.mxu0 %v879
        %898 = vmatprep.subr.bf16.mxu0 0
        %899 = vmatpush1.bf16.xpose.msra.mxu0 %v882
        %900 = vmatprep.subr.bf16.mxu0 0
        %901 = vmatpush1.bf16.xpose.msra.mxu0 %v885
        %902 = vmatprep.subr.bf16.mxu0 0
        %903 = vmatpush1.bf16.xpose.msra.mxu0 %v888
        %904 = vmatprep.subr.bf16.mxu0 0
        %905 = vmatpush1.bf16.xpose.msra.mxu0 %v891
        %906 = vmatprep.subr.bf16.mxu0 0
        %907 = vmatpush1.bf16.xpose.msra.mxu0 %v894
        %908 = vmatprep.subr.bf16.mxu0 0
        %909 = vmatpush1.bf16.xpose.msra.mxu0 0
        %910 = vmatprep.subr.bf16.mxu0 0
        %911 = vmatpush1.bf16.xpose.msra.mxu0 0
        %912 = vmatprep.subr.bf16.mxu0 0
        %913 = vmatpush1.bf16.xpose.msra.mxu0 0
        %914 = vmatprep.subr.bf16.mxu0 0
        %915 = vmatpush1.bf16.xpose.msra.mxu0 0
        %916 = vmatprep.subr.bf16.mxu0 0
        %917 = vmatpush1.bf16.xpose.msra.mxu0 0
        %918 = vmatprep.subr.bf16.mxu0 0
        %919 = vmatpush1.bf16.xpose.msra.mxu0 0
        %920 = vmatprep.subr.bf16.mxu0 0
        %921 = vmatpush1.bf16.xpose.msra.mxu0 0
        %922 = vmatprep.subr.bf16.mxu0 0
        %923 = vmatpush1.bf16.xpose.msra.mxu0 0
        %924 = vmatprep.subr.bf16.mxu0 0
        %925 = vmatpush1.bf16.xpose.msra.mxu0 0
        %926 = vmatprep.subr.bf16.mxu0 0
        %927 = vmatpush1.bf16.xpose.msra.mxu0 0
        %928 = vmatprep.mubr.bf16.mxu0 0
        %929 = vmatmul.mubr.bf16.gmra.mrb[0].mxu0 %v861
        %v930 = vpop.f32.mrb[0].mxu0
        %v931 = vadd.f32 0.0, %v930
        %v932 = vpop.f32.mrb[0].mxu0
        %v933 = vpop.f32.mrb[0].mxu0
        %v934 = vadd.f32 0.0, %v933
        %v935 = vpop.f32.mrb[0].mxu0
        %936 = vmatprep.mubr.bf16.mxu0 0
        %937 = vmatmul.mubr.bf16.gmra.mrb[0].mxu0 %v864
        %v938 = vpop.f32.mrb[0].mxu0
        %v939 = vadd.f32 0.0, %v938
        %v940 = vpop.f32.mrb[0].mxu0
        %v941 = vpop.f32.mrb[0].mxu0
        %v942 = vadd.f32 0.0, %v941
        %v943 = vpop.f32.mrb[0].mxu0
        %944 = vmatprep.mubr.bf16.mxu0 0
        %945 = vmatmul.mubr.bf16.gmra.mrb[0].mxu0 %v867
        %v946 = vpop.f32.mrb[0].mxu0
        %v947 = vadd.f32 0.0, %v946
        %v948 = vpop.f32.mrb[0].mxu0
        %v949 = vpop.f32.mrb[0].mxu0
        %v950 = vadd.f32 0.0, %v949
        %v951 = vpop.f32.mrb[0].mxu0
        %952 = vmatprep.mubr.bf16.mxu0 0
        %953 = vmatmul.mubr.bf16.gmra.mrb[0].mxu0 %v870
        %v954 = vpop.f32.mrb[0].mxu0
        %v955 = vadd.f32 0.0, %v954
        %v956 = vpop.f32.mrb[0].mxu0
        %v957 = vpop.f32.mrb[0].mxu0
        %v958 = vadd.f32 0.0, %v957
        %v959 = vpop.f32.mrb[0].mxu0
        %960 = vmatprep.mubr.bf16.mxu0 0
        %961 = vmatmul.mubr.bf16.gmra.mrb[0].mxu0 %v873
        %v962 = vpop.f32.mrb[0].mxu0
        %v963 = vadd.f32 0.0, %v962
        %v964 = vpop.f32.mrb[0].mxu0
        %v965 = vpop.f32.mrb[0].mxu0
        %v966 = vadd.f32 0.0, %v965
        %v967 = vpop.f32.mrb[0].mxu0
        %968 = vmatprep.mubr.bf16.mxu0 0
        %969 = vmatmul.mubr.bf16.gmra.mrb[0].mxu0 %v876
        %v970 = vpop.f32.mrb[0].mxu0
        %v971 = vadd.f32 0.0, %v970
        %v972 = vpop.f32.mrb[0].mxu0
        %v973 = vpop.f32.mrb[0].mxu0
        %v974 = vpop.f32.mrb[0].mxu0
        %975 = vdwg.mxu0
        %vm976 = vcmask 670720
        %v977 = vsel %vm976, %v931, -inf
        %978 = vmax.xlane.f32.xlu0 %v977
        %v979 = vpop.xlane.xlu0 %978
        %v980 = vsel %vm976, %v934, -inf
        %981 = vmax.xlane.f32.xlu0 %v980
        %v982 = vpop.xlane.xlu0 %981
        %v983 = vsel %vm976, %v939, -inf
        %984 = vmax.xlane.f32.xlu0 %v983
        %v985 = vpop.xlane.xlu0 %984
        %v986 = vsel %vm976, %v942, -inf
        %987 = vmax.xlane.f32.xlu0 %v986
        %v988 = vpop.xlane.xlu0 %987
        %v989 = vsel %vm976, %v947, -inf
        %990 = vmax.xlane.f32.xlu0 %v989
        %v991 = vpop.xlane.xlu0 %990
        %v992 = vsel %vm976, %v950, -inf
        %993 = vmax.xlane.f32.xlu0 %v992
        %v994 = vpop.xlane.xlu0 %993
        %v995 = vsel %vm976, %v955, -inf
        %996 = vmax.xlane.f32.xlu0 %v995
        %v997 = vpop.xlane.xlu0 %996
        %v998 = vsel %vm976, %v958, -inf
        %999 = vmax.xlane.f32.xlu0 %v998
        %v1000 = vpop.xlane.xlu0 %999
        %v1001 = vsel %vm976, %v963, -inf
        %1002 = vmax.xlane.f32.xlu0 %v1001
        %v1003 = vpop.xlane.xlu0 %1002
        %v1004 = vsel %vm976, %v966, -inf
        %1005 = vmax.xlane.f32.xlu0 %v1004
        %v1006 = vpop.xlane.xlu0 %1005
        %vm1007 = vcmask 664576
        %v1008 = vsel %vm1007, %v971, -inf
        %1009 = vmax.xlane.f32.xlu0 %v1008
        %v1010 = vpop.xlane.xlu0 %1009
        %v1011 = vsub.f32 %v931, %v979
        %v1012 = vsub.f32 %v934, %v982
        %v1013 = vsub.f32 %v939, %v985
        %v1014 = vsub.f32 %v942, %v988
        %v1015 = vsub.f32 %v947, %v991
        %v1016 = vsub.f32 %v950, %v994
        %v1017 = vsub.f32 %v955, %v997
        %v1018 = vsub.f32 %v958, %v1000
        %v1019 = vsub.f32 %v963, %v1003
        %v1020 = vsub.f32 %v966, %v1006
        %v1021 = vsub.f32 %v971, %v1010
        %v1022 = vmul.f32 %v1011, 1.442695
        %v1023 = vpow.pop %v1022
        %v1024 = vmul.f32 %v1012, 1.442695
        %v1025 = vpow.pop %v1024
        %v1026 = vmul.f32 %v1013, 1.442695
        %v1027 = vpow.pop %v1026
        %v1028 = vmul.f32 %v1014, 1.442695
        %v1029 = vpow.pop %v1028
        %v1030 = vmul.f32 %v1015, 1.442695
        %v1031 = vpow.pop %v1030
        %v1032 = vmul.f32 %v1016, 1.442695
        %v1033 = vpow.pop %v1032
        %v1034 = vmul.f32 %v1017, 1.442695
        %v1035 = vpow.pop %v1034
        %v1036 = vmul.f32 %v1018, 1.442695
        %v1037 = vpow.pop %v1036
        %v1038 = vmul.f32 %v1019, 1.442695
        %v1039 = vpow.pop %v1038
        %v1040 = vmul.f32 %v1020, 1.442695
        %v1041 = vpow.pop %v1040
        %v1042 = vmul.f32 %v1021, 1.442695
        %v1043 = vpow.pop %v1042
        %v1044 = vsel %vm976, %v1023, 0.0
        %1045 = vadd.xlane.f32.xlu0 %v1044
        %v1046 = vpop.xlane.xlu0 %1045
        %v1047 = vsel %vm976, %v1025, 0.0
        %1048 = vadd.xlane.f32.xlu0 %v1047
        %v1049 = vpop.xlane.xlu0 %1048
        %v1050 = vsel %vm976, %v1027, 0.0
        %1051 = vadd.xlane.f32.xlu0 %v1050
        %v1052 = vpop.xlane.xlu0 %1051
        %v1053 = vsel %vm976, %v1029, 0.0
        %1054 = vadd.xlane.f32.xlu0 %v1053
        %v1055 = vpop.xlane.xlu0 %1054
        %v1056 = vsel %vm976, %v1031, 0.0
        %1057 = vadd.xlane.f32.xlu0 %v1056
        %v1058 = vpop.xlane.xlu0 %1057
        %v1059 = vsel %vm976, %v1033, 0.0
        %1060 = vadd.xlane.f32.xlu0 %v1059
        %v1061 = vpop.xlane.xlu0 %1060
        %v1062 = vsel %vm976, %v1035, 0.0
        %1063 = vadd.xlane.f32.xlu0 %v1062
        %v1064 = vpop.xlane.xlu0 %1063
        %v1065 = vsel %vm976, %v1037, 0.0
        %1066 = vadd.xlane.f32.xlu0 %v1065
        %v1067 = vpop.xlane.xlu0 %1066
        %v1068 = vsel %vm976, %v1039, 0.0
        %1069 = vadd.xlane.f32.xlu0 %v1068
        %v1070 = vpop.xlane.xlu0 %1069
        %v1071 = vsel %vm976, %v1041, 0.0
        %1072 = vadd.xlane.f32.xlu0 %v1071
        %v1073 = vpop.xlane.xlu0 %1072
        %v1074 = vsel %vm1007, %v1043, 0.0
        %1075 = vadd.xlane.f32.xlu0 %v1074
        %v1076 = vpop.xlane.xlu0 %1075
        %v1077 = vrcp.pop %v1046
        %v1078 = vrcp.pop %v1049
        %v1079 = vrcp.pop %v1052
        %v1080 = vrcp.pop %v1055
        %v1081 = vrcp.pop %v1058
        %v1082 = vrcp.pop %v1061
        %v1083 = vrcp.pop %v1064
        %v1084 = vrcp.pop %v1067
        %v1085 = vrcp.pop %v1070
        %v1086 = vrcp.pop %v1073
        %v1087 = vrcp.pop %v1076
        %v1088 = vmul.f32 %v1023, %v1077
        %v1089 = vmul.f32 %v1025, %v1078
        %v1090 = vmul.f32 %v1027, %v1079
        %v1091 = vmul.f32 %v1029, %v1080
        %v1092 = vmul.f32 %v1031, %v1081
        %v1093 = vmul.f32 %v1033, %v1082
        %v1094 = vmul.f32 %v1035, %v1083
        %v1095 = vmul.f32 %v1037, %v1084
        %v1096 = vmul.f32 %v1039, %v1085
        %v1097 = vmul.f32 %v1041, %v1086
        %v1098 = vmul.f32 %v1043, %v1087
        %v1099 = vpack.c.bf16 %v1089, %v1088
        %v1100 = vpack.c.bf16 %v1091, %v1090
        %v1101 = vpack.c.bf16 %v1093, %v1092
        %v1102 = vpack.c.bf16 %v1095, %v1094
        %v1103 = vpack.c.bf16 %v1097, %v1096
        %v1104 = vpack.c.bf16 %v1098, %v1098
        %v1116 = vunpack.c.l.b16 %v792
        %v1117 = vunpack.c.l.b16 %v793
        %v1118 = vunpack.c.l.b16 %v794
        %v1119 = vunpack.c.l.b16 %v795
        %v1120 = vunpack.c.l.b16 %v796
        %v1121 = vunpack.c.l.b16 %v797
        %v1122 = vunpack.c.l.b16 %v798
        %v1123 = vunpack.c.l.b16 %v799
        %v1124 = vunpack.c.l.b16 %v800
        %v1125 = vunpack.c.l.b16 %v801
        %v1126 = vunpack.c.l.b16 %v802
        %v1127 = vpack.c.b16 %v1117, %v1116
        %v1128 = vpack.c.b16 %v1119, %v1118
        %v1129 = vpack.c.b16 %v1121, %v1120
        %v1130 = vpack.c.b16 %v1123, %v1122
        %v1131 = vpack.c.b16 %v1125, %v1124
        %v1132 = vpack.c.b16 %v1126, %v1126
        %v1139 = vsel %vm976, %v1099, 0
        %v1142 = vsel %vm976, %v1100, 0
        %v1145 = vsel %vm976, %v1101, 0
        %v1148 = vsel %vm976, %v1102, 0
        %v1151 = vsel %vm976, %v1103, 0
        %v1154 = vsel %vm976, %v1104, 0
        %vm1156 = vcmask 1040384
        %v1158 = vsel %vm1156, %v1132, 0
        %1160 = vmatprep.subr.bf16.mxu0 0
        %1161 = vmatpush1.bf16.msra.mxu0 %v1127
        %1162 = vmatprep.subr.bf16.mxu0 0
        %1163 = vmatpush1.bf16.msra.mxu0 %v1128
        %1164 = vmatprep.subr.bf16.mxu0 0
        %1165 = vmatpush1.bf16.msra.mxu0 %v1129
        %1166 = vmatprep.subr.bf16.mxu0 0
        %1167 = vmatpush1.bf16.msra.mxu0 %v1130
        %1168 = vmatprep.subr.bf16.mxu0 0
        %1169 = vmatpush1.bf16.msra.mxu0 %v1131
        %1170 = vmatprep.subr.bf16.mxu0 0
        %1171 = vmatpush1.bf16.msra.mxu0 %v1158
        %1172 = vmatprep.subr.bf16.mxu0 0
        %1173 = vmatpush1.bf16.msra.mxu0 0
        %1174 = vmatprep.subr.bf16.mxu0 0
        %1175 = vmatpush1.bf16.msra.mxu0 0
        %1176 = vmatprep.subr.bf16.mxu0 0
        %1177 = vmatpush1.bf16.msra.mxu0 0
        %1178 = vmatprep.subr.bf16.mxu0 0
        %1179 = vmatpush1.bf16.msra.mxu0 0
        %1180 = vmatprep.subr.bf16.mxu0 0
        %1181 = vmatpush1.bf16.msra.mxu0 0
        %1182 = vmatprep.subr.bf16.mxu0 0
        %1183 = vmatpush1.bf16.msra.mxu0 0
        %1184 = vmatprep.subr.bf16.mxu0 0
        %1185 = vmatpush1.bf16.msra.mxu0 0
        %1186 = vmatprep.subr.bf16.mxu0 0
        %1187 = vmatpush1.bf16.msra.mxu0 0
        %1188 = vmatprep.subr.bf16.mxu0 0
        %1189 = vmatpush1.bf16.msra.mxu0 0
        %1190 = vmatprep.subr.bf16.mxu0 0
        %1191 = vmatpush1.bf16.msra.mxu0 0
        %1192 = vmatprep.mubr.bf16.mxu0 0
        %1193 = vmatmul.mubr.bf16.gmra.mrb[0].mxu0 %v1139
        %v1194 = vpop.f32.mrb[0].mxu0
        %v1195 = vadd.f32 0.0, %v1194
        %v1196 = vpop.f32.mrb[0].mxu0
        %v1197 = vpop.f32.mrb[0].mxu0
        %v1198 = vadd.f32 0.0, %v1197
        %v1199 = vpop.f32.mrb[0].mxu0
        %1200 = vmatprep.mubr.bf16.mxu0 0
        %1201 = vmatmul.mubr.bf16.gmra.mrb[0].mxu0 %v1142
        %v1202 = vpop.f32.mrb[0].mxu0
        %v1203 = vadd.f32 0.0, %v1202
        %v1204 = vpop.f32.mrb[0].mxu0
        %v1205 = vpop.f32.mrb[0].mxu0
        %v1206 = vadd.f32 0.0, %v1205
        %v1207 = vpop.f32.mrb[0].mxu0
        %1208 = vmatprep.mubr.bf16.mxu0 0
        %1209 = vmatmul.mubr.bf16.gmra.mrb[0].mxu0 %v1145
        %v1210 = vpop.f32.mrb[0].mxu0
        %v1211 = vadd.f32 0.0, %v1210
        %v1212 = vpop.f32.mrb[0].mxu0
        %v1213 = vpop.f32.mrb[0].mxu0
        %v1214 = vadd.f32 0.0, %v1213
        %v1215 = vpop.f32.mrb[0].mxu0
        %1216 = vmatprep.mubr.bf16.mxu0 0
        %1217 = vmatmul.mubr.bf16.gmra.mrb[0].mxu0 %v1148
        %v1218 = vpop.f32.mrb[0].mxu0
        %v1219 = vadd.f32 0.0, %v1218
        %v1220 = vpop.f32.mrb[0].mxu0
        %v1221 = vpop.f32.mrb[0].mxu0
        %v1222 = vadd.f32 0.0, %v1221
        %v1223 = vpop.f32.mrb[0].mxu0
        %1224 = vmatprep.mubr.bf16.mxu0 0
        %1225 = vmatmul.mubr.bf16.gmra.mrb[0].mxu0 %v1151
        %v1226 = vpop.f32.mrb[0].mxu0
        %v1227 = vadd.f32 0.0, %v1226
        %v1228 = vpop.f32.mrb[0].mxu0
        %v1229 = vpop.f32.mrb[0].mxu0
        %v1230 = vadd.f32 0.0, %v1229
        %v1231 = vpop.f32.mrb[0].mxu0
        %1232 = vmatprep.mubr.bf16.mxu0 0
        %1233 = vmatmul.mubr.bf16.gmra.mrb[0].mxu0 %v1154
        %v1234 = vpop.f32.mrb[0].mxu0
        %v1235 = vadd.f32 0.0, %v1234
        %v1236 = vpop.f32.mrb[0].mxu0
        %v1237 = vpop.f32.mrb[0].mxu0
        %v1238 = vpop.f32.mrb[0].mxu0
        %1239 = vdwg.mxu0
        %v1240 = vpack.c.bf16 %v1198, %v1195
        %v1241 = vpack.c.bf16 %v1206, %v1203
        %v1242 = vpack.c.bf16 %v1214, %v1211
        %v1243 = vpack.c.bf16 %v1222, %v1219
        %v1244 = vpack.c.bf16 %v1230, %v1227
        %v1245 = vpack.c.bf16 %v1235, %v1235
        %v1252 = vunpack.c.l.b16 %v1240
        %v1253 = vunpack.c.h.b16 %v1240
        %v1254 = vunpack.c.l.b16 %v1241
        %v1255 = vunpack.c.h.b16 %v1241
        %v1256 = vunpack.c.l.b16 %v1242
        %v1257 = vunpack.c.h.b16 %v1242
        %v1258 = vunpack.c.l.b16 %v1243
        %v1259 = vunpack.c.h.b16 %v1243
        %v1260 = vunpack.c.l.b16 %v1244
        %v1261 = vunpack.c.h.b16 %v1244
        %v1262 = vunpack.c.l.b16 %v1245
        %v1263 = vpack.c.b16 %v1252, %v1252
        %v1264 = vpack.c.b16 %v1253, %v1253
        %v1265 = vpack.c.b16 %v1254, %v1254
        %v1266 = vpack.c.b16 %v1255, %v1255
        %v1267 = vpack.c.b16 %v1256, %v1256
        %v1268 = vpack.c.b16 %v1257, %v1257
        %v1269 = vpack.c.b16 %v1258, %v1258
        %v1270 = vpack.c.b16 %v1259, %v1259
        %v1271 = vpack.c.b16 %v1260, %v1260
        %v1272 = vpack.c.b16 %v1261, %v1261
        %v1273 = vpack.c.b16 %v1262, %v1262
        %vm1285 = vcmask 257024
        %1286 = vst.msk [vmem:[#allocation4] sm:$0xf] %vm1285, %v1263
        %1287 = vst.msk [vmem:[#allocation4 + $0x4] sm:$0xf] %vm1285, %v1264
        %1288 = vst.msk [vmem:[#allocation4 + $0x8] sm:$0xf] %vm1285, %v1265
        %1289 = vst.msk [vmem:[#allocation4 + $0xc] sm:$0xf] %vm1285, %v1266
        %1290 = vst.msk [vmem:[#allocation4 + $0x10] sm:$0xf] %vm1285, %v1267
        %1291 = vst.msk [vmem:[#allocation4 + $0x14] sm:$0xf] %vm1285, %v1268
        %1292 = vst.msk [vmem:[#allocation4 + $0x18] sm:$0xf] %vm1285, %v1269
        %1293 = vst.msk [vmem:[#allocation4 + $0x1c] sm:$0xf] %vm1285, %v1270
        %1294 = vst.msk [vmem:[#allocation4 + $0x20] sm:$0xf] %vm1285, %v1271
        %1295 = vst.msk [vmem:[#allocation4 + $0x24] sm:$0xf] %vm1285, %v1272
        %vm1296 = vcmask 253952
        %1297 = vst.msk [vmem:[#allocation4 + $0x28] sm:$0x1] %vm1296, %v1273
        %v1298 = vld [vmem:[#allocation3] sm:$0xf]
        %v1299 = vld [vmem:[#allocation3 + $0xc] sm:$0xf]
        %v1300 = vld [vmem:[#allocation3 + $0x18] sm:$0xf]
        %v1301 = vld [vmem:[#allocation3 + $0x24] sm:$0xf]
        %v1302 = vld [vmem:[#allocation3 + $0x30] sm:$0xf]
        %v1303 = vld [vmem:[#allocation3 + $0x3c] sm:$0xf]
        %v1304 = vld [vmem:[#allocation3 + $0x48] sm:$0xf]
        %v1305 = vld [vmem:[#allocation3 + $0x54] sm:$0xf]
        %v1306 = vld [vmem:[#allocation3 + $0x60] sm:$0xf]
        %v1307 = vld [vmem:[#allocation3 + $0x6c] sm:$0xf]
        %v1308 = vld [vmem:[#allocation3 + $0x78] sm:$0x1]
        %v1309 = vld [vmem:[#allocation3 + $0x4] sm:$0xf]
        %v1310 = vld [vmem:[#allocation3 + $0x10] sm:$0xf]
        %v1311 = vld [vmem:[#allocation3 + $0x1c] sm:$0xf]
        %v1312 = vld [vmem:[#allocation3 + $0x28] sm:$0xf]
        %v1313 = vld [vmem:[#allocation3 + $0x34] sm:$0xf]
        %v1314 = vld [vmem:[#allocation3 + $0x40] sm:$0xf]
        %v1315 = vld [vmem:[#allocation3 + $0x4c] sm:$0xf]
        %v1316 = vld [vmem:[#allocation3 + $0x58] sm:$0xf]
        %v1317 = vld [vmem:[#allocation3 + $0x64] sm:$0xf]
        %v1318 = vld [vmem:[#allocation3 + $0x70] sm:$0xf]
        %v1319 = vld [vmem:[#allocation3 + $0x7c] sm:$0x1]
        %v1320 = vld [vmem:[#allocation3 + $0x8] sm:$0xf]
        %v1321 = vld [vmem:[#allocation3 + $0x14] sm:$0xf]
        %v1322 = vld [vmem:[#allocation3 + $0x20] sm:$0xf]
        %v1323 = vld [vmem:[#allocation3 + $0x2c] sm:$0xf]
        %v1324 = vld [vmem:[#allocation3 + $0x38] sm:$0xf]
        %v1325 = vld [vmem:[#allocation3 + $0x44] sm:$0xf]
        %v1326 = vld [vmem:[#allocation3 + $0x50] sm:$0xf]
        %v1327 = vld [vmem:[#allocation3 + $0x5c] sm:$0xf]
        %v1328 = vld [vmem:[#allocation3 + $0x68] sm:$0xf]
        %v1329 = vld [vmem:[#allocation3 + $0x74] sm:$0xf]
        %v1330 = vld [vmem:[#allocation3 + $0x80] sm:$0x1]
        %v1342 = vunpack.c.l.b16 %v1298
        %v1343 = vunpack.c.l.b16 %v1299
        %v1344 = vunpack.c.l.b16 %v1300
        %v1345 = vunpack.c.l.b16 %v1301
        %v1346 = vunpack.c.l.b16 %v1302
        %v1347 = vunpack.c.l.b16 %v1303
        %v1348 = vunpack.c.l.b16 %v1304
        %v1349 = vunpack.c.l.b16 %v1305
        %v1350 = vunpack.c.l.b16 %v1306
        %v1351 = vunpack.c.l.b16 %v1307
        %v1352 = vunpack.c.l.b16 %v1308
        %v1353 = vpack.c.b16 %v1343, %v1342
        %v1354 = vpack.c.b16 %v1345, %v1344
        %v1355 = vpack.c.b16 %v1347, %v1346
        %v1356 = vpack.c.b16 %v1349, %v1348
        %v1357 = vpack.c.b16 %v1351, %v1350
        %v1358 = vpack.c.b16 %v1352, %v1352
        %1359 = vrot.lane.b32.xlu0 %v1353, 96
        %v1360 = vpop.permute.xlu0 %1359
        %1361 = vrot.lane.b32.xlu0 %v1354, 96
        %v1362 = vpop.permute.xlu0 %1361
        %1363 = vrot.lane.b32.xlu0 %v1355, 96
        %v1364 = vpop.permute.xlu0 %1363
        %1365 = vrot.lane.b32.xlu0 %v1356, 96
        %v1366 = vpop.permute.xlu0 %1365
        %1367 = vrot.lane.b32.xlu0 %v1357, 96
        %v1368 = vpop.permute.xlu0 %1367
        %1369 = vrot.lane.b32.xlu0 %v1358, 96
        %v1370 = vpop.permute.xlu0 %1369
        %v1382 = vunpack.c.l.b16 %v1309
        %v1383 = vunpack.c.l.b16 %v1310
        %v1384 = vunpack.c.l.b16 %v1311
        %v1385 = vunpack.c.l.b16 %v1312
        %v1386 = vunpack.c.l.b16 %v1313
        %v1387 = vunpack.c.l.b16 %v1314
        %v1388 = vunpack.c.l.b16 %v1315
        %v1389 = vunpack.c.l.b16 %v1316
        %v1390 = vunpack.c.l.b16 %v1317
        %v1391 = vunpack.c.l.b16 %v1318
        %v1392 = vunpack.c.l.b16 %v1319
        %v1393 = vpack.c.b16 %v1383, %v1382
        %v1394 = vpack.c.b16 %v1385, %v1384
        %v1395 = vpack.c.b16 %v1387, %v1386
        %v1396 = vpack.c.b16 %v1389, %v1388
        %v1397 = vpack.c.b16 %v1391, %v1390
        %v1398 = vpack.c.b16 %v1392, %v1392
        %1399 = vrot.lane.b32.xlu0 %v1393, 96
        %v1400 = vpop.permute.xlu0 %1399
        %1401 = vrot.lane.b32.xlu0 %v1394, 96
        %v1402 = vpop.permute.xlu0 %1401
        %1403 = vrot.lane.b32.xlu0 %v1395, 96
        %v1404 = vpop.permute.xlu0 %1403
        %1405 = vrot.lane.b32.xlu0 %v1396, 96
        %v1406 = vpop.permute.xlu0 %1405
        %1407 = vrot.lane.b32.xlu0 %v1397, 96
        %v1408 = vpop.permute.xlu0 %1407
        %1409 = vrot.lane.b32.xlu0 %v1398, 96
        %v1410 = vpop.permute.xlu0 %1409
        %v1412 = vsel %vm859, %v1360, 0
        %v1415 = vsel %vm859, %v1362, 0
        %v1418 = vsel %vm859, %v1364, 0
        %v1421 = vsel %vm859, %v1366, 0
        %v1424 = vsel %vm859, %v1368, 0
        %v1427 = vsel %vm859, %v1370, 0
        %v1430 = vsel %vm859, %v1400, 0
        %v1433 = vsel %vm859, %v1402, 0
        %v1436 = vsel %vm859, %v1404, 0
        %v1439 = vsel %vm859, %v1406, 0
        %v1442 = vsel %vm859, %v1408, 0
        %v1445 = vsel %vm859, %v1410, 0
        %1447 = vmatprep.subr.bf16.mxu0 0
        %1448 = vmatpush1.bf16.xpose.msra.mxu0 %v1430
        %1449 = vmatprep.subr.bf16.mxu0 0
        %1450 = vmatpush1.bf16.xpose.msra.mxu0 %v1433
        %1451 = vmatprep.subr.bf16.mxu0 0
        %1452 = vmatpush1.bf16.xpose.msra.mxu0 %v1436
        %1453 = vmatprep.subr.bf16.mxu0 0
        %1454 = vmatpush1.bf16.xpose.msra.mxu0 %v1439
        %1455 = vmatprep.subr.bf16.mxu0 0
        %1456 = vmatpush1.bf16.xpose.msra.mxu0 %v1442
        %1457 = vmatprep.subr.bf16.mxu0 0
        %1458 = vmatpush1.bf16.xpose.msra.mxu0 %v1445
        %1459 = vmatprep.subr.bf16.mxu0 0
        %1460 = vmatpush1.bf16.xpose.msra.mxu0 0
        %1461 = vmatprep.subr.bf16.mxu0 0
        %1462 = vmatpush1.bf16.xpose.msra.mxu0 0
        %1463 = vmatprep.subr.bf16.mxu0 0
        %1464 = vmatpush1.bf16.xpose.msra.mxu0 0
        %1465 = vmatprep.subr.bf16.mxu0 0
        %1466 = vmatpush1.bf16.xpose.msra.mxu0 0
        %1467 = vmatprep.subr.bf16.mxu0 0
        %1468 = vmatpush1.bf16.xpose.msra.mxu0 0
        %1469 = vmatprep.subr.bf16.mxu0 0
        %1470 = vmatpush1.bf16.xpose.msra.mxu0 0
        %1471 = vmatprep.subr.bf16.mxu0 0
        %1472 = vmatpush1.bf16.xpose.msra.mxu0 0
        %1473 = vmatprep.subr.bf16.mxu0 0
        %1474 = vmatpush1.bf16.xpose.msra.mxu0 0
        %1475 = vmatprep.subr.bf16.mxu0 0
        %1476 = vmatpush1.bf16.xpose.msra.mxu0 0
        %1477 = vmatprep.subr.bf16.mxu0 0
        %1478 = vmatpush1.bf16.xpose.msra.mxu0 0
        %1479 = vmatprep.mubr.bf16.mxu0 0
        %1480 = vmatmul.mubr.bf16.gmra.mrb[0].mxu0 %v1412
        %v1481 = vpop.f32.mrb[0].mxu0
        %v1482 = vadd.f32 0.0, %v1481
        %v1483 = vpop.f32.mrb[0].mxu0
        %v1484 = vpop.f32.mrb[0].mxu0
        %v1485 = vadd.f32 0.0, %v1484
        %v1486 = vpop.f32.mrb[0].mxu0
        %1487 = vmatprep.mubr.bf16.mxu0 0
        %1488 = vmatmul.mubr.bf16.gmra.mrb[0].mxu0 %v1415
        %v1489 = vpop.f32.mrb[0].mxu0
        %v1490 = vadd.f32 0.0, %v1489
        %v1491 = vpop.f32.mrb[0].mxu0
        %v1492 = vpop.f32.mrb[0].mxu0
        %v1493 = vadd.f32 0.0, %v1492
        %v1494 = vpop.f32.mrb[0].mxu0
        %1495 = vmatprep.mubr.bf16.mxu0 0
        %1496 = vmatmul.mubr.bf16.gmra.mrb[0].mxu0 %v1418
        %v1497 = vpop.f32.mrb[0].mxu0
        %v1498 = vadd.f32 0.0, %v1497
        %v1499 = vpop.f32.mrb[0].mxu0
        %v1500 = vpop.f32.mrb[0].mxu0
        %v1501 = vadd.f32 0.0, %v1500
        %v1502 = vpop.f32.mrb[0].mxu0
        %1503 = vmatprep.mubr.bf16.mxu0 0
        %1504 = vmatmul.mubr.bf16.gmra.mrb[0].mxu0 %v1421
        %v1505 = vpop.f32.mrb[0].mxu0
        %v1506 = vadd.f32 0.0, %v1505
        %v1507 = vpop.f32.mrb[0].mxu0
        %v1508 = vpop.f32.mrb[0].mxu0
        %v1509 = vadd.f32 0.0, %v1508
        %v1510 = vpop.f32.mrb[0].mxu0
        %1511 = vmatprep.mubr.bf16.mxu0 0
        %1512 = vmatmul.mubr.bf16.gmra.mrb[0].mxu0 %v1424
        %v1513 = vpop.f32.mrb[0].mxu0
        %v1514 = vadd.f32 0.0, %v1513
        %v1515 = vpop.f32.mrb[0].mxu0
        %v1516 = vpop.f32.mrb[0].mxu0
        %v1517 = vadd.f32 0.0, %v1516
        %v1518 = vpop.f32.mrb[0].mxu0
        %1519 = vmatprep.mubr.bf16.mxu0 0
        %1520 = vmatmul.mubr.bf16.gmra.mrb[0].mxu0 %v1427
        %v1521 = vpop.f32.mrb[0].mxu0
        %v1522 = vadd.f32 0.0, %v1521
        %v1523 = vpop.f32.mrb[0].mxu0
        %v1524 = vpop.f32.mrb[0].mxu0
        %v1525 = vpop.f32.mrb[0].mxu0
        %1526 = vdwg.mxu0
        %v1527 = vsel %vm976, %v1482, -inf
        %1528 = vmax.xlane.f32.xlu0 %v1527
        %v1529 = vpop.xlane.xlu0 %1528
        %v1530 = vsel %vm976, %v1485, -inf
        %1531 = vmax.xlane.f32.xlu0 %v1530
        %v1532 = vpop.xlane.xlu0 %1531
        %v1533 = vsel %vm976, %v1490, -inf
        %1534 = vmax.xlane.f32.xlu0 %v1533
        %v1535 = vpop.xlane.xlu0 %1534
        %v1536 = vsel %vm976, %v1493, -inf
        %1537 = vmax.xlane.f32.xlu0 %v1536
        %v1538 = vpop.xlane.xlu0 %1537
        %v1539 = vsel %vm976, %v1498, -inf
        %1540 = vmax.xlane.f32.xlu0 %v1539
        %v1541 = vpop.xlane.xlu0 %1540
        %v1542 = vsel %vm976, %v1501, -inf
        %1543 = vmax.xlane.f32.xlu0 %v1542
        %v1544 = vpop.xlane.xlu0 %1543
        %v1545 = vsel %vm976, %v1506, -inf
        %1546 = vmax.xlane.f32.xlu0 %v1545
        %v1547 = vpop.xlane.xlu0 %1546
        %v1548 = vsel %vm976, %v1509, -inf
        %1549 = vmax.xlane.f32.xlu0 %v1548
        %v1550 = vpop.xlane.xlu0 %1549
        %v1551 = vsel %vm976, %v1514, -inf
        %1552 = vmax.xlane.f32.xlu0 %v1551
        %v1553 = vpop.xlane.xlu0 %1552
        %v1554 = vsel %vm976, %v1517, -inf
        %1555 = vmax.xlane.f32.xlu0 %v1554
        %v1556 = vpop.xlane.xlu0 %1555
        %v1557 = vsel %vm1007, %v1522, -inf
        %1558 = vmax.xlane.f32.xlu0 %v1557
        %v1559 = vpop.xlane.xlu0 %1558
        %v1560 = vsub.f32 %v1482, %v1529
        %v1561 = vsub.f32 %v1485, %v1532
        %v1562 = vsub.f32 %v1490, %v1535
        %v1563 = vsub.f32 %v1493, %v1538
        %v1564 = vsub.f32 %v1498, %v1541
        %v1565 = vsub.f32 %v1501, %v1544
        %v1566 = vsub.f32 %v1506, %v1547
        %v1567 = vsub.f32 %v1509, %v1550
        %v1568 = vsub.f32 %v1514, %v1553
        %v1569 = vsub.f32 %v1517, %v1556
        %v1570 = vsub.f32 %v1522, %v1559
        %v1571 = vmul.f32 %v1560, 1.442695
        %v1572 = vpow.pop %v1571
        %v1573 = vmul.f32 %v1561, 1.442695
        %v1574 = vpow.pop %v1573
        %v1575 = vmul.f32 %v1562, 1.442695
        %v1576 = vpow.pop %v1575
        %v1577 = vmul.f32 %v1563, 1.442695
        %v1578 = vpow.pop %v1577
        %v1579 = vmul.f32 %v1564, 1.442695
        %v1580 = vpow.pop %v1579
        %v1581 = vmul.f32 %v1565, 1.442695
        %v1582 = vpow.pop %v1581
        %v1583 = vmul.f32 %v1566, 1.442695
        %v1584 = vpow.pop %v1583
        %v1585 = vmul.f32 %v1567, 1.442695
        %v1586 = vpow.pop %v1585
        %v1587 = vmul.f32 %v1568, 1.442695
        %v1588 = vpow.pop %v1587
        %v1589 = vmul.f32 %v1569, 1.442695
        %v1590 = vpow.pop %v1589
        %v1591 = vmul.f32 %v1570, 1.442695
        %v1592 = vpow.pop %v1591
        %v1593 = vsel %vm976, %v1572, 0.0
        %1594 = vadd.xlane.f32.xlu0 %v1593
        %v1595 = vpop.xlane.xlu0 %1594
        %v1596 = vsel %vm976, %v1574, 0.0
        %1597 = vadd.xlane.f32.xlu0 %v1596
        %v1598 = vpop.xlane.xlu0 %1597
        %v1599 = vsel %vm976, %v1576, 0.0
        %1600 = vadd.xlane.f32.xlu0 %v1599
        %v1601 = vpop.xlane.xlu0 %1600
        %v1602 = vsel %vm976, %v1578, 0.0
        %1603 = vadd.xlane.f32.xlu0 %v1602
        %v1604 = vpop.xlane.xlu0 %1603
        %v1605 = vsel %vm976, %v1580, 0.0
        %1606 = vadd.xlane.f32.xlu0 %v1605
        %v1607 = vpop.xlane.xlu0 %1606
        %v1608 = vsel %vm976, %v1582, 0.0
        %1609 = vadd.xlane.f32.xlu0 %v1608
        %v1610 = vpop.xlane.xlu0 %1609
        %v1611 = vsel %vm976, %v1584, 0.0
        %1612 = vadd.xlane.f32.xlu0 %v1611
        %v1613 = vpop.xlane.xlu0 %1612
        %v1614 = vsel %vm976, %v1586, 0.0
        %1615 = vadd.xlane.f32.xlu0 %v1614
        %v1616 = vpop.xlane.xlu0 %1615
        %v1617 = vsel %vm976, %v1588, 0.0
        %1618 = vadd.xlane.f32.xlu0 %v1617
        %v1619 = vpop.xlane.xlu0 %1618
        %v1620 = vsel %vm976, %v1590, 0.0
        %1621 = vadd.xlane.f32.xlu0 %v1620
        %v1622 = vpop.xlane.xlu0 %1621
        %v1623 = vsel %vm1007, %v1592, 0.0
        %1624 = vadd.xlane.f32.xlu0 %v1623
        %v1625 = vpop.xlane.xlu0 %1624
        %v1626 = vrcp.pop %v1595
        %v1627 = vrcp.pop %v1598
        %v1628 = vrcp.pop %v1601
        %v1629 = vrcp.pop %v1604
        %v1630 = vrcp.pop %v1607
        %v1631 = vrcp.pop %v1610
        %v1632 = vrcp.pop %v1613
        %v1633 = vrcp.pop %v1616
        %v1634 = vrcp.pop %v1619
        %v1635 = vrcp.pop %v1622
        %v1636 = vrcp.pop %v1625
        %v1637 = vmul.f32 %v1572, %v1626
        %v1638 = vmul.f32 %v1574, %v1627
        %v1639 = vmul.f32 %v1576, %v1628
        %v1640 = vmul.f32 %v1578, %v1629
        %v1641 = vmul.f32 %v1580, %v1630
        %v1642 = vmul.f32 %v1582, %v1631
        %v1643 = vmul.f32 %v1584, %v1632
        %v1644 = vmul.f32 %v1586, %v1633
        %v1645 = vmul.f32 %v1588, %v1634
        %v1646 = vmul.f32 %v1590, %v1635
        %v1647 = vmul.f32 %v1592, %v1636
        %v1648 = vpack.c.bf16 %v1638, %v1637
        %v1649 = vpack.c.bf16 %v1640, %v1639
        %v1650 = vpack.c.bf16 %v1642, %v1641
        %v1651 = vpack.c.bf16 %v1644, %v1643
        %v1652 = vpack.c.bf16 %v1646, %v1645
        %v1653 = vpack.c.bf16 %v1647, %v1647
        %v1665 = vunpack.c.l.b16 %v1320
        %v1666 = vunpack.c.l.b16 %v1321
        %v1667 = vunpack.c.l.b16 %v1322
        %v1668 = vunpack.c.l.b16 %v1323
        %v1669 = vunpack.c.l.b16 %v1324
        %v1670 = vunpack.c.l.b16 %v1325
        %v1671 = vunpack.c.l.b16 %v1326
        %v1672 = vunpack.c.l.b16 %v1327
        %v1673 = vunpack.c.l.b16 %v1328
        %v1674 = vunpack.c.l.b16 %v1329
        %v1675 = vunpack.c.l.b16 %v1330
        %v1676 = vpack.c.b16 %v1666, %v1665
        %v1677 = vpack.c.b16 %v1668, %v1667
        %v1678 = vpack.c.b16 %v1670, %v1669
        %v1679 = vpack.c.b16 %v1672, %v1671
        %v1680 = vpack.c.b16 %v1674, %v1673
        %v1681 = vpack.c.b16 %v1675, %v1675
        %1682 = vrot.lane.b32.xlu0 %v1676, 96
        %v1683 = vpop.permute.xlu0 %1682
        %1684 = vrot.lane.b32.xlu0 %v1677, 96
        %v1685 = vpop.permute.xlu0 %1684
        %1686 = vrot.lane.b32.xlu0 %v1678, 96
        %v1687 = vpop.permute.xlu0 %1686
        %1688 = vrot.lane.b32.xlu0 %v1679, 96
        %v1689 = vpop.permute.xlu0 %1688
        %1690 = vrot.lane.b32.xlu0 %v1680, 96
        %v1691 = vpop.permute.xlu0 %1690
        %1692 = vrot.lane.b32.xlu0 %v1681, 96
        %v1693 = vpop.permute.xlu0 %1692
        %v1700 = vsel %vm976, %v1648, 0
        %v1703 = vsel %vm976, %v1649, 0
        %v1706 = vsel %vm976, %v1650, 0
        %v1709 = vsel %vm976, %v1651, 0
        %v1712 = vsel %vm976, %v1652, 0
        %v1715 = vsel %vm976, %v1653, 0
        %v1718 = vsel %vm1156, %v1693, 0
        %1720 = vmatprep.subr.bf16.mxu0 0
        %1721 = vmatpush1.bf16.msra.mxu0 %v1683
        %1722 = vmatprep.subr.bf16.mxu0 0
        %1723 = vmatpush1.bf16.msra.mxu0 %v1685
        %1724 = vmatprep.subr.bf16.mxu0 0
        %1725 = vmatpush1.bf16.msra.mxu0 %v1687
        %1726 = vmatprep.subr.bf16.mxu0 0
        %1727 = vmatpush1.bf16.msra.mxu0 %v1689
        %1728 = vmatprep.subr.bf16.mxu0 0
        %1729 = vmatpush1.bf16.msra.mxu0 %v1691
        %1730 = vmatprep.subr.bf16.mxu0 0
        %1731 = vmatpush1.bf16.msra.mxu0 %v1718
        %1732 = vmatprep.subr.bf16.mxu0 0
        %1733 = vmatpush1.bf16.msra.mxu0 0
        %1734 = vmatprep.subr.bf16.mxu0 0
        %1735 = vmatpush1.bf16.msra.mxu0 0
        %1736 = vmatprep.subr.bf16.mxu0 0
        %1737 = vmatpush1.bf16.msra.mxu0 0
        %1738 = vmatprep.subr.bf16.mxu0 0
        %1739 = vmatpush1.bf16.msra.mxu0 0
        %1740 = vmatprep.subr.bf16.mxu0 0
        %1741 = vmatpush1.bf16.msra.mxu0 0
        %1742 = vmatprep.subr.bf16.mxu0 0
        %1743 = vmatpush1.bf16.msra.mxu0 0
        %1744 = vmatprep.subr.bf16.mxu0 0
        %1745 = vmatpush1.bf16.msra.mxu0 0
        %1746 = vmatprep.subr.bf16.mxu0 0
        %1747 = vmatpush1.bf16.msra.mxu0 0
        %1748 = vmatprep.subr.bf16.mxu0 0
        %1749 = vmatpush1.bf16.msra.mxu0 0
        %1750 = vmatprep.subr.bf16.mxu0 0
        %1751 = vmatpush1.bf16.msra.mxu0 0
        %1752 = vmatprep.mubr.bf16.mxu0 0
        %1753 = vmatmul.mubr.bf16.gmra.mrb[0].mxu0 %v1700
        %v1754 = vpop.f32.mrb[0].mxu0
        %v1755 = vadd.f32 0.0, %v1754
        %v1756 = vpop.f32.mrb[0].mxu0
        %v1757 = vpop.f32.mrb[0].mxu0
        %v1758 = vadd.f32 0.0, %v1757
        %v1759 = vpop.f32.mrb[0].mxu0
        %1760 = vmatprep.mubr.bf16.mxu0 0
        %1761 = vmatmul.mubr.bf16.gmra.mrb[0].mxu0 %v1703
        %v1762 = vpop.f32.mrb[0].mxu0
        %v1763 = vadd.f32 0.0, %v1762
        %v1764 = vpop.f32.mrb[0].mxu0
        %v1765 = vpop.f32.mrb[0].mxu0
        %v1766 = vadd.f32 0.0, %v1765
        %v1767 = vpop.f32.mrb[0].mxu0
        %1768 = vmatprep.mubr.bf16.mxu0 0
        %1769 = vmatmul.mubr.bf16.gmra.mrb[0].mxu0 %v1706
        %v1770 = vpop.f32.mrb[0].mxu0
        %v1771 = vadd.f32 0.0, %v1770
        %v1772 = vpop.f32.mrb[0].mxu0
        %v1773 = vpop.f32.mrb[0].mxu0
        %v1774 = vadd.f32 0.0, %v1773
        %v1775 = vpop.f32.mrb[0].mxu0
        %1776 = vmatprep.mubr.bf16.mxu0 0
        %1777 = vmatmul.mubr.bf16.gmra.mrb[0].mxu0 %v1709
        %v1778 = vpop.f32.mrb[0].mxu0
        %v1779 = vadd.f32 0.0, %v1778
        %v1780 = vpop.f32.mrb[0].mxu0
        %v1781 = vpop.f32.mrb[0].mxu0
        %v1782 = vadd.f32 0.0, %v1781
        %v1783 = vpop.f32.mrb[0].mxu0
        %1784 = vmatprep.mubr.bf16.mxu0 0
        %1785 = vmatmul.mubr.bf16.gmra.mrb[0].mxu0 %v1712
        %v1786 = vpop.f32.mrb[0].mxu0
        %v1787 = vadd.f32 0.0, %v1786
        %v1788 = vpop.f32.mrb[0].mxu0
        %v1789 = vpop.f32.mrb[0].mxu0
        %v1790 = vadd.f32 0.0, %v1789
        %v1791 = vpop.f32.mrb[0].mxu0
        %1792 = vmatprep.mubr.bf16.mxu0 0
        %1793 = vmatmul.mubr.bf16.gmra.mrb[0].mxu0 %v1715
        %v1794 = vpop.f32.mrb[0].mxu0
        %v1795 = vadd.f32 0.0, %v1794
        %v1796 = vpop.f32.mrb[0].mxu0
        %v1797 = vpop.f32.mrb[0].mxu0
        %v1798 = vpop.f32.mrb[0].mxu0
        %1799 = vdwg.mxu0
        %v1800 = vpack.c.bf16 %v1758, %v1755
        %v1801 = vpack.c.bf16 %v1766, %v1763
        %v1802 = vpack.c.bf16 %v1774, %v1771
        %v1803 = vpack.c.bf16 %v1782, %v1779
        %v1804 = vpack.c.bf16 %v1790, %v1787
        %v1805 = vpack.c.bf16 %v1795, %v1795
        %v1812 = vunpack.c.l.b16 %v1800
        %v1813 = vunpack.c.h.b16 %v1800
        %v1814 = vunpack.c.l.b16 %v1801
        %v1815 = vunpack.c.h.b16 %v1801
        %v1816 = vunpack.c.l.b16 %v1802
        %v1817 = vunpack.c.h.b16 %v1802
        %v1818 = vunpack.c.l.b16 %v1803
        %v1819 = vunpack.c.h.b16 %v1803
        %v1820 = vunpack.c.l.b16 %v1804
        %v1821 = vunpack.c.h.b16 %v1804
        %v1822 = vunpack.c.l.b16 %v1805
        %v1823 = vpack.c.b16 %v1812, %v1812
        %v1824 = vpack.c.b16 %v1813, %v1813
        %v1825 = vpack.c.b16 %v1814, %v1814
        %v1826 = vpack.c.b16 %v1815, %v1815
        %v1827 = vpack.c.b16 %v1816, %v1816
        %v1828 = vpack.c.b16 %v1817, %v1817
        %v1829 = vpack.c.b16 %v1818, %v1818
        %v1830 = vpack.c.b16 %v1819, %v1819
        %v1831 = vpack.c.b16 %v1820, %v1820
        %v1832 = vpack.c.b16 %v1821, %v1821
        %v1833 = vpack.c.b16 %v1822, %v1822
        %1834 = vrot.lane.b32.xlu0 %v1823, 32
        %v1835 = vpop.permute.xlu0 %1834
        %1836 = vrot.lane.b32.xlu0 %v1824, 32
        %v1837 = vpop.permute.xlu0 %1836
        %1838 = vrot.lane.b32.xlu0 %v1825, 32
        %v1839 = vpop.permute.xlu0 %1838
        %1840 = vrot.lane.b32.xlu0 %v1826, 32
        %v1841 = vpop.permute.xlu0 %1840
        %1842 = vrot.lane.b32.xlu0 %v1827, 32
        %v1843 = vpop.permute.xlu0 %1842
        %1844 = vrot.lane.b32.xlu0 %v1828, 32
        %v1845 = vpop.permute.xlu0 %1844
        %1846 = vrot.lane.b32.xlu0 %v1829, 32
        %v1847 = vpop.permute.xlu0 %1846
        %1848 = vrot.lane.b32.xlu0 %v1830, 32
        %v1849 = vpop.permute.xlu0 %1848
        %1850 = vrot.lane.b32.xlu0 %v1831, 32
        %v1851 = vpop.permute.xlu0 %1850
        %1852 = vrot.lane.b32.xlu0 %v1832, 32
        %v1853 = vpop.permute.xlu0 %1852
        %1854 = vrot.lane.b32.xlu0 %v1833, 32
        %v1855 = vpop.permute.xlu0 %1854
        %vm1867 = vcmask 519424
        %1868 = vst.msk [vmem:[#allocation4] sm:$0xf] %vm1867, %v1835
        %1869 = vst.msk [vmem:[#allocation4 + $0x4] sm:$0xf] %vm1867, %v1837
        %1870 = vst.msk [vmem:[#allocation4 + $0x8] sm:$0xf] %vm1867, %v1839
        %1871 = vst.msk [vmem:[#allocation4 + $0xc] sm:$0xf] %vm1867, %v1841
        %1872 = vst.msk [vmem:[#allocation4 + $0x10] sm:$0xf] %vm1867, %v1843
        %1873 = vst.msk [vmem:[#allocation4 + $0x14] sm:$0xf] %vm1867, %v1845
        %1874 = vst.msk [vmem:[#allocation4 + $0x18] sm:$0xf] %vm1867, %v1847
        %1875 = vst.msk [vmem:[#allocation4 + $0x1c] sm:$0xf] %vm1867, %v1849
        %1876 = vst.msk [vmem:[#allocation4 + $0x20] sm:$0xf] %vm1867, %v1851
        %1877 = vst.msk [vmem:[#allocation4 + $0x24] sm:$0xf] %vm1867, %v1853
        %vm1878 = vcmask 516352
        %1879 = vst.msk [vmem:[#allocation4 + $0x28] sm:$0x1] %vm1878, %v1855
        %v1880 = vld [vmem:[#allocation3] sm:$0xf]
        %v1881 = vld [vmem:[#allocation3 + $0xc] sm:$0xf]
        %v1882 = vld [vmem:[#allocation3 + $0x18] sm:$0xf]
        %v1883 = vld [vmem:[#allocation3 + $0x24] sm:$0xf]
        %v1884 = vld [vmem:[#allocation3 + $0x30] sm:$0xf]
        %v1885 = vld [vmem:[#allocation3 + $0x3c] sm:$0xf]
        %v1886 = vld [vmem:[#allocation3 + $0x48] sm:$0xf]
        %v1887 = vld [vmem:[#allocation3 + $0x54] sm:$0xf]
        %v1888 = vld [vmem:[#allocation3 + $0x60] sm:$0xf]
        %v1889 = vld [vmem:[#allocation3 + $0x6c] sm:$0xf]
        %v1890 = vld [vmem:[#allocation3 + $0x78] sm:$0x1]
        %v1891 = vld [vmem:[#allocation3 + $0x4] sm:$0xf]
        %v1892 = vld [vmem:[#allocation3 + $0x10] sm:$0xf]
        %v1893 = vld [vmem:[#allocation3 + $0x1c] sm:$0xf]
        %v1894 = vld [vmem:[#allocation3 + $0x28] sm:$0xf]
        %v1895 = vld [vmem:[#allocation3 + $0x34] sm:$0xf]
        %v1896 = vld [vmem:[#allocation3 + $0x40] sm:$0xf]
        %v1897 = vld [vmem:[#allocation3 + $0x4c] sm:$0xf]
        %v1898 = vld [vmem:[#allocation3 + $0x58] sm:$0xf]
        %v1899 = vld [vmem:[#allocation3 + $0x64] sm:$0xf]
        %v1900 = vld [vmem:[#allocation3 + $0x70] sm:$0xf]
        %v1901 = vld [vmem:[#allocation3 + $0x7c] sm:$0x1]
        %v1902 = vld [vmem:[#allocation3 + $0x8] sm:$0xf]
        %v1903 = vld [vmem:[#allocation3 + $0x14] sm:$0xf]
        %v1904 = vld [vmem:[#allocation3 + $0x20] sm:$0xf]
        %v1905 = vld [vmem:[#allocation3 + $0x2c] sm:$0xf]
        %v1906 = vld [vmem:[#allocation3 + $0x38] sm:$0xf]
        %v1907 = vld [vmem:[#allocation3 + $0x44] sm:$0xf]
        %v1908 = vld [vmem:[#allocation3 + $0x50] sm:$0xf]
        %v1909 = vld [vmem:[#allocation3 + $0x5c] sm:$0xf]
        %v1910 = vld [vmem:[#allocation3 + $0x68] sm:$0xf]
        %v1911 = vld [vmem:[#allocation3 + $0x74] sm:$0xf]
        %v1912 = vld [vmem:[#allocation3 + $0x80] sm:$0x1]
        %v1924 = vunpack.c.l.b16 %v1880
        %v1925 = vunpack.c.l.b16 %v1881
        %v1926 = vunpack.c.l.b16 %v1882
        %v1927 = vunpack.c.l.b16 %v1883
        %v1928 = vunpack.c.l.b16 %v1884
        %v1929 = vunpack.c.l.b16 %v1885
        %v1930 = vunpack.c.l.b16 %v1886
        %v1931 = vunpack.c.l.b16 %v1887
        %v1932 = vunpack.c.l.b16 %v1888
        %v1933 = vunpack.c.l.b16 %v1889
        %v1934 = vunpack.c.l.b16 %v1890
        %v1935 = vpack.c.b16 %v1925, %v1924
        %v1936 = vpack.c.b16 %v1927, %v1926
        %v1937 = vpack.c.b16 %v1929, %v1928
        %v1938 = vpack.c.b16 %v1931, %v1930
        %v1939 = vpack.c.b16 %v1933, %v1932
        %v1940 = vpack.c.b16 %v1934, %v1934
        %1941 = vrot.lane.b32.xlu0 %v1935, 64
        %v1942 = vpop.permute.xlu0 %1941
        %1943 = vrot.lane.b32.xlu0 %v1936, 64
        %v1944 = vpop.permute.xlu0 %1943
        %1945 = vrot.lane.b32.xlu0 %v1937, 64
        %v1946 = vpop.permute.xlu0 %1945
        %1947 = vrot.lane.b32.xlu0 %v1938, 64
        %v1948 = vpop.permute.xlu0 %1947
        %1949 = vrot.lane.b32.xlu0 %v1939, 64
        %v1950 = vpop.permute.xlu0 %1949
        %1951 = vrot.lane.b32.xlu0 %v1940, 64
        %v1952 = vpop.permute.xlu0 %1951
        %v1964 = vunpack.c.l.b16 %v1891
        %v1965 = vunpack.c.l.b16 %v1892
        %v1966 = vunpack.c.l.b16 %v1893
        %v1967 = vunpack.c.l.b16 %v1894
        %v1968 = vunpack.c.l.b16 %v1895
        %v1969 = vunpack.c.l.b16 %v1896
        %v1970 = vunpack.c.l.b16 %v1897
        %v1971 = vunpack.c.l.b16 %v1898
        %v1972 = vunpack.c.l.b16 %v1899
        %v1973 = vunpack.c.l.b16 %v1900
        %v1974 = vunpack.c.l.b16 %v1901
        %v1975 = vpack.c.b16 %v1965, %v1964
        %v1976 = vpack.c.b16 %v1967, %v1966
        %v1977 = vpack.c.b16 %v1969, %v1968
        %v1978 = vpack.c.b16 %v1971, %v1970
        %v1979 = vpack.c.b16 %v1973, %v1972
        %v1980 = vpack.c.b16 %v1974, %v1974
        %1981 = vrot.lane.b32.xlu0 %v1975, 64
        %v1982 = vpop.permute.xlu0 %1981
        %1983 = vrot.lane.b32.xlu0 %v1976, 64
        %v1984 = vpop.permute.xlu0 %1983
        %1985 = vrot.lane.b32.xlu0 %v1977, 64
        %v1986 = vpop.permute.xlu0 %1985
        %1987 = vrot.lane.b32.xlu0 %v1978, 64
        %v1988 = vpop.permute.xlu0 %1987
        %1989 = vrot.lane.b32.xlu0 %v1979, 64
        %v1990 = vpop.permute.xlu0 %1989
        %1991 = vrot.lane.b32.xlu0 %v1980, 64
        %v1992 = vpop.permute.xlu0 %1991
        %v1994 = vsel %vm859, %v1942, 0
        %v1997 = vsel %vm859, %v1944, 0
        %v2000 = vsel %vm859, %v1946, 0
        %v2003 = vsel %vm859, %v1948, 0
        %v2006 = vsel %vm859, %v1950, 0
        %v2009 = vsel %vm859, %v1952, 0
        %v2012 = vsel %vm859, %v1982, 0
        %v2015 = vsel %vm859, %v1984, 0
        %v2018 = vsel %vm859, %v1986, 0
        %v2021 = vsel %vm859, %v1988, 0
        %v2024 = vsel %vm859, %v1990, 0
        %v2027 = vsel %vm859, %v1992, 0
        %2029 = vmatprep.subr.bf16.mxu0 0
        %2030 = vmatpush1.bf16.xpose.msra.mxu0 %v2012
        %2031 = vmatprep.subr.bf16.mxu0 0
        %2032 = vmatpush1.bf16.xpose.msra.mxu0 %v2015
        %2033 = vmatprep.subr.bf16.mxu0 0
        %2034 = vmatpush1.bf16.xpose.msra.mxu0 %v2018
        %2035 = vmatprep.subr.bf16.mxu0 0
        %2036 = vmatpush1.bf16.xpose.msra.mxu0 %v2021
        %2037 = vmatprep.subr.bf16.mxu0 0
        %2038 = vmatpush1.bf16.xpose.msra.mxu0 %v2024
        %2039 = vmatprep.subr.bf16.mxu0 0
        %2040 = vmatpush1.bf16.xpose.msra.mxu0 %v2027
        %2041 = vmatprep.subr.bf16.mxu0 0
        %2042 = vmatpush1.bf16.xpose.msra.mxu0 0
        %2043 = vmatprep.subr.bf16.mxu0 0
        %2044 = vmatpush1.bf16.xpose.msra.mxu0 0
        %2045 = vmatprep.subr.bf16.mxu0 0
        %2046 = vmatpush1.bf16.xpose.msra.mxu0 0
        %2047 = vmatprep.subr.bf16.mxu0 0
        %2048 = vmatpush1.bf16.xpose.msra.mxu0 0
        %2049 = vmatprep.subr.bf16.mxu0 0
        %2050 = vmatpush1.bf16.xpose.msra.mxu0 0
        %2051 = vmatprep.subr.bf16.mxu0 0
        %2052 = vmatpush1.bf16.xpose.msra.mxu0 0
        %2053 = vmatprep.subr.bf16.mxu0 0
        %2054 = vmatpush1.bf16.xpose.msra.mxu0 0
        %2055 = vmatprep.subr.bf16.mxu0 0
        %2056 = vmatpush1.bf16.xpose.msra.mxu0 0
        %2057 = vmatprep.subr.bf16.mxu0 0
        %2058 = vmatpush1.bf16.xpose.msra.mxu0 0
        %2059 = vmatprep.subr.bf16.mxu0 0
        %2060 = vmatpush1.bf16.xpose.msra.mxu0 0
        %2061 = vmatprep.mubr.bf16.mxu0 0
        %2062 = vmatmul.mubr.bf16.gmra.mrb[0].mxu0 %v1994
        %v2063 = vpop.f32.mrb[0].mxu0
        %v2064 = vadd.f32 0.0, %v2063
        %v2065 = vpop.f32.mrb[0].mxu0
        %v2066 = vpop.f32.mrb[0].mxu0
        %v2067 = vadd.f32 0.0, %v2066
        %v2068 = vpop.f32.mrb[0].mxu0
        %2069 = vmatprep.mubr.bf16.mxu0 0
        %2070 = vmatmul.mubr.bf16.gmra.mrb[0].mxu0 %v1997
        %v2071 = vpop.f32.mrb[0].mxu0
        %v2072 = vadd.f32 0.0, %v2071
        %v2073 = vpop.f32.mrb[0].mxu0
        %v2074 = vpop.f32.mrb[0].mxu0
        %v2075 = vadd.f32 0.0, %v2074
        %v2076 = vpop.f32.mrb[0].mxu0
        %2077 = vmatprep.mubr.bf16.mxu0 0
        %2078 = vmatmul.mubr.bf16.gmra.mrb[0].mxu0 %v2000
        %v2079 = vpop.f32.mrb[0].mxu0
        %v2080 = vadd.f32 0.0, %v2079
        %v2081 = vpop.f32.mrb[0].mxu0
        %v2082 = vpop.f32.mrb[0].mxu0
        %v2083 = vadd.f32 0.0, %v2082
        %v2084 = vpop.f32.mrb[0].mxu0
        %2085 = vmatprep.mubr.bf16.mxu0 0
        %2086 = vmatmul.mubr.bf16.gmra.mrb[0].mxu0 %v2003
        %v2087 = vpop.f32.mrb[0].mxu0
        %v2088 = vadd.f32 0.0, %v2087
        %v2089 = vpop.f32.mrb[0].mxu0
        %v2090 = vpop.f32.mrb[0].mxu0
        %v2091 = vadd.f32 0.0, %v2090
        %v2092 = vpop.f32.mrb[0].mxu0
        %2093 = vmatprep.mubr.bf16.mxu0 0
        %2094 = vmatmul.mubr.bf16.gmra.mrb[0].mxu0 %v2006
        %v2095 = vpop.f32.mrb[0].mxu0
        %v2096 = vadd.f32 0.0, %v2095
        %v2097 = vpop.f32.mrb[0].mxu0
        %v2098 = vpop.f32.mrb[0].mxu0
        %v2099 = vadd.f32 0.0, %v2098
        %v2100 = vpop.f32.mrb[0].mxu0
        %2101 = vmatprep.mubr.bf16.mxu0 0
        %2102 = vmatmul.mubr.bf16.gmra.mrb[0].mxu0 %v2009
        %v2103 = vpop.f32.mrb[0].mxu0
        %v2104 = vadd.f32 0.0, %v2103
        %v2105 = vpop.f32.mrb[0].mxu0
        %v2106 = vpop.f32.mrb[0].mxu0
        %v2107 = vpop.f32.mrb[0].mxu0
        %2108 = vdwg.mxu0
        %v2109 = vsel %vm976, %v2064, -inf
        %2110 = vmax.xlane.f32.xlu0 %v2109
        %v2111 = vpop.xlane.xlu0 %2110
        %v2112 = vsel %vm976, %v2067, -inf
        %2113 = vmax.xlane.f32.xlu0 %v2112
        %v2114 = vpop.xlane.xlu0 %2113
        %v2115 = vsel %vm976, %v2072, -inf
        %2116 = vmax.xlane.f32.xlu0 %v2115
        %v2117 = vpop.xlane.xlu0 %2116
        %v2118 = vsel %vm976, %v2075, -inf
        %2119 = vmax.xlane.f32.xlu0 %v2118
        %v2120 = vpop.xlane.xlu0 %2119
        %v2121 = vsel %vm976, %v2080, -inf
        %2122 = vmax.xlane.f32.xlu0 %v2121
        %v2123 = vpop.xlane.xlu0 %2122
        %v2124 = vsel %vm976, %v2083, -inf
        %2125 = vmax.xlane.f32.xlu0 %v2124
        %v2126 = vpop.xlane.xlu0 %2125
        %v2127 = vsel %vm976, %v2088, -inf
        %2128 = vmax.xlane.f32.xlu0 %v2127
        %v2129 = vpop.xlane.xlu0 %2128
        %v2130 = vsel %vm976, %v2091, -inf
        %2131 = vmax.xlane.f32.xlu0 %v2130
        %v2132 = vpop.xlane.xlu0 %2131
        %v2133 = vsel %vm976, %v2096, -inf
        %2134 = vmax.xlane.f32.xlu0 %v2133
        %v2135 = vpop.xlane.xlu0 %2134
        %v2136 = vsel %vm976, %v2099, -inf
        %2137 = vmax.xlane.f32.xlu0 %v2136
        %v2138 = vpop.xlane.xlu0 %2137
        %v2139 = vsel %vm1007, %v2104, -inf
        %2140 = vmax.xlane.f32.xlu0 %v2139
        %v2141 = vpop.xlane.xlu0 %2140
        %v2142 = vsub.f32 %v2064, %v2111
        %v2143 = vsub.f32 %v2067, %v2114
        %v2144 = vsub.f32 %v2072, %v2117
        %v2145 = vsub.f32 %v2075, %v2120
        %v2146 = vsub.f32 %v2080, %v2123
        %v2147 = vsub.f32 %v2083, %v2126
        %v2148 = vsub.f32 %v2088, %v2129
        %v2149 = vsub.f32 %v2091, %v2132
        %v2150 = vsub.f32 %v2096, %v2135
        %v2151 = vsub.f32 %v2099, %v2138
        %v2152 = vsub.f32 %v2104, %v2141
        %v2153 = vmul.f32 %v2142, 1.442695
        %v2154 = vpow.pop %v2153
        %v2155 = vmul.f32 %v2143, 1.442695
        %v2156 = vpow.pop %v2155
        %v2157 = vmul.f32 %v2144, 1.442695
        %v2158 = vpow.pop %v2157
        %v2159 = vmul.f32 %v2145, 1.442695
        %v2160 = vpow.pop %v2159
        %v2161 = vmul.f32 %v2146, 1.442695
        %v2162 = vpow.pop %v2161
        %v2163 = vmul.f32 %v2147, 1.442695
        %v2164 = vpow.pop %v2163
        %v2165 = vmul.f32 %v2148, 1.442695
        %v2166 = vpow.pop %v2165
        %v2167 = vmul.f32 %v2149, 1.442695
        %v2168 = vpow.pop %v2167
        %v2169 = vmul.f32 %v2150, 1.442695
        %v2170 = vpow.pop %v2169
        %v2171 = vmul.f32 %v2151, 1.442695
        %v2172 = vpow.pop %v2171
        %v2173 = vmul.f32 %v2152, 1.442695
        %v2174 = vpow.pop %v2173
        %v2175 = vsel %vm976, %v2154, 0.0
        %2176 = vadd.xlane.f32.xlu0 %v2175
        %v2177 = vpop.xlane.xlu0 %2176
        %v2178 = vsel %vm976, %v2156, 0.0
        %2179 = vadd.xlane.f32.xlu0 %v2178
        %v2180 = vpop.xlane.xlu0 %2179
        %v2181 = vsel %vm976, %v2158, 0.0
        %2182 = vadd.xlane.f32.xlu0 %v2181
        %v2183 = vpop.xlane.xlu0 %2182
        %v2184 = vsel %vm976, %v2160, 0.0
        %2185 = vadd.xlane.f32.xlu0 %v2184
        %v2186 = vpop.xlane.xlu0 %2185
        %v2187 = vsel %vm976, %v2162, 0.0
        %2188 = vadd.xlane.f32.xlu0 %v2187
        %v2189 = vpop.xlane.xlu0 %2188
        %v2190 = vsel %vm976, %v2164, 0.0
        %2191 = vadd.xlane.f32.xlu0 %v2190
        %v2192 = vpop.xlane.xlu0 %2191
        %v2193 = vsel %vm976, %v2166, 0.0
        %2194 = vadd.xlane.f32.xlu0 %v2193
        %v2195 = vpop.xlane.xlu0 %2194
        %v2196 = vsel %vm976, %v2168, 0.0
        %2197 = vadd.xlane.f32.xlu0 %v2196
        %v2198 = vpop.xlane.xlu0 %2197
        %v2199 = vsel %vm976, %v2170, 0.0
        %2200 = vadd.xlane.f32.xlu0 %v2199
        %v2201 = vpop.xlane.xlu0 %2200
        %v2202 = vsel %vm976, %v2172, 0.0
        %2203 = vadd.xlane.f32.xlu0 %v2202
        %v2204 = vpop.xlane.xlu0 %2203
        %v2205 = vsel %vm1007, %v2174, 0.0
        %2206 = vadd.xlane.f32.xlu0 %v2205
        %v2207 = vpop.xlane.xlu0 %2206
        %v2208 = vrcp.pop %v2177
        %v2209 = vrcp.pop %v2180
        %v2210 = vrcp.pop %v2183
        %v2211 = vrcp.pop %v2186
        %v2212 = vrcp.pop %v2189
        %v2213 = vrcp.pop %v2192
        %v2214 = vrcp.pop %v2195
        %v2215 = vrcp.pop %v2198
        %v2216 = vrcp.pop %v2201
        %v2217 = vrcp.pop %v2204
        %v2218 = vrcp.pop %v2207
        %v2219 = vmul.f32 %v2154, %v2208
        %v2220 = vmul.f32 %v2156, %v2209
        %v2221 = vmul.f32 %v2158, %v2210
        %v2222 = vmul.f32 %v2160, %v2211
        %v2223 = vmul.f32 %v2162, %v2212
        %v2224 = vmul.f32 %v2164, %v2213
        %v2225 = vmul.f32 %v2166, %v2214
        %v2226 = vmul.f32 %v2168, %v2215
        %v2227 = vmul.f32 %v2170, %v2216
        %v2228 = vmul.f32 %v2172, %v2217
        %v2229 = vmul.f32 %v2174, %v2218
        %v2230 = vpack.c.bf16 %v2220, %v2219
        %v2231 = vpack.c.bf16 %v2222, %v2221
        %v2232 = vpack.c.bf16 %v2224, %v2223
        %v2233 = vpack.c.bf16 %v2226, %v2225
        %v2234 = vpack.c.bf16 %v2228, %v2227
        %v2235 = vpack.c.bf16 %v2229, %v2229
        %v2247 = vunpack.c.l.b16 %v1902
        %v2248 = vunpack.c.l.b16 %v1903
        %v2249 = vunpack.c.l.b16 %v1904
        %v2250 = vunpack.c.l.b16 %v1905
        %v2251 = vunpack.c.l.b16 %v1906
        %v2252 = vunpack.c.l.b16 %v1907
        %v2253 = vunpack.c.l.b16 %v1908
        %v2254 = vunpack.c.l.b16 %v1909
        %v2255 = vunpack.c.l.b16 %v1910
        %v2256 = vunpack.c.l.b16 %v1911
        %v2257 = vunpack.c.l.b16 %v1912
        %v2258 = vpack.c.b16 %v2248, %v2247
        %v2259 = vpack.c.b16 %v2250, %v2249
        %v2260 = vpack.c.b16 %v2252, %v2251
        %v2261 = vpack.c.b16 %v2254, %v2253
        %v2262 = vpack.c.b16 %v2256, %v2255
        %v2263 = vpack.c.b16 %v2257, %v2257
        %2264 = vrot.lane.b32.xlu0 %v2258, 64
        %v2265 = vpop.permute.xlu0 %2264
        %2266 = vrot.lane.b32.xlu0 %v2259, 64
        %v2267 = vpop.permute.xlu0 %2266
        %2268 = vrot.lane.b32.xlu0 %v2260, 64
        %v2269 = vpop.permute.xlu0 %2268
        %2270 = vrot.lane.b32.xlu0 %v2261, 64
        %v2271 = vpop.permute.xlu0 %2270
        %2272 = vrot.lane.b32.xlu0 %v2262, 64
        %v2273 = vpop.permute.xlu0 %2272
        %2274 = vrot.lane.b32.xlu0 %v2263, 64
        %v2275 = vpop.permute.xlu0 %2274
        %v2282 = vsel %vm976, %v2230, 0
        %v2285 = vsel %vm976, %v2231, 0
        %v2288 = vsel %vm976, %v2232, 0
        %v2291 = vsel %vm976, %v2233, 0
        %v2294 = vsel %vm976, %v2234, 0
        %v2297 = vsel %vm976, %v2235, 0
        %v2300 = vsel %vm1156, %v2275, 0
        %2302 = vmatprep.subr.bf16.mxu0 0
        %2303 = vmatpush1.bf16.msra.mxu0 %v2265
        %2304 = vmatprep.subr.bf16.mxu0 0
        %2305 = vmatpush1.bf16.msra.mxu0 %v2267
        %2306 = vmatprep.subr.bf16.mxu0 0
        %2307 = vmatpush1.bf16.msra.mxu0 %v2269
        %2308 = vmatprep.subr.bf16.mxu0 0
        %2309 = vmatpush1.bf16.msra.mxu0 %v2271
        %2310 = vmatprep.subr.bf16.mxu0 0
        %2311 = vmatpush1.bf16.msra.mxu0 %v2273
        %2312 = vmatprep.subr.bf16.mxu0 0
        %2313 = vmatpush1.bf16.msra.mxu0 %v2300
        %2314 = vmatprep.subr.bf16.mxu0 0
        %2315 = vmatpush1.bf16.msra.mxu0 0
        %2316 = vmatprep.subr.bf16.mxu0 0
        %2317 = vmatpush1.bf16.msra.mxu0 0
        %2318 = vmatprep.subr.bf16.mxu0 0
        %2319 = vmatpush1.bf16.msra.mxu0 0
        %2320 = vmatprep.subr.bf16.mxu0 0
        %2321 = vmatpush1.bf16.msra.mxu0 0
        %2322 = vmatprep.subr.bf16.mxu0 0
        %2323 = vmatpush1.bf16.msra.mxu0 0
        %2324 = vmatprep.subr.bf16.mxu0 0
        %2325 = vmatpush1.bf16.msra.mxu0 0
        %2326 = vmatprep.subr.bf16.mxu0 0
        %2327 = vmatpush1.bf16.msra.mxu0 0
        %2328 = vmatprep.subr.bf16.mxu0 0
        %2329 = vmatpush1.bf16.msra.mxu0 0
        %2330 = vmatprep.subr.bf16.mxu0 0
        %2331 = vmatpush1.bf16.msra.mxu0 0
        %2332 = vmatprep.subr.bf16.mxu0 0
        %2333 = vmatpush1.bf16.msra.mxu0 0
        %2334 = vmatprep.mubr.bf16.mxu0 0
        %2335 = vmatmul.mubr.bf16.gmra.mrb[0].mxu0 %v2282
        %v2336 = vpop.f32.mrb[0].mxu0
        %v2337 = vadd.f32 0.0, %v2336
        %v2338 = vpop.f32.mrb[0].mxu0
        %v2339 = vpop.f32.mrb[0].mxu0
        %v2340 = vadd.f32 0.0, %v2339
        %v2341 = vpop.f32.mrb[0].mxu0
        %2342 = vmatprep.mubr.bf16.mxu0 0
        %2343 = vmatmul.mubr.bf16.gmra.mrb[0].mxu0 %v2285
        %v2344 = vpop.f32.mrb[0].mxu0
        %v2345 = vadd.f32 0.0, %v2344
        %v2346 = vpop.f32.mrb[0].mxu0
        %v2347 = vpop.f32.mrb[0].mxu0
        %v2348 = vadd.f32 0.0, %v2347
        %v2349 = vpop.f32.mrb[0].mxu0
        %2350 = vmatprep.mubr.bf16.mxu0 0
        %2351 = vmatmul.mubr.bf16.gmra.mrb[0].mxu0 %v2288
        %v2352 = vpop.f32.mrb[0].mxu0
        %v2353 = vadd.f32 0.0, %v2352
        %v2354 = vpop.f32.mrb[0].mxu0
        %v2355 = vpop.f32.mrb[0].mxu0
        %v2356 = vadd.f32 0.0, %v2355
        %v2357 = vpop.f32.mrb[0].mxu0
        %2358 = vmatprep.mubr.bf16.mxu0 0
        %2359 = vmatmul.mubr.bf16.gmra.mrb[0].mxu0 %v2291
        %v2360 = vpop.f32.mrb[0].mxu0
        %v2361 = vadd.f32 0.0, %v2360
        %v2362 = vpop.f32.mrb[0].mxu0
        %v2363 = vpop.f32.mrb[0].mxu0
        %v2364 = vadd.f32 0.0, %v2363
        %v2365 = vpop.f32.mrb[0].mxu0
        %2366 = vmatprep.mubr.bf16.mxu0 0
        %2367 = vmatmul.mubr.bf16.gmra.mrb[0].mxu0 %v2294
        %v2368 = vpop.f32.mrb[0].mxu0
        %v2369 = vadd.f32 0.0, %v2368
        %v2370 = vpop.f32.mrb[0].mxu0
        %v2371 = vpop.f32.mrb[0].mxu0
        %v2372 = vadd.f32 0.0, %v2371
        %v2373 = vpop.f32.mrb[0].mxu0
        %2374 = vmatprep.mubr.bf16.mxu0 0
        %2375 = vmatmul.mubr.bf16.gmra.mrb[0].mxu0 %v2297
        %v2376 = vpop.f32.mrb[0].mxu0
        %v2377 = vadd.f32 0.0, %v2376
        %v2378 = vpop.f32.mrb[0].mxu0
        %v2379 = vpop.f32.mrb[0].mxu0
        %v2380 = vpop.f32.mrb[0].mxu0
        %2381 = vdwg.mxu0
        %v2382 = vpack.c.bf16 %v2340, %v2337
        %v2383 = vpack.c.bf16 %v2348, %v2345
        %v2384 = vpack.c.bf16 %v2356, %v2353
        %v2385 = vpack.c.bf16 %v2364, %v2361
        %v2386 = vpack.c.bf16 %v2372, %v2369
        %v2387 = vpack.c.bf16 %v2377, %v2377
        %v2394 = vunpack.c.l.b16 %v2382
        %v2395 = vunpack.c.h.b16 %v2382
        %v2396 = vunpack.c.l.b16 %v2383
        %v2397 = vunpack.c.h.b16 %v2383
        %v2398 = vunpack.c.l.b16 %v2384
        %v2399 = vunpack.c.h.b16 %v2384
        %v2400 = vunpack.c.l.b16 %v2385
        %v2401 = vunpack.c.h.b16 %v2385
        %v2402 = vunpack.c.l.b16 %v2386
        %v2403 = vunpack.c.h.b16 %v2386
        %v2404 = vunpack.c.l.b16 %v2387
        %v2405 = vpack.c.b16 %v2394, %v2394
        %v2406 = vpack.c.b16 %v2395, %v2395
        %v2407 = vpack.c.b16 %v2396, %v2396
        %v2408 = vpack.c.b16 %v2397, %v2397
        %v2409 = vpack.c.b16 %v2398, %v2398
        %v2410 = vpack.c.b16 %v2399, %v2399
        %v2411 = vpack.c.b16 %v2400, %v2400
        %v2412 = vpack.c.b16 %v2401, %v2401
        %v2413 = vpack.c.b16 %v2402, %v2402
        %v2414 = vpack.c.b16 %v2403, %v2403
        %v2415 = vpack.c.b16 %v2404, %v2404
        %2416 = vrot.lane.b32.xlu0 %v2405, 64
        %v2417 = vpop.permute.xlu0 %2416
        %2418 = vrot.lane.b32.xlu0 %v2406, 64
        %v2419 = vpop.permute.xlu0 %2418
        %2420 = vrot.lane.b32.xlu0 %v2407, 64
        %v2421 = vpop.permute.xlu0 %2420
        %2422 = vrot.lane.b32.xlu0 %v2408, 64
        %v2423 = vpop.permute.xlu0 %2422
        %2424 = vrot.lane.b32.xlu0 %v2409, 64
        %v2425 = vpop.permute.xlu0 %2424
        %2426 = vrot.lane.b32.xlu0 %v2410, 64
        %v2427 = vpop.permute.xlu0 %2426
        %2428 = vrot.lane.b32.xlu0 %v2411, 64
        %v2429 = vpop.permute.xlu0 %2428
        %2430 = vrot.lane.b32.xlu0 %v2412, 64
        %v2431 = vpop.permute.xlu0 %2430
        %2432 = vrot.lane.b32.xlu0 %v2413, 64
        %v2433 = vpop.permute.xlu0 %2432
        %2434 = vrot.lane.b32.xlu0 %v2414, 64
        %v2435 = vpop.permute.xlu0 %2434
        %2436 = vrot.lane.b32.xlu0 %v2415, 64
        %v2437 = vpop.permute.xlu0 %2436
        %vm2449 = vcmask 781824
        %2450 = vst.msk [vmem:[#allocation4] sm:$0xf] %vm2449, %v2417
        %2451 = vst.msk [vmem:[#allocation4 + $0x4] sm:$0xf] %vm2449, %v2419
        %2452 = vst.msk [vmem:[#allocation4 + $0x8] sm:$0xf] %vm2449, %v2421
        %2453 = vst.msk [vmem:[#allocation4 + $0xc] sm:$0xf] %vm2449, %v2423
        %2454 = vst.msk [vmem:[#allocation4 + $0x10] sm:$0xf] %vm2449, %v2425
        %2455 = vst.msk [vmem:[#allocation4 + $0x14] sm:$0xf] %vm2449, %v2427
        %2456 = vst.msk [vmem:[#allocation4 + $0x18] sm:$0xf] %vm2449, %v2429
        %2457 = vst.msk [vmem:[#allocation4 + $0x1c] sm:$0xf] %vm2449, %v2431
        %2458 = vst.msk [vmem:[#allocation4 + $0x20] sm:$0xf] %vm2449, %v2433
        %2459 = vst.msk [vmem:[#allocation4 + $0x24] sm:$0xf] %vm2449, %v2435
        %vm2460 = vcmask 778752
        %2461 = vst.msk [vmem:[#allocation4 + $0x28] sm:$0x1] %vm2460, %v2437
        %v2462 = vld [vmem:[#allocation3] sm:$0xf]
        %v2463 = vld [vmem:[#allocation3 + $0xc] sm:$0xf]
        %v2464 = vld [vmem:[#allocation3 + $0x18] sm:$0xf]
        %v2465 = vld [vmem:[#allocation3 + $0x24] sm:$0xf]
        %v2466 = vld [vmem:[#allocation3 + $0x30] sm:$0xf]
        %v2467 = vld [vmem:[#allocation3 + $0x3c] sm:$0xf]
        %v2468 = vld [vmem:[#allocation3 + $0x48] sm:$0xf]
        %v2469 = vld [vmem:[#allocation3 + $0x54] sm:$0xf]
        %v2470 = vld [vmem:[#allocation3 + $0x60] sm:$0xf]
        %v2471 = vld [vmem:[#allocation3 + $0x6c] sm:$0xf]
        %v2472 = vld [vmem:[#allocation3 + $0x78] sm:$0x1]
        %v2473 = vld [vmem:[#allocation3 + $0x4] sm:$0xf]
        %v2474 = vld [vmem:[#allocation3 + $0x10] sm:$0xf]
        %v2475 = vld [vmem:[#allocation3 + $0x1c] sm:$0xf]
        %v2476 = vld [vmem:[#allocation3 + $0x28] sm:$0xf]
        %v2477 = vld [vmem:[#allocation3 + $0x34] sm:$0xf]
        %v2478 = vld [vmem:[#allocation3 + $0x40] sm:$0xf]
        %v2479 = vld [vmem:[#allocation3 + $0x4c] sm:$0xf]
        %v2480 = vld [vmem:[#allocation3 + $0x58] sm:$0xf]
        %v2481 = vld [vmem:[#allocation3 + $0x64] sm:$0xf]
        %v2482 = vld [vmem:[#allocation3 + $0x70] sm:$0xf]
        %v2483 = vld [vmem:[#allocation3 + $0x7c] sm:$0x1]
        %v2484 = vld [vmem:[#allocation3 + $0x8] sm:$0xf]
        %v2485 = vld [vmem:[#allocation3 + $0x14] sm:$0xf]
        %v2486 = vld [vmem:[#allocation3 + $0x20] sm:$0xf]
        %v2487 = vld [vmem:[#allocation3 + $0x2c] sm:$0xf]
        %v2488 = vld [vmem:[#allocation3 + $0x38] sm:$0xf]
        %v2489 = vld [vmem:[#allocation3 + $0x44] sm:$0xf]
        %v2490 = vld [vmem:[#allocation3 + $0x50] sm:$0xf]
        %v2491 = vld [vmem:[#allocation3 + $0x5c] sm:$0xf]
        %v2492 = vld [vmem:[#allocation3 + $0x68] sm:$0xf]
        %v2493 = vld [vmem:[#allocation3 + $0x74] sm:$0xf]
        %v2494 = vld [vmem:[#allocation3 + $0x80] sm:$0x1]
        %v2506 = vunpack.c.l.b16 %v2462
        %v2507 = vunpack.c.l.b16 %v2463
        %v2508 = vunpack.c.l.b16 %v2464
        %v2509 = vunpack.c.l.b16 %v2465
        %v2510 = vunpack.c.l.b16 %v2466
        %v2511 = vunpack.c.l.b16 %v2467
        %v2512 = vunpack.c.l.b16 %v2468
        %v2513 = vunpack.c.l.b16 %v2469
        %v2514 = vunpack.c.l.b16 %v2470
        %v2515 = vunpack.c.l.b16 %v2471
        %v2516 = vunpack.c.l.b16 %v2472
        %v2517 = vpack.c.b16 %v2507, %v2506
        %v2518 = vpack.c.b16 %v2509, %v2508
        %v2519 = vpack.c.b16 %v2511, %v2510
        %v2520 = vpack.c.b16 %v2513, %v2512
        %v2521 = vpack.c.b16 %v2515, %v2514
        %v2522 = vpack.c.b16 %v2516, %v2516
        %2523 = vrot.lane.b32.xlu0 %v2517, 32
        %v2524 = vpop.permute.xlu0 %2523
        %2525 = vrot.lane.b32.xlu0 %v2518, 32
        %v2526 = vpop.permute.xlu0 %2525
        %2527 = vrot.lane.b32.xlu0 %v2519, 32
        %v2528 = vpop.permute.xlu0 %2527
        %2529 = vrot.lane.b32.xlu0 %v2520, 32
        %v2530 = vpop.permute.xlu0 %2529
        %2531 = vrot.lane.b32.xlu0 %v2521, 32
        %v2532 = vpop.permute.xlu0 %2531
        %2533 = vrot.lane.b32.xlu0 %v2522, 32
        %v2534 = vpop.permute.xlu0 %2533
        %v2546 = vunpack.c.l.b16 %v2473
        %v2547 = vunpack.c.l.b16 %v2474
        %v2548 = vunpack.c.l.b16 %v2475
        %v2549 = vunpack.c.l.b16 %v2476
        %v2550 = vunpack.c.l.b16 %v2477
        %v2551 = vunpack.c.l.b16 %v2478
        %v2552 = vunpack.c.l.b16 %v2479
        %v2553 = vunpack.c.l.b16 %v2480
        %v2554 = vunpack.c.l.b16 %v2481
        %v2555 = vunpack.c.l.b16 %v2482
        %v2556 = vunpack.c.l.b16 %v2483
        %v2557 = vpack.c.b16 %v2547, %v2546
        %v2558 = vpack.c.b16 %v2549, %v2548
        %v2559 = vpack.c.b16 %v2551, %v2550
        %v2560 = vpack.c.b16 %v2553, %v2552
        %v2561 = vpack.c.b16 %v2555, %v2554
        %v2562 = vpack.c.b16 %v2556, %v2556
        %2563 = vrot.lane.b32.xlu0 %v2557, 32
        %v2564 = vpop.permute.xlu0 %2563
        %2565 = vrot.lane.b32.xlu0 %v2558, 32
        %v2566 = vpop.permute.xlu0 %2565
        %2567 = vrot.lane.b32.xlu0 %v2559, 32
        %v2568 = vpop.permute.xlu0 %2567
        %2569 = vrot.lane.b32.xlu0 %v2560, 32
        %v2570 = vpop.permute.xlu0 %2569
        %2571 = vrot.lane.b32.xlu0 %v2561, 32
        %v2572 = vpop.permute.xlu0 %2571
        %2573 = vrot.lane.b32.xlu0 %v2562, 32
        %v2574 = vpop.permute.xlu0 %2573
        %v2576 = vsel %vm859, %v2524, 0
        %v2579 = vsel %vm859, %v2526, 0
        %v2582 = vsel %vm859, %v2528, 0
        %v2585 = vsel %vm859, %v2530, 0
        %v2588 = vsel %vm859, %v2532, 0
        %v2591 = vsel %vm859, %v2534, 0
        %v2594 = vsel %vm859, %v2564, 0
        %v2597 = vsel %vm859, %v2566, 0
        %v2600 = vsel %vm859, %v2568, 0
        %v2603 = vsel %vm859, %v2570, 0
        %v2606 = vsel %vm859, %v2572, 0
        %v2609 = vsel %vm859, %v2574, 0
        %2611 = vmatprep.subr.bf16.mxu0 0
        %2612 = vmatpush1.bf16.xpose.msra.mxu0 %v2594
        %2613 = vmatprep.subr.bf16.mxu0 0
        %2614 = vmatpush1.bf16.xpose.msra.mxu0 %v2597
        %2615 = vmatprep.subr.bf16.mxu0 0
        %2616 = vmatpush1.bf16.xpose.msra.mxu0 %v2600
        %2617 = vmatprep.subr.bf16.mxu0 0
        %2618 = vmatpush1.bf16.xpose.msra.mxu0 %v2603
        %2619 = vmatprep.subr.bf16.mxu0 0
        %2620 = vmatpush1.bf16.xpose.msra.mxu0 %v2606
        %2621 = vmatprep.subr.bf16.mxu0 0
        %2622 = vmatpush1.bf16.xpose.msra.mxu0 %v2609
        %2623 = vmatprep.subr.bf16.mxu0 0
        %2624 = vmatpush1.bf16.xpose.msra.mxu0 0
        %2625 = vmatprep.subr.bf16.mxu0 0
        %2626 = vmatpush1.bf16.xpose.msra.mxu0 0
        %2627 = vmatprep.subr.bf16.mxu0 0
        %2628 = vmatpush1.bf16.xpose.msra.mxu0 0
        %2629 = vmatprep.subr.bf16.mxu0 0
        %2630 = vmatpush1.bf16.xpose.msra.mxu0 0
        %2631 = vmatprep.subr.bf16.mxu0 0
        %2632 = vmatpush1.bf16.xpose.msra.mxu0 0
        %2633 = vmatprep.subr.bf16.mxu0 0
        %2634 = vmatpush1.bf16.xpose.msra.mxu0 0
        %2635 = vmatprep.subr.bf16.mxu0 0
        %2636 = vmatpush1.bf16.xpose.msra.mxu0 0
        %2637 = vmatprep.subr.bf16.mxu0 0
        %2638 = vmatpush1.bf16.xpose.msra.mxu0 0
        %2639 = vmatprep.subr.bf16.mxu0 0
        %2640 = vmatpush1.bf16.xpose.msra.mxu0 0
        %2641 = vmatprep.subr.bf16.mxu0 0
        %2642 = vmatpush1.bf16.xpose.msra.mxu0 0
        %2643 = vmatprep.mubr.bf16.mxu0 0
        %2644 = vmatmul.mubr.bf16.gmra.mrb[0].mxu0 %v2576
        %v2645 = vpop.f32.mrb[0].mxu0
        %v2646 = vadd.f32 0.0, %v2645
        %v2647 = vpop.f32.mrb[0].mxu0
        %v2648 = vpop.f32.mrb[0].mxu0
        %v2649 = vadd.f32 0.0, %v2648
        %v2650 = vpop.f32.mrb[0].mxu0
        %2651 = vmatprep.mubr.bf16.mxu0 0
        %2652 = vmatmul.mubr.bf16.gmra.mrb[0].mxu0 %v2579
        %v2653 = vpop.f32.mrb[0].mxu0
        %v2654 = vadd.f32 0.0, %v2653
        %v2655 = vpop.f32.mrb[0].mxu0
        %v2656 = vpop.f32.mrb[0].mxu0
        %v2657 = vadd.f32 0.0, %v2656
        %v2658 = vpop.f32.mrb[0].mxu0
        %2659 = vmatprep.mubr.bf16.mxu0 0
        %2660 = vmatmul.mubr.bf16.gmra.mrb[0].mxu0 %v2582
        %v2661 = vpop.f32.mrb[0].mxu0
        %v2662 = vadd.f32 0.0, %v2661
        %v2663 = vpop.f32.mrb[0].mxu0
        %v2664 = vpop.f32.mrb[0].mxu0
        %v2665 = vadd.f32 0.0, %v2664
        %v2666 = vpop.f32.mrb[0].mxu0
        %2667 = vmatprep.mubr.bf16.mxu0 0
        %2668 = vmatmul.mubr.bf16.gmra.mrb[0].mxu0 %v2585
        %v2669 = vpop.f32.mrb[0].mxu0
        %v2670 = vadd.f32 0.0, %v2669
        %v2671 = vpop.f32.mrb[0].mxu0
        %v2672 = vpop.f32.mrb[0].mxu0
        %v2673 = vadd.f32 0.0, %v2672
        %v2674 = vpop.f32.mrb[0].mxu0
        %2675 = vmatprep.mubr.bf16.mxu0 0
        %2676 = vmatmul.mubr.bf16.gmra.mrb[0].mxu0 %v2588
        %v2677 = vpop.f32.mrb[0].mxu0
        %v2678 = vadd.f32 0.0, %v2677
        %v2679 = vpop.f32.mrb[0].mxu0
        %v2680 = vpop.f32.mrb[0].mxu0
        %v2681 = vadd.f32 0.0, %v2680
        %v2682 = vpop.f32.mrb[0].mxu0
        %2683 = vmatprep.mubr.bf16.mxu0 0
        %2684 = vmatmul.mubr.bf16.gmra.mrb[0].mxu0 %v2591
        %v2685 = vpop.f32.mrb[0].mxu0
        %v2686 = vadd.f32 0.0, %v2685
        %v2687 = vpop.f32.mrb[0].mxu0
        %v2688 = vpop.f32.mrb[0].mxu0
        %v2689 = vpop.f32.mrb[0].mxu0
        %2690 = vdwg.mxu0
        %v2691 = vsel %vm976, %v2646, -inf
        %2692 = vmax.xlane.f32.xlu0 %v2691
        %v2693 = vpop.xlane.xlu0 %2692
        %v2694 = vsel %vm976, %v2649, -inf
        %2695 = vmax.xlane.f32.xlu0 %v2694
        %v2696 = vpop.xlane.xlu0 %2695
        %v2697 = vsel %vm976, %v2654, -inf
        %2698 = vmax.xlane.f32.xlu0 %v2697
        %v2699 = vpop.xlane.xlu0 %2698
        %v2700 = vsel %vm976, %v2657, -inf
        %2701 = vmax.xlane.f32.xlu0 %v2700
        %v2702 = vpop.xlane.xlu0 %2701
        %v2703 = vsel %vm976, %v2662, -inf
        %2704 = vmax.xlane.f32.xlu0 %v2703
        %v2705 = vpop.xlane.xlu0 %2704
        %v2706 = vsel %vm976, %v2665, -inf
        %2707 = vmax.xlane.f32.xlu0 %v2706
        %v2708 = vpop.xlane.xlu0 %2707
        %v2709 = vsel %vm976, %v2670, -inf
        %2710 = vmax.xlane.f32.xlu0 %v2709
        %v2711 = vpop.xlane.xlu0 %2710
        %v2712 = vsel %vm976, %v2673, -inf
        %2713 = vmax.xlane.f32.xlu0 %v2712
        %v2714 = vpop.xlane.xlu0 %2713
        %v2715 = vsel %vm976, %v2678, -inf
        %2716 = vmax.xlane.f32.xlu0 %v2715
        %v2717 = vpop.xlane.xlu0 %2716
        %v2718 = vsel %vm976, %v2681, -inf
        %2719 = vmax.xlane.f32.xlu0 %v2718
        %v2720 = vpop.xlane.xlu0 %2719
        %v2721 = vsel %vm1007, %v2686, -inf
        %2722 = vmax.xlane.f32.xlu0 %v2721
        %v2723 = vpop.xlane.xlu0 %2722
        %v2724 = vsub.f32 %v2646, %v2693
        %v2725 = vsub.f32 %v2649, %v2696
        %v2726 = vsub.f32 %v2654, %v2699
        %v2727 = vsub.f32 %v2657, %v2702
        %v2728 = vsub.f32 %v2662, %v2705
        %v2729 = vsub.f32 %v2665, %v2708
        %v2730 = vsub.f32 %v2670, %v2711
        %v2731 = vsub.f32 %v2673, %v2714
        %v2732 = vsub.f32 %v2678, %v2717
        %v2733 = vsub.f32 %v2681, %v2720
        %v2734 = vsub.f32 %v2686, %v2723
        %v2735 = vmul.f32 %v2724, 1.442695
        %v2736 = vpow.pop %v2735
        %v2737 = vmul.f32 %v2725, 1.442695
        %v2738 = vpow.pop %v2737
        %v2739 = vmul.f32 %v2726, 1.442695
        %v2740 = vpow.pop %v2739
        %v2741 = vmul.f32 %v2727, 1.442695
        %v2742 = vpow.pop %v2741
        %v2743 = vmul.f32 %v2728, 1.442695
        %v2744 = vpow.pop %v2743
        %v2745 = vmul.f32 %v2729, 1.442695
        %v2746 = vpow.pop %v2745
        %v2747 = vmul.f32 %v2730, 1.442695
        %v2748 = vpow.pop %v2747
        %v2749 = vmul.f32 %v2731, 1.442695
        %v2750 = vpow.pop %v2749
        %v2751 = vmul.f32 %v2732, 1.442695
        %v2752 = vpow.pop %v2751
        %v2753 = vmul.f32 %v2733, 1.442695
        %v2754 = vpow.pop %v2753
        %v2755 = vmul.f32 %v2734, 1.442695
        %v2756 = vpow.pop %v2755
        %v2757 = vsel %vm976, %v2736, 0.0
        %2758 = vadd.xlane.f32.xlu0 %v2757
        %v2759 = vpop.xlane.xlu0 %2758
        %v2760 = vsel %vm976, %v2738, 0.0
        %2761 = vadd.xlane.f32.xlu0 %v2760
        %v2762 = vpop.xlane.xlu0 %2761
        %v2763 = vsel %vm976, %v2740, 0.0
        %2764 = vadd.xlane.f32.xlu0 %v2763
        %v2765 = vpop.xlane.xlu0 %2764
        %v2766 = vsel %vm976, %v2742, 0.0
        %2767 = vadd.xlane.f32.xlu0 %v2766
        %v2768 = vpop.xlane.xlu0 %2767
        %v2769 = vsel %vm976, %v2744, 0.0
        %2770 = vadd.xlane.f32.xlu0 %v2769
        %v2771 = vpop.xlane.xlu0 %2770
        %v2772 = vsel %vm976, %v2746, 0.0
        %2773 = vadd.xlane.f32.xlu0 %v2772
        %v2774 = vpop.xlane.xlu0 %2773
        %v2775 = vsel %vm976, %v2748, 0.0
        %2776 = vadd.xlane.f32.xlu0 %v2775
        %v2777 = vpop.xlane.xlu0 %2776
        %v2778 = vsel %vm976, %v2750, 0.0
        %2779 = vadd.xlane.f32.xlu0 %v2778
        %v2780 = vpop.xlane.xlu0 %2779
        %v2781 = vsel %vm976, %v2752, 0.0
        %2782 = vadd.xlane.f32.xlu0 %v2781
        %v2783 = vpop.xlane.xlu0 %2782
        %v2784 = vsel %vm976, %v2754, 0.0
        %2785 = vadd.xlane.f32.xlu0 %v2784
        %v2786 = vpop.xlane.xlu0 %2785
        %v2787 = vsel %vm1007, %v2756, 0.0
        %2788 = vadd.xlane.f32.xlu0 %v2787
        %v2789 = vpop.xlane.xlu0 %2788
        %v2790 = vrcp.pop %v2759
        %v2791 = vrcp.pop %v2762
        %v2792 = vrcp.pop %v2765
        %v2793 = vrcp.pop %v2768
        %v2794 = vrcp.pop %v2771
        %v2795 = vrcp.pop %v2774
        %v2796 = vrcp.pop %v2777
        %v2797 = vrcp.pop %v2780
        %v2798 = vrcp.pop %v2783
        %v2799 = vrcp.pop %v2786
        %v2800 = vrcp.pop %v2789
        %v2801 = vmul.f32 %v2736, %v2790
        %v2802 = vmul.f32 %v2738, %v2791
        %v2803 = vmul.f32 %v2740, %v2792
        %v2804 = vmul.f32 %v2742, %v2793
        %v2805 = vmul.f32 %v2744, %v2794
        %v2806 = vmul.f32 %v2746, %v2795
        %v2807 = vmul.f32 %v2748, %v2796
        %v2808 = vmul.f32 %v2750, %v2797
        %v2809 = vmul.f32 %v2752, %v2798
        %v2810 = vmul.f32 %v2754, %v2799
        %v2811 = vmul.f32 %v2756, %v2800
        %v2812 = vpack.c.bf16 %v2802, %v2801
        %v2813 = vpack.c.bf16 %v2804, %v2803
        %v2814 = vpack.c.bf16 %v2806, %v2805
        %v2815 = vpack.c.bf16 %v2808, %v2807
        %v2816 = vpack.c.bf16 %v2810, %v2809
        %v2817 = vpack.c.bf16 %v2811, %v2811
        %v2829 = vunpack.c.l.b16 %v2484
        %v2830 = vunpack.c.l.b16 %v2485
        %v2831 = vunpack.c.l.b16 %v2486
        %v2832 = vunpack.c.l.b16 %v2487
        %v2833 = vunpack.c.l.b16 %v2488
        %v2834 = vunpack.c.l.b16 %v2489
        %v2835 = vunpack.c.l.b16 %v2490
        %v2836 = vunpack.c.l.b16 %v2491
        %v2837 = vunpack.c.l.b16 %v2492
        %v2838 = vunpack.c.l.b16 %v2493
        %v2839 = vunpack.c.l.b16 %v2494
        %v2840 = vpack.c.b16 %v2830, %v2829
        %v2841 = vpack.c.b16 %v2832, %v2831
        %v2842 = vpack.c.b16 %v2834, %v2833
        %v2843 = vpack.c.b16 %v2836, %v2835
        %v2844 = vpack.c.b16 %v2838, %v2837
        %v2845 = vpack.c.b16 %v2839, %v2839
        %2846 = vrot.lane.b32.xlu0 %v2840, 32
        %v2847 = vpop.permute.xlu0 %2846
        %2848 = vrot.lane.b32.xlu0 %v2841, 32
        %v2849 = vpop.permute.xlu0 %2848
        %2850 = vrot.lane.b32.xlu0 %v2842, 32
        %v2851 = vpop.permute.xlu0 %2850
        %2852 = vrot.lane.b32.xlu0 %v2843, 32
        %v2853 = vpop.permute.xlu0 %2852
        %2854 = vrot.lane.b32.xlu0 %v2844, 32
        %v2855 = vpop.permute.xlu0 %2854
        %2856 = vrot.lane.b32.xlu0 %v2845, 32
        %v2857 = vpop.permute.xlu0 %2856
        %v2864 = vsel %vm976, %v2812, 0
        %v2867 = vsel %vm976, %v2813, 0
        %v2870 = vsel %vm976, %v2814, 0
        %v2873 = vsel %vm976, %v2815, 0
        %v2876 = vsel %vm976, %v2816, 0
        %v2879 = vsel %vm976, %v2817, 0
        %v2882 = vsel %vm1156, %v2857, 0
        %2884 = vmatprep.subr.bf16.mxu0 0
        %2885 = vmatpush1.bf16.msra.mxu0 %v2847
        %2886 = vmatprep.subr.bf16.mxu0 0
        %2887 = vmatpush1.bf16.msra.mxu0 %v2849
        %2888 = vmatprep.subr.bf16.mxu0 0
        %2889 = vmatpush1.bf16.msra.mxu0 %v2851
        %2890 = vmatprep.subr.bf16.mxu0 0
        %2891 = vmatpush1.bf16.msra.mxu0 %v2853
        %2892 = vmatprep.subr.bf16.mxu0 0
        %2893 = vmatpush1.bf16.msra.mxu0 %v2855
        %2894 = vmatprep.subr.bf16.mxu0 0
        %2895 = vmatpush1.bf16.msra.mxu0 %v2882
        %2896 = vmatprep.subr.bf16.mxu0 0
        %2897 = vmatpush1.bf16.msra.mxu0 0
        %2898 = vmatprep.subr.bf16.mxu0 0
        %2899 = vmatpush1.bf16.msra.mxu0 0
        %2900 = vmatprep.subr.bf16.mxu0 0
        %2901 = vmatpush1.bf16.msra.mxu0 0
        %2902 = vmatprep.subr.bf16.mxu0 0
        %2903 = vmatpush1.bf16.msra.mxu0 0
        %2904 = vmatprep.subr.bf16.mxu0 0
        %2905 = vmatpush1.bf16.msra.mxu0 0
        %2906 = vmatprep.subr.bf16.mxu0 0
        %2907 = vmatpush1.bf16.msra.mxu0 0
        %2908 = vmatprep.subr.bf16.mxu0 0
        %2909 = vmatpush1.bf16.msra.mxu0 0
        %2910 = vmatprep.subr.bf16.mxu0 0
        %2911 = vmatpush1.bf16.msra.mxu0 0
        %2912 = vmatprep.subr.bf16.mxu0 0
        %2913 = vmatpush1.bf16.msra.mxu0 0
        %2914 = vmatprep.subr.bf16.mxu0 0
        %2915 = vmatpush1.bf16.msra.mxu0 0
        %2916 = vmatprep.mubr.bf16.mxu0 0
        %2917 = vmatmul.mubr.bf16.gmra.mrb[0].mxu0 %v2864
        %v2918 = vpop.f32.mrb[0].mxu0
        %v2919 = vadd.f32 0.0, %v2918
        %v2920 = vpop.f32.mrb[0].mxu0
        %v2921 = vpop.f32.mrb[0].mxu0
        %v2922 = vadd.f32 0.0, %v2921
        %v2923 = vpop.f32.mrb[0].mxu0
        %2924 = vmatprep.mubr.bf16.mxu0 0
        %2925 = vmatmul.mubr.bf16.gmra.mrb[0].mxu0 %v2867
        %v2926 = vpop.f32.mrb[0].mxu0
        %v2927 = vadd.f32 0.0, %v2926
        %v2928 = vpop.f32.mrb[0].mxu0
        %v2929 = vpop.f32.mrb[0].mxu0
        %v2930 = vadd.f32 0.0, %v2929
        %v2931 = vpop.f32.mrb[0].mxu0
        %2932 = vmatprep.mubr.bf16.mxu0 0
        %2933 = vmatmul.mubr.bf16.gmra.mrb[0].mxu0 %v2870
        %v2934 = vpop.f32.mrb[0].mxu0
        %v2935 = vadd.f32 0.0, %v2934
        %v2936 = vpop.f32.mrb[0].mxu0
        %v2937 = vpop.f32.mrb[0].mxu0
        %v2938 = vadd.f32 0.0, %v2937
        %v2939 = vpop.f32.mrb[0].mxu0
        %2940 = vmatprep.mubr.bf16.mxu0 0
        %2941 = vmatmul.mubr.bf16.gmra.mrb[0].mxu0 %v2873
        %v2942 = vpop.f32.mrb[0].mxu0
        %v2943 = vadd.f32 0.0, %v2942
        %v2944 = vpop.f32.mrb[0].mxu0
        %v2945 = vpop.f32.mrb[0].mxu0
        %v2946 = vadd.f32 0.0, %v2945
        %v2947 = vpop.f32.mrb[0].mxu0
        %2948 = vmatprep.mubr.bf16.mxu0 0
        %2949 = vmatmul.mubr.bf16.gmra.mrb[0].mxu0 %v2876
        %v2950 = vpop.f32.mrb[0].mxu0
        %v2951 = vadd.f32 0.0, %v2950
        %v2952 = vpop.f32.mrb[0].mxu0
        %v2953 = vpop.f32.mrb[0].mxu0
        %v2954 = vadd.f32 0.0, %v2953
        %v2955 = vpop.f32.mrb[0].mxu0
        %2956 = vmatprep.mubr.bf16.mxu0 0
        %2957 = vmatmul.mubr.bf16.gmra.mrb[0].mxu0 %v2879
        %v2958 = vpop.f32.mrb[0].mxu0
        %v2959 = vadd.f32 0.0, %v2958
        %v2960 = vpop.f32.mrb[0].mxu0
        %v2961 = vpop.f32.mrb[0].mxu0
        %v2962 = vpop.f32.mrb[0].mxu0
        %2963 = vdwg.mxu0
        %v2964 = vpack.c.bf16 %v2922, %v2919
        %v2965 = vpack.c.bf16 %v2930, %v2927
        %v2966 = vpack.c.bf16 %v2938, %v2935
        %v2967 = vpack.c.bf16 %v2946, %v2943
        %v2968 = vpack.c.bf16 %v2954, %v2951
        %v2969 = vpack.c.bf16 %v2959, %v2959
        %v2976 = vunpack.c.l.b16 %v2964
        %v2977 = vunpack.c.h.b16 %v2964
        %v2978 = vunpack.c.l.b16 %v2965
        %v2979 = vunpack.c.h.b16 %v2965
        %v2980 = vunpack.c.l.b16 %v2966
        %v2981 = vunpack.c.h.b16 %v2966
        %v2982 = vunpack.c.l.b16 %v2967
        %v2983 = vunpack.c.h.b16 %v2967
        %v2984 = vunpack.c.l.b16 %v2968
        %v2985 = vunpack.c.h.b16 %v2968
        %v2986 = vunpack.c.l.b16 %v2969
        %v2987 = vpack.c.b16 %v2976, %v2976
        %v2988 = vpack.c.b16 %v2977, %v2977
        %v2989 = vpack.c.b16 %v2978, %v2978
        %v2990 = vpack.c.b16 %v2979, %v2979
        %v2991 = vpack.c.b16 %v2980, %v2980
        %v2992 = vpack.c.b16 %v2981, %v2981
        %v2993 = vpack.c.b16 %v2982, %v2982
        %v2994 = vpack.c.b16 %v2983, %v2983
        %v2995 = vpack.c.b16 %v2984, %v2984
        %v2996 = vpack.c.b16 %v2985, %v2985
        %v2997 = vpack.c.b16 %v2986, %v2986
        %2998 = vrot.lane.b32.xlu0 %v2987, 96
        %v2999 = vpop.permute.xlu0 %2998
        %3000 = vrot.lane.b32.xlu0 %v2988, 96
        %v3001 = vpop.permute.xlu0 %3000
        %3002 = vrot.lane.b32.xlu0 %v2989, 96
        %v3003 = vpop.permute.xlu0 %3002
        %3004 = vrot.lane.b32.xlu0 %v2990, 96
        %v3005 = vpop.permute.xlu0 %3004
        %3006 = vrot.lane.b32.xlu0 %v2991, 96
        %v3007 = vpop.permute.xlu0 %3006
        %3008 = vrot.lane.b32.xlu0 %v2992, 96
        %v3009 = vpop.permute.xlu0 %3008
        %3010 = vrot.lane.b32.xlu0 %v2993, 96
        %v3011 = vpop.permute.xlu0 %3010
        %3012 = vrot.lane.b32.xlu0 %v2994, 96
        %v3013 = vpop.permute.xlu0 %3012
        %3014 = vrot.lane.b32.xlu0 %v2995, 96
        %v3015 = vpop.permute.xlu0 %3014
        %3016 = vrot.lane.b32.xlu0 %v2996, 96
        %v3017 = vpop.permute.xlu0 %3016
        %3018 = vrot.lane.b32.xlu0 %v2997, 96
        %v3019 = vpop.permute.xlu0 %3018
        %vm3031 = vcmask 1044224
        %3032 = vst.msk [vmem:[#allocation4] sm:$0xf] %vm3031, %v2999
        %3033 = vst.msk [vmem:[#allocation4 + $0x4] sm:$0xf] %vm3031, %v3001
        %3034 = vst.msk [vmem:[#allocation4 + $0x8] sm:$0xf] %vm3031, %v3003
        %3035 = vst.msk [vmem:[#allocation4 + $0xc] sm:$0xf] %vm3031, %v3005
        %3036 = vst.msk [vmem:[#allocation4 + $0x10] sm:$0xf] %vm3031, %v3007
        %3037 = vst.msk [vmem:[#allocation4 + $0x14] sm:$0xf] %vm3031, %v3009
        %3038 = vst.msk [vmem:[#allocation4 + $0x18] sm:$0xf] %vm3031, %v3011
        %3039 = vst.msk [vmem:[#allocation4 + $0x1c] sm:$0xf] %vm3031, %v3013
        %3040 = vst.msk [vmem:[#allocation4 + $0x20] sm:$0xf] %vm3031, %v3015
        %3041 = vst.msk [vmem:[#allocation4 + $0x24] sm:$0xf] %vm3031, %v3017
        %vm3042 = vcmask 1041152
        %3043 = vst.msk [vmem:[#allocation4 + $0x28] sm:$0x1] %vm3042, %v3019
        %v3044 = vld [vmem:[#allocation4] sm:$0xf]
        %v3045 = vld [vmem:[#allocation4 + $0x4] sm:$0xf]
        %v3046 = vld [vmem:[#allocation4 + $0x8] sm:$0xf]
        %v3047 = vld [vmem:[#allocation4 + $0xc] sm:$0xf]
        %v3048 = vld [vmem:[#allocation4 + $0x10] sm:$0xf]
        %v3049 = vld [vmem:[#allocation4 + $0x14] sm:$0xf]
        %v3050 = vld [vmem:[#allocation4 + $0x18] sm:$0xf]
        %v3051 = vld [vmem:[#allocation4 + $0x1c] sm:$0xf]
        %v3052 = vld [vmem:[#allocation4 + $0x20] sm:$0xf]
        %v3053 = vld [vmem:[#allocation4 + $0x24] sm:$0xf]
        %v3054 = vld [vmem:[#allocation4 + $0x28] sm:$0x1]
        %v3055 = vld [vmem:[%s3] sm:$0xf]
        %v3056 = vld [vmem:[%s3 + $0x4] sm:$0xf]
        %v3057 = vld [vmem:[%s3 + $0x8] sm:$0xf]
        %v3058 = vld [vmem:[%s3 + $0xc] sm:$0xf]
        %v3059 = vld [vmem:[%s3 + $0x10] sm:$0xf]
        %v3060 = vld [vmem:[%s3 + $0x14] sm:$0xf]
        %v3061 = vld [vmem:[%s3 + $0x18] sm:$0xf]
        %v3062 = vld [vmem:[%s3 + $0x1c] sm:$0xf]
        %v3063 = vld [vmem:[%s3 + $0x20] sm:$0xf]
        %v3064 = vld [vmem:[%s3 + $0x24] sm:$0xf]
        %v3065 = vld [vmem:[%s3 + $0x28] sm:$0xf]
        %v3066 = vld [vmem:[%s3 + $0x2c] sm:$0xf]
        %v3067 = vld [vmem:[%s3 + $0x30] sm:$0xf]
        %v3068 = vld [vmem:[%s3 + $0x34] sm:$0xf]
        %v3069 = vld [vmem:[%s3 + $0x38] sm:$0xf]
        %v3070 = vld [vmem:[%s3 + $0x3c] sm:$0xf]
        %v3072 = vlaneseq
        %v3073 = vshrl.u32 %v3072, 7
        %v3074 = vsub.s32 0, %v3073
        %v3075 = vrot.slane %v242, %v3074
        %v3088 = vunpack.c.l.b16 %v3044
        %v3089 = vunpack.c.l.b16 %v3045
        %v3090 = vunpack.c.l.b16 %v3046
        %v3091 = vunpack.c.l.b16 %v3047
        %v3092 = vunpack.c.l.b16 %v3048
        %v3093 = vunpack.c.l.b16 %v3049
        %v3094 = vunpack.c.l.b16 %v3050
        %v3095 = vunpack.c.l.b16 %v3051
        %v3096 = vunpack.c.l.b16 %v3052
        %v3097 = vunpack.c.l.b16 %v3053
        %v3098 = vunpack.c.l.b16 %v3054
        %v3099 = vpack.c.b16 %v3089, %v3088
        %v3100 = vpack.c.b16 %v3091, %v3090
        %v3101 = vpack.c.b16 %v3093, %v3092
        %v3102 = vpack.c.b16 %v3095, %v3094
        %v3103 = vpack.c.b16 %v3097, %v3096
        %v3104 = vpack.c.b16 %v3098, %v3098
        %v3127 = vunpack.c.l.b16 %v3055
        %v3128 = vunpack.c.l.b16 %v3056
        %v3129 = vunpack.c.l.b16 %v3057
        %v3130 = vunpack.c.l.b16 %v3058
        %v3131 = vunpack.c.l.b16 %v3059
        %v3132 = vunpack.c.l.b16 %v3060
        %v3133 = vunpack.c.l.b16 %v3061
        %v3134 = vunpack.c.l.b16 %v3062
        %v3135 = vunpack.c.l.b16 %v3063
        %v3136 = vunpack.c.l.b16 %v3064
        %v3137 = vunpack.c.l.b16 %v3065
        %v3138 = vunpack.c.l.b16 %v3066
        %v3139 = vunpack.c.l.b16 %v3067
        %v3140 = vunpack.c.l.b16 %v3068
        %v3141 = vunpack.c.l.b16 %v3069
        %v3142 = vunpack.c.l.b16 %v3070
        %v3143 = vpack.c.b16 %v3128, %v3127
        %v3144 = vpack.c.b16 %v3130, %v3129
        %v3145 = vpack.c.b16 %v3132, %v3131
        %v3146 = vpack.c.b16 %v3134, %v3133
        %v3147 = vpack.c.b16 %v3136, %v3135
        %v3148 = vpack.c.b16 %v3138, %v3137
        %v3149 = vpack.c.b16 %v3140, %v3139
        %v3150 = vpack.c.b16 %v3142, %v3141
        %3159 = vmatprep.subr.bf16.mxu0 0
        %3160 = vmatpush1.bf16.msra.mxu0 %v3143
        %3161 = vmatprep.subr.bf16.mxu0 0
        %3162 = vmatpush1.bf16.msra.mxu0 %v3144
        %3163 = vmatprep.subr.bf16.mxu0 0
        %3164 = vmatpush1.bf16.msra.mxu0 %v3145
        %3165 = vmatprep.subr.bf16.mxu0 0
        %3166 = vmatpush1.bf16.msra.mxu0 %v3146
        %3167 = vmatprep.subr.bf16.mxu0 0
        %3168 = vmatpush1.bf16.msra.mxu0 %v3147
        %3169 = vmatprep.subr.bf16.mxu0 0
        %3170 = vmatpush1.bf16.msra.mxu0 %v3148
        %3171 = vmatprep.subr.bf16.mxu0 0
        %3172 = vmatpush1.bf16.msra.mxu0 %v3149
        %3173 = vmatprep.subr.bf16.mxu0 0
        %3174 = vmatpush1.bf16.msra.mxu0 %v3150
        %3175 = vmatprep.subr.bf16.mxu0 0
        %3176 = vmatpush1.bf16.msra.mxu0 0
        %3177 = vmatprep.subr.bf16.mxu0 0
        %3178 = vmatpush1.bf16.msra.mxu0 0
        %3179 = vmatprep.subr.bf16.mxu0 0
        %3180 = vmatpush1.bf16.msra.mxu0 0
        %3181 = vmatprep.subr.bf16.mxu0 0
        %3182 = vmatpush1.bf16.msra.mxu0 0
        %3183 = vmatprep.subr.bf16.mxu0 0
        %3184 = vmatpush1.bf16.msra.mxu0 0
        %3185 = vmatprep.subr.bf16.mxu0 0
        %3186 = vmatpush1.bf16.msra.mxu0 0
        %3187 = vmatprep.subr.bf16.mxu0 0
        %3188 = vmatpush1.bf16.msra.mxu0 0
        %3189 = vmatprep.subr.bf16.mxu0 0
        %3190 = vmatpush1.bf16.msra.mxu0 0
        %3191 = vmatprep.mubr.bf16.mxu0 0
        %3192 = vmatmul.mubr.bf16.gmra.mrb[0].mxu0 %v3099
        %v3193 = vpop.f32.mrb[0].mxu0
        %v3194 = vadd.f32 %v3075, %v3193
        %v3195 = vpop.f32.mrb[0].mxu0
        %v3196 = vpop.f32.mrb[0].mxu0
        %v3197 = vadd.f32 %v3075, %v3196
        %v3198 = vpop.f32.mrb[0].mxu0
        %3199 = vmatprep.mubr.bf16.mxu0 0
        %3200 = vmatmul.mubr.bf16.gmra.mrb[0].mxu0 %v3100
        %v3201 = vpop.f32.mrb[0].mxu0
        %v3202 = vadd.f32 %v3075, %v3201
        %v3203 = vpop.f32.mrb[0].mxu0
        %v3204 = vpop.f32.mrb[0].mxu0
        %v3205 = vadd.f32 %v3075, %v3204
        %v3206 = vpop.f32.mrb[0].mxu0
        %3207 = vmatprep.mubr.bf16.mxu0 0
        %3208 = vmatmul.mubr.bf16.gmra.mrb[0].mxu0 %v3101
        %v3209 = vpop.f32.mrb[0].mxu0
        %v3210 = vadd.f32 %v3075, %v3209
        %v3211 = vpop.f32.mrb[0].mxu0
        %v3212 = vpop.f32.mrb[0].mxu0
        %v3213 = vadd.f32 %v3075, %v3212
        %v3214 = vpop.f32.mrb[0].mxu0
        %3215 = vmatprep.mubr.bf16.mxu0 0
        %3216 = vmatmul.mubr.bf16.gmra.mrb[0].mxu0 %v3102
        %v3217 = vpop.f32.mrb[0].mxu0
        %v3218 = vadd.f32 %v3075, %v3217
        %v3219 = vpop.f32.mrb[0].mxu0
        %v3220 = vpop.f32.mrb[0].mxu0
        %v3221 = vadd.f32 %v3075, %v3220
        %v3222 = vpop.f32.mrb[0].mxu0
        %3223 = vmatprep.mubr.bf16.mxu0 0
        %3224 = vmatmul.mubr.bf16.gmra.mrb[0].mxu0 %v3103
        %v3225 = vpop.f32.mrb[0].mxu0
        %v3226 = vadd.f32 %v3075, %v3225
        %v3227 = vpop.f32.mrb[0].mxu0
        %v3228 = vpop.f32.mrb[0].mxu0
        %v3229 = vadd.f32 %v3075, %v3228
        %v3230 = vpop.f32.mrb[0].mxu0
        %3231 = vmatprep.mubr.bf16.mxu0 0
        %3232 = vmatmul.mubr.bf16.gmra.mrb[0].mxu0 %v3104
        %v3233 = vpop.f32.mrb[0].mxu0
        %v3234 = vadd.f32 %v3075, %v3233
        %v3235 = vpop.f32.mrb[0].mxu0
        %v3236 = vpop.f32.mrb[0].mxu0
        %v3237 = vpop.f32.mrb[0].mxu0
        %3238 = vdwg.mxu0
        %3239 = vst [vmem:[%s239] sm:$0xff] %v3194
        %3240 = vst [vmem:[%s239 + $0x8] sm:$0xff] %v3197
        %3241 = vst [vmem:[%s239 + $0x10] sm:$0xff] %v3202
        %3242 = vst [vmem:[%s239 + $0x18] sm:$0xff] %v3205
        %3243 = vst [vmem:[%s239 + $0x20] sm:$0xff] %v3210
        %3244 = vst [vmem:[%s239 + $0x28] sm:$0xff] %v3213
        %3245 = vst [vmem:[%s239 + $0x30] sm:$0xff] %v3218
        %3246 = vst [vmem:[%s239 + $0x38] sm:$0xff] %v3221
        %3247 = vst [vmem:[%s239 + $0x40] sm:$0xff] %v3226
        %3248 = vst [vmem:[%s239 + $0x48] sm:$0xff] %v3229
        %3249 = vst [vmem:[%s239 + $0x50] sm:$0x3] %v3234
        %p3250 = scmp.lt.s32.totalorder %s17, 1
        %s3251 = scalar_select %p3250, %s17, 1
        %s3252 = smul.addr %s3251, 11
        %s3253 = smul.addr %s3252, 8
        %s3254 = scalar_lea.vmem %s5, %s3253
        // Predicated region
        $region45: #{tpu_custom_call.1} parent=39 // pred_check
          %p3255 = pneg %p145
        $region46: #{tpu_custom_call.1} parent=39 // pred_check_branch
          %3257 = sbr.rel (%p3255) target = $region48
        $region47: #{tpu_custom_call.1} parent=39 // pred_region
          _
        $region48: #{tpu_custom_call.1} parent=39 // pred_fallthru
          _
      $region40: #{tpu_custom_call.1} parent=5 // pred_fallthru
        _
      %p3258 = scmp.le.s32.totalorder 2, %s12
      // Predicated region
      $region49: #{tpu_custom_call.1} parent=5 // pred_check
        %p3259 = pneg %p3258
      $region50: #{tpu_custom_call.1} parent=5 // pred_check_branch
        %3261 = sbr.rel (%p3259) target = $region52
      $region51: #{tpu_custom_call.1} parent=5 // pred_region
        %s3262 = ssub.s32 %s12, 2
        // Predicated region
        $region53: #{tpu_custom_call.1} parent=51 // pred_check
          %p3263 = pneg %p151
        $region54: #{tpu_custom_call.1} parent=51 // pred_check_branch
          %3265 = sbr.rel (%p3263) target = $region56
        $region55: #{tpu_custom_call.1} parent=51 // pred_region
          %p3266 = scmp.lt.s32.totalorder %s18, 1
          %s3267 = scalar_select %p3266, %s18, 1
          %s3268 = smul.addr %s3267, 11
          %s3269 = smul.addr %s3268, 8
          %s3270 = scalar_lea.vmem %s5, %s3269
        $region56: #{tpu_custom_call.1} parent=51 // pred_fallthru
          _
      $region52: #{tpu_custom_call.1} parent=5 // pred_fallthru
        _
    $region6: #{tpu_custom_call.1} parent=1 // loop_footer
      %s16 = sadd.s32 1, %s12
    $region7: #{tpu_custom_call.1} parent=1 // loop_footer_branch
      %11 = sbr.rel target = $region3
    $region8: #{tpu_custom_call.1} parent=1 // loop_exit
      _
    %3271 = vsyncpa [#allocation6], 1
    %s3272 = scalar_lea.sflag [#allocation6], 1
    %3273 = vsyncpa %s3272, 1

</llo_original>
